<compile_context>
chip_gen: v6e
topology: v6e:2x2x1
jax: 0.10.0
libtpu: 0.0.40
codegen_flags: <defaults>
</compile_context>

<pallas_src>
import jax
import jax.numpy as jnp
from jax.experimental import pallas as pl
from jax.experimental.pallas import tpu as pltpu

# ---- problem sizes (small, deterministic demo) ------------------------------
B = 16            # graphs per forward pass
N = 32            # nodes per graph
BG = 4            # graphs packed into one grid step (block-diagonal adjacency)
BGN = BG * N      # 128 rows per grid step -> full lane tile / 128-row MXU tiles
INPUT_DIM = 64
HIDDEN_DIM = 32   # per-head hidden dim (num_heads = 1)
OUTPUT_DIM = 16
OUT_PAD = 128     # lane-dense padded output width (sliced to OUTPUT_DIM outside)
NEG_SLOPE = 0.2
C_LIN = 0.5 * (1.0 + NEG_SLOPE)   # lrelu(v) = C_LIN * v + C_ABS * |v|
C_ABS = 0.5 * (1.0 - NEG_SLOPE)


def _lrelu(v):
    # identical to leaky_relu(v, NEG_SLOPE) for 0 < NEG_SLOPE < 1, one op fewer
    return jnp.maximum(v, NEG_SLOPE * v)


def gat_model_kernel(x_ref, xt_ref, adj_ref, w_sd_ref, w_srcT_ref, w_out_ref,
                     small_ref, scal_ref, out_ref):
    H, D = HIDDEN_DIM, INPUT_DIM

    x2 = x_ref[...]                                        # (BGN, D)  bf16
    xt = xt_ref[...]                                       # (D, BGN)  bf16

    b_proj = small_ref[0:1, 0:2 * H + 1]                   # (1, 2H+1) f32
    b_out = small_ref[1:2, :]                              # (1, 128)  f32 (b_r0+b_r1)

    # --- fused projection (one MXU matmul, f32 accum):
    #     [ x@w_src + b_src | x@w_dst + b_dst + b_src | <attn, fd_i> + bias ]
    fsd = jnp.dot(x2, w_sd_ref[...], preferred_element_type=jnp.float32) + b_proj
    fs = fsd[:, 0:H]                                       # (BGN, H)  aggregated message
    fdb = fsd[:, H:2 * H]                                  # (BGN, H)  dst side of score
    ad = fsd[:, 2 * H:2 * H + 1]                           # (BGN, 1)  <attn, fd_i> (rank-1)

    # --- transposed src projection (+ rank-1 src row), nodes on the lane axis,
    #     straight from the transposed input (no in-kernel transpose)
    fsT_ext = jnp.dot(w_srcT_ref[...], xt,
                      preferred_element_type=jnp.float32)  # (H+1, BGN)
    as_row = fsT_ext[H:H + 1, :]                           # (1, BGN)  <attn, fs_j>

    # --- GATv2 pairwise scores, accumulated over the head dim:
    #     e[i,j] = c1*(<attn,fd_i> + <attn,fs_j>) + sum_h c2*attn[h]*|fd_ih + fs_jh|
    e = C_LIN * (ad + as_row)                              # rank-1 linear part
    for h in range(H):
        e = e + scal_ref[h] * jnp.abs(fdb[:, h:h + 1] + fsT_ext[h:h + 1, :])

    # --- masked edge softmax over incoming edges (source/lane axis); the
    #     block-diagonal adjacency keeps the BG graphs in this block independent
    mask = adj_ref[...] > 0.0                              # bf16 compare
    e = jnp.where(mask, e, -1e30)
    m = jnp.max(e, axis=-1, keepdims=True)
    p = jnp.where(mask, jnp.exp(e - m), 0.0)
    denom = jnp.sum(p, axis=-1, keepdims=True)
    a = p * pl.reciprocal(jnp.maximum(denom, 1e-30), approx=True)

    # --- weighted aggregation of projected source features (single MXU matmul)
    gat = jnp.dot(a.astype(jnp.bfloat16), fs.astype(jnp.bfloat16),
                  preferred_element_type=jnp.float32)      # (BGN, H)

    # norm='none'; model activation LeakyReLU(0.2); dropout = 0
    h1 = _lrelu(gat)

    # --- jumping-knowledge readouts: MLP0(x) + MLP1(h1), lane-dense output ---
    s = jnp.dot(x2, w_out_ref[0:D, :], preferred_element_type=jnp.float32)
    s = s + jnp.dot(h1.astype(jnp.bfloat16), w_out_ref[D:D + H, :],
                    preferred_element_type=jnp.float32)
    out_ref[...] = s + b_out


def gat_model_forward(x, adj, params):
    """x: (B, N, INPUT_DIM) f32 node features; adj: (B, N, N) dense adjacency
    (dst x src, nonzero = edge).  Returns (B, N, OUTPUT_DIM) scores."""
    w_src, b_src, w_dst, b_dst, attn, w_r0, b_r0, w_r1, b_r1 = params
    H, D = HIDDEN_DIM, INPUT_DIM
    num_blocks = (B * N) // BGN

    # --- operand packing / layout prep (plain XLA, outside the kernel) -------
    x2 = x.reshape(B * N, D).astype(jnp.bfloat16)                    # (B*N, D)
    xt = x2.T                                                        # (D, B*N)

    attn_vec = attn[0].astype(jnp.float32)                           # (H,)
    wa_src = w_src @ attn_vec                                        # (D,)  w_src . attn
    wa_dst = w_dst @ attn_vec                                        # (D,)  w_dst . attn
    c_ad = jnp.dot(attn_vec, b_src[0] + b_dst[0])                    # scalar bias of <attn, fd>

    # fused dst-side projection: [w_src | w_dst | w_dst@attn]  -> (D, 2H+1)
    w_sd = jnp.concatenate([w_src, w_dst, wa_dst[:, None]],
                           axis=1).astype(jnp.bfloat16)
    # transposed src-side projection: [w_src^T ; (w_src@attn)^T] -> (H+1, D)
    w_srcT = jnp.concatenate([w_src.T, wa_src[None, :]],
                             axis=0).astype(jnp.bfloat16)

    pad = OUT_PAD - OUTPUT_DIM
    w_out = jnp.concatenate(
        [jnp.pad(w_r0, ((0, 0), (0, pad))),
         jnp.pad(w_r1, ((0, 0), (0, pad)))], axis=0).astype(jnp.bfloat16)  # (D+H, 128)

    small = jnp.zeros((8, 128), jnp.float32)
    b_proj = jnp.concatenate([b_src[0], b_dst[0] + b_src[0],
                              jnp.reshape(c_ad, (1,))])              # (2H+1,)
    small = small.at[0, :2 * H + 1].set(b_proj)
    small = small.at[1, :OUTPUT_DIM].set(b_r0[0] + b_r1[0])
    scal = (C_ABS * attn_vec).astype(jnp.float32)                    # (H,) -> SMEM

    # Block-diagonal adjacency: the BG graphs sharing a grid step stay independent.
    adjm = (adj > 0).astype(jnp.bfloat16).reshape(num_blocks, BG, N, N)
    adj_full = jnp.zeros((num_blocks, BG, N, BGN), jnp.bfloat16)
    for g in range(BG):
        adj_full = adj_full.at[:, g, :, g * N:(g + 1) * N].set(adjm[:, g])
    adj_full = adj_full.reshape(B * N, BGN)

    cost = pl.CostEstimate(
        flops=int(2 * B * N * D * (2 * H + 1)                  # fused projection
                  + 2 * num_blocks * (H + 1) * D * BGN         # transposed src projection
                  + 4 * num_blocks * H * BGN * BGN             # score accumulation
                  + 6 * num_blocks * BGN * BGN                 # softmax / masking
                  + 2 * num_blocks * BGN * BGN * H             # aggregation
                  + 2 * B * N * (D + H) * OUT_PAD),            # readouts
        transcendentals=int(num_blocks * BGN * BGN + B * N),
        bytes_accessed=int(x2.size * 2 + xt.size * 2 + adj_full.size * 2
                           + w_sd.size * 2 + w_srcT.size * 2 + w_out.size * 2
                           + small.size * 4 + scal.size * 4 + B * N * OUT_PAD * 4),
    )

    out_padded = pl.pallas_call(
        gat_model_kernel,
        out_shape=jax.ShapeDtypeStruct((B * N, OUT_PAD), jnp.float32),
        grid=(num_blocks,),
        in_specs=[
            pl.BlockSpec((BGN, D), lambda i: (i, 0)),             # x (row block)
            pl.BlockSpec((D, BGN), lambda i: (0, i)),             # x^T (col block)
            pl.BlockSpec((BGN, BGN), lambda i: (i, 0)),           # block-diag adjacency
            pl.BlockSpec((D, 2 * H + 1), lambda i: (0, 0)),       # [w_src | w_dst | w_dst@attn]
            pl.BlockSpec((H + 1, D), lambda i: (0, 0)),           # [w_src^T ; (w_src@attn)^T]
            pl.BlockSpec((D + H, OUT_PAD), lambda i: (0, 0)),     # [w_r0 ; w_r1] padded
            pl.BlockSpec((8, 128), lambda i: (0, 0)),             # packed bias rows
            pl.BlockSpec(memory_space=pltpu.MemorySpace.SMEM),    # c2*attn scalars
        ],
        out_specs=pl.BlockSpec((BGN, OUT_PAD), lambda i: (i, 0)),
        compiler_params=pltpu.CompilerParams(dimension_semantics=("parallel",)),
        cost_estimate=cost,
    )(x2, xt, adj_full, w_sd, w_srcT, w_out, small, scal)

    return out_padded[:, :OUTPUT_DIM].reshape(B, N, OUTPUT_DIM)


def reference_forward(x, adj, params):
    """Pure-JAX reference with the same math (and matching bf16 matmul casts)."""
    w_src, b_src, w_dst, b_dst, attn, w_r0, b_r0, w_r1, b_r1 = params
    bf, f32 = jnp.bfloat16, jnp.float32
    xb = x.astype(bf)
    fs = jnp.einsum('bnd,dh->bnh', xb, w_src.astype(bf),
                    preferred_element_type=f32) + b_src
    fd = jnp.einsum('bnd,dh->bnh', xb, w_dst.astype(bf),
                    preferred_element_type=f32) + b_dst
    t = _lrelu(fd[:, :, None, :] + fs[:, None, :, :])            # (B, Ndst, Nsrc, H)
    e = jnp.einsum('bijh,h->bij', t, attn[0])
    mask = adj > 0
    e_m = jnp.where(mask, e, -1e30)
    m = jnp.max(e_m, axis=-1, keepdims=True)
    p = jnp.where(mask, jnp.exp(e_m - m), 0.0)
    a = p / jnp.maximum(jnp.sum(p, axis=-1, keepdims=True), 1e-30)
    gat = jnp.einsum('bij,bjh->bih', a.astype(bf), fs.astype(bf),
                     preferred_element_type=f32)
    h1 = _lrelu(gat)
    s0 = jnp.einsum('bnd,do->bno', xb, w_r0.astype(bf), preferred_element_type=f32) + b_r0
    s1 = jnp.einsum('bnh,ho->bno', h1.astype(bf), w_r1.astype(bf),
                    preferred_element_type=f32) + b_r1
    return s0 + s1


if __name__ == "__main__":
    key = jax.random.PRNGKey(0)
    ks = jax.random.split(key, 12)

    # node features (B graphs, N nodes each)
    x = jax.random.normal(ks[0], (B, N, INPUT_DIM), dtype=jnp.float32)

    # dense random adjacency (dst x src) per graph, plus self-loops
    adj = (jax.random.uniform(ks[1], (B, N, N)) < 0.25).astype(jnp.float32)
    adj = jnp.maximum(adj, jnp.eye(N, dtype=jnp.float32)[None, :, :])

    # GATv2Conv parameters (fc_src, fc_dst with bias; attn vector)
    scale_in = 1.0 / jnp.sqrt(jnp.float32(INPUT_DIM))
    w_src = jax.random.normal(ks[2], (INPUT_DIM, HIDDEN_DIM), jnp.float32) * scale_in
    b_src = jax.random.normal(ks[3], (1, HIDDEN_DIM), jnp.float32) * 0.1
    w_dst = jax.random.normal(ks[4], (INPUT_DIM, HIDDEN_DIM), jnp.float32) * scale_in
    b_dst = jax.random.normal(ks[5], (1, HIDDEN_DIM), jnp.float32) * 0.1
    attn = jax.random.normal(ks[6], (1, HIDDEN_DIM), jnp.float32) * (
        1.0 / jnp.sqrt(jnp.float32(HIDDEN_DIM)))

    # readout MLPs (jumping knowledge): readout0 on raw feats, readout1 on GAT output
    w_r0 = jax.random.normal(ks[7], (INPUT_DIM, OUTPUT_DIM), jnp.float32) * scale_in
    b_r0 = jax.random.normal(ks[8], (1, OUTPUT_DIM), jnp.float32) * 0.1
    scale_h = 1.0 / jnp.sqrt(jnp.float32(HIDDEN_DIM))
    w_r1 = jax.random.normal(ks[9], (HIDDEN_DIM, OUTPUT_DIM), jnp.float32) * scale_h
    b_r1 = jax.random.normal(ks[10], (1, OUTPUT_DIM), jnp.float32) * 0.1

    params = (w_src, b_src, w_dst, b_dst, attn, w_r0, b_r0, w_r1, b_r1)

    out = gat_model_forward(x, adj, params)
    out = jax.block_until_ready(out)

    ref = reference_forward(x, adj, params)
    assert out.shape == (B, N, OUTPUT_DIM)
    max_err = float(jnp.max(jnp.abs(out - ref)))
    assert jnp.allclose(out, ref, atol=2e-2, rtol=2e-2), f"max_err={max_err}"

    print("KERNEL_OK")
</pallas_src>

<mosaic_0001>
module attributes {stable_mosaic.version = 11 : i64} {
  func.func @gat_model_kernel(%arg0: i32, %arg1: memref<128x64xbf16, #tpu.memory_space<vmem>>, %arg2: memref<64x128xbf16, #tpu.memory_space<vmem>>, %arg3: memref<128x128xbf16, #tpu.memory_space<vmem>>, %arg4: memref<64x65xbf16, #tpu.memory_space<vmem>>, %arg5: memref<33x64xbf16, #tpu.memory_space<vmem>>, %arg6: memref<96x128xbf16, #tpu.memory_space<vmem>>, %arg7: memref<8x128xf32, #tpu.memory_space<vmem>>, %arg8: memref<32xf32, #tpu.memory_space<smem>>, %arg9: memref<128x128xf32, #tpu.memory_space<vmem>>) attributes {dimension_semantics = [#tpu.dimension_semantics<parallel>], iteration_bounds = array<i64: 4>, scalar_prefetch = 0 : i64, scratch_operands = 0 : i64, tpu.core_type = #tpu.core_type<tc>, window_params = [{transform_indices = @transform_0, window_bounds = array<i64: 128, 64>}, {transform_indices = @transform_1, window_bounds = array<i64: 64, 128>}, {transform_indices = @transform_2, window_bounds = array<i64: 128, 128>}, {pipeline_mode = #tpu.pipeline_mode<synchronous>, transform_indices = @transform_3, window_bounds = array<i64: 64, 65>}, {pipeline_mode = #tpu.pipeline_mode<synchronous>, transform_indices = @transform_4, window_bounds = array<i64: 33, 64>}, {pipeline_mode = #tpu.pipeline_mode<synchronous>, transform_indices = @transform_5, window_bounds = array<i64: 96, 128>}, {pipeline_mode = #tpu.pipeline_mode<synchronous>, transform_indices = @transform_6, window_bounds = array<i64: 8, 128>}, {transform_indices = @transform_7, window_bounds = array<i64: 32>}, {transform_indices = @transform_8, window_bounds = array<i64: 128, 128>}]} {
    %c0 = arith.constant 0 : index
    %c0_0 = arith.constant 0 : index
    %0 = vector.load %arg1[%c0, %c0_0] : memref<128x64xbf16, #tpu.memory_space<vmem>>, vector<128x64xbf16>
    %c0_1 = arith.constant 0 : index
    %c0_2 = arith.constant 0 : index
    %1 = vector.load %arg2[%c0_1, %c0_2] : memref<64x128xbf16, #tpu.memory_space<vmem>>, vector<64x128xbf16>
    %c0_3 = arith.constant 0 : index
    %c0_4 = arith.constant 0 : index
    %2 = vector.load %arg7[%c0_3, %c0_4] : memref<8x128xf32, #tpu.memory_space<vmem>>, vector<1x65xf32>
    %c1 = arith.constant 1 : index
    %c0_5 = arith.constant 0 : index
    %3 = vector.load %arg7[%c1, %c0_5] : memref<8x128xf32, #tpu.memory_space<vmem>>, vector<1x128xf32>
    %c0_6 = arith.constant 0 : index
    %c0_7 = arith.constant 0 : index
    %4 = vector.load %arg4[%c0_6, %c0_7] : memref<64x65xbf16, #tpu.memory_space<vmem>>, vector<64x65xbf16>
    %cst = arith.constant dense<0.000000e+00> : vector<128x65xf32>
    %5 = tpu.matmul %0, %4, %cst {dimension_numbers = #tpu.dot_dimension_numbers<[1], [0], [0], [1], [0, 0, 1, 1], [], []>} : vector<128x64xbf16>, vector<64x65xbf16>, vector<128x65xf32> -> vector<128x65xf32>
    %6 = vector.broadcast %2 : vector<1x65xf32> to vector<128x65xf32>
    %7 = arith.addf %5, %6 : vector<128x65xf32>
    %8 = vector.extract_strided_slice %7 {offsets = [0, 0], sizes = [128, 32], strides = [1, 1]} : vector<128x65xf32> to vector<128x32xf32>
    %9 = vector.extract_strided_slice %7 {offsets = [0, 32], sizes = [128, 32], strides = [1, 1]} : vector<128x65xf32> to vector<128x32xf32>
    %10 = vector.extract_strided_slice %7 {offsets = [0, 64], sizes = [128, 1], strides = [1, 1]} : vector<128x65xf32> to vector<128x1xf32>
    %c0_8 = arith.constant 0 : index
    %c0_9 = arith.constant 0 : index
    %11 = vector.load %arg5[%c0_8, %c0_9] : memref<33x64xbf16, #tpu.memory_space<vmem>>, vector<33x64xbf16>
    %cst_10 = arith.constant dense<0.000000e+00> : vector<33x128xf32>
    %12 = tpu.matmul %11, %1, %cst_10 {dimension_numbers = #tpu.dot_dimension_numbers<[1], [0], [0], [1], [0, 0, 1, 1], [], []>} : vector<33x64xbf16>, vector<64x128xbf16>, vector<33x128xf32> -> vector<33x128xf32>
    %13 = vector.extract_strided_slice %12 {offsets = [32, 0], sizes = [1, 128], strides = [1, 1]} : vector<33x128xf32> to vector<1x128xf32>
    %14 = vector.broadcast %10 : vector<128x1xf32> to vector<128x128xf32>
    %15 = vector.broadcast %13 : vector<1x128xf32> to vector<128x128xf32>
    %16 = arith.addf %14, %15 : vector<128x128xf32>
    %cst_11 = arith.constant 6.000000e-01 : f32
    %17 = vector.broadcast %cst_11 : f32 to vector<128x128xf32>
    %18 = arith.mulf %17, %16 : vector<128x128xf32>
    %c0_12 = arith.constant 0 : index
    %19 = memref.load %arg8[%c0_12] : memref<32xf32, #tpu.memory_space<smem>>
    %20 = vector.extract_strided_slice %9 {offsets = [0, 0], sizes = [128, 1], strides = [1, 1]} : vector<128x32xf32> to vector<128x1xf32>
    %21 = vector.extract_strided_slice %12 {offsets = [0, 0], sizes = [1, 128], strides = [1, 1]} : vector<33x128xf32> to vector<1x128xf32>
    %22 = vector.broadcast %20 : vector<128x1xf32> to vector<128x128xf32>
    %23 = vector.broadcast %21 : vector<1x128xf32> to vector<128x128xf32>
    %24 = arith.addf %22, %23 : vector<128x128xf32>
    %25 = math.absf %24 : vector<128x128xf32>
    %26 = vector.broadcast %19 : f32 to vector<128x128xf32>
    %27 = arith.mulf %26, %25 : vector<128x128xf32>
    %28 = arith.addf %18, %27 : vector<128x128xf32>
    %c1_13 = arith.constant 1 : index
    %29 = memref.load %arg8[%c1_13] : memref<32xf32, #tpu.memory_space<smem>>
    %30 = vector.extract_strided_slice %9 {offsets = [0, 1], sizes = [128, 1], strides = [1, 1]} : vector<128x32xf32> to vector<128x1xf32>
    %31 = vector.extract_strided_slice %12 {offsets = [1, 0], sizes = [1, 128], strides = [1, 1]} : vector<33x128xf32> to vector<1x128xf32>
    %32 = vector.broadcast %30 : vector<128x1xf32> to vector<128x128xf32>
    %33 = vector.broadcast %31 : vector<1x128xf32> to vector<128x128xf32>
    %34 = arith.addf %32, %33 : vector<128x128xf32>
    %35 = math.absf %34 : vector<128x128xf32>
    %36 = vector.broadcast %29 : f32 to vector<128x128xf32>
    %37 = arith.mulf %36, %35 : vector<128x128xf32>
    %38 = arith.addf %28, %37 : vector<128x128xf32>
    %c2 = arith.constant 2 : index
    %39 = memref.load %arg8[%c2] : memref<32xf32, #tpu.memory_space<smem>>
    %40 = vector.extract_strided_slice %9 {offsets = [0, 2], sizes = [128, 1], strides = [1, 1]} : vector<128x32xf32> to vector<128x1xf32>
    %41 = vector.extract_strided_slice %12 {offsets = [2, 0], sizes = [1, 128], strides = [1, 1]} : vector<33x128xf32> to vector<1x128xf32>
    %42 = vector.broadcast %40 : vector<128x1xf32> to vector<128x128xf32>
    %43 = vector.broadcast %41 : vector<1x128xf32> to vector<128x128xf32>
    %44 = arith.addf %42, %43 : vector<128x128xf32>
    %45 = math.absf %44 : vector<128x128xf32>
    %46 = vector.broadcast %39 : f32 to vector<128x128xf32>
    %47 = arith.mulf %46, %45 : vector<128x128xf32>
    %48 = arith.addf %38, %47 : vector<128x128xf32>
    %c3 = arith.constant 3 : index
    %49 = memref.load %arg8[%c3] : memref<32xf32, #tpu.memory_space<smem>>
    %50 = vector.extract_strided_slice %9 {offsets = [0, 3], sizes = [128, 1], strides = [1, 1]} : vector<128x32xf32> to vector<128x1xf32>
    %51 = vector.extract_strided_slice %12 {offsets = [3, 0], sizes = [1, 128], strides = [1, 1]} : vector<33x128xf32> to vector<1x128xf32>
    %52 = vector.broadcast %50 : vector<128x1xf32> to vector<128x128xf32>
    %53 = vector.broadcast %51 : vector<1x128xf32> to vector<128x128xf32>
    %54 = arith.addf %52, %53 : vector<128x128xf32>
    %55 = math.absf %54 : vector<128x128xf32>
    %56 = vector.broadcast %49 : f32 to vector<128x128xf32>
    %57 = arith.mulf %56, %55 : vector<128x128xf32>
    %58 = arith.addf %48, %57 : vector<128x128xf32>
    %c4 = arith.constant 4 : index
    %59 = memref.load %arg8[%c4] : memref<32xf32, #tpu.memory_space<smem>>
    %60 = vector.extract_strided_slice %9 {offsets = [0, 4], sizes = [128, 1], strides = [1, 1]} : vector<128x32xf32> to vector<128x1xf32>
    %61 = vector.extract_strided_slice %12 {offsets = [4, 0], sizes = [1, 128], strides = [1, 1]} : vector<33x128xf32> to vector<1x128xf32>
    %62 = vector.broadcast %60 : vector<128x1xf32> to vector<128x128xf32>
    %63 = vector.broadcast %61 : vector<1x128xf32> to vector<128x128xf32>
    %64 = arith.addf %62, %63 : vector<128x128xf32>
    %65 = math.absf %64 : vector<128x128xf32>
    %66 = vector.broadcast %59 : f32 to vector<128x128xf32>
    %67 = arith.mulf %66, %65 : vector<128x128xf32>
    %68 = arith.addf %58, %67 : vector<128x128xf32>
    %c5 = arith.constant 5 : index
    %69 = memref.load %arg8[%c5] : memref<32xf32, #tpu.memory_space<smem>>
    %70 = vector.extract_strided_slice %9 {offsets = [0, 5], sizes = [128, 1], strides = [1, 1]} : vector<128x32xf32> to vector<128x1xf32>
    %71 = vector.extract_strided_slice %12 {offsets = [5, 0], sizes = [1, 128], strides = [1, 1]} : vector<33x128xf32> to vector<1x128xf32>
    %72 = vector.broadcast %70 : vector<128x1xf32> to vector<128x128xf32>
    %73 = vector.broadcast %71 : vector<1x128xf32> to vector<128x128xf32>
    %74 = arith.addf %72, %73 : vector<128x128xf32>
    %75 = math.absf %74 : vector<128x128xf32>
    %76 = vector.broadcast %69 : f32 to vector<128x128xf32>
    %77 = arith.mulf %76, %75 : vector<128x128xf32>
    %78 = arith.addf %68, %77 : vector<128x128xf32>
    %c6 = arith.constant 6 : index
    %79 = memref.load %arg8[%c6] : memref<32xf32, #tpu.memory_space<smem>>
    %80 = vector.extract_strided_slice %9 {offsets = [0, 6], sizes = [128, 1], strides = [1, 1]} : vector<128x32xf32> to vector<128x1xf32>
    %81 = vector.extract_strided_slice %12 {offsets = [6, 0], sizes = [1, 128], strides = [1, 1]} : vector<33x128xf32> to vector<1x128xf32>
    %82 = vector.broadcast %80 : vector<128x1xf32> to vector<128x128xf32>
    %83 = vector.broadcast %81 : vector<1x128xf32> to vector<128x128xf32>
    %84 = arith.addf %82, %83 : vector<128x128xf32>
    %85 = math.absf %84 : vector<128x128xf32>
    %86 = vector.broadcast %79 : f32 to vector<128x128xf32>
    %87 = arith.mulf %86, %85 : vector<128x128xf32>
    %88 = arith.addf %78, %87 : vector<128x128xf32>
    %c7 = arith.constant 7 : index
    %89 = memref.load %arg8[%c7] : memref<32xf32, #tpu.memory_space<smem>>
    %90 = vector.extract_strided_slice %9 {offsets = [0, 7], sizes = [128, 1], strides = [1, 1]} : vector<128x32xf32> to vector<128x1xf32>
    %91 = vector.extract_strided_slice %12 {offsets = [7, 0], sizes = [1, 128], strides = [1, 1]} : vector<33x128xf32> to vector<1x128xf32>
    %92 = vector.broadcast %90 : vector<128x1xf32> to vector<128x128xf32>
    %93 = vector.broadcast %91 : vector<1x128xf32> to vector<128x128xf32>
    %94 = arith.addf %92, %93 : vector<128x128xf32>
    %95 = math.absf %94 : vector<128x128xf32>
    %96 = vector.broadcast %89 : f32 to vector<128x128xf32>
    %97 = arith.mulf %96, %95 : vector<128x128xf32>
    %98 = arith.addf %88, %97 : vector<128x128xf32>
    %c8 = arith.constant 8 : index
    %99 = memref.load %arg8[%c8] : memref<32xf32, #tpu.memory_space<smem>>
    %100 = vector.extract_strided_slice %9 {offsets = [0, 8], sizes = [128, 1], strides = [1, 1]} : vector<128x32xf32> to vector<128x1xf32>
    %101 = vector.extract_strided_slice %12 {offsets = [8, 0], sizes = [1, 128], strides = [1, 1]} : vector<33x128xf32> to vector<1x128xf32>
    %102 = vector.broadcast %100 : vector<128x1xf32> to vector<128x128xf32>
    %103 = vector.broadcast %101 : vector<1x128xf32> to vector<128x128xf32>
    %104 = arith.addf %102, %103 : vector<128x128xf32>
    %105 = math.absf %104 : vector<128x128xf32>
    %106 = vector.broadcast %99 : f32 to vector<128x128xf32>
    %107 = arith.mulf %106, %105 : vector<128x128xf32>
    %108 = arith.addf %98, %107 : vector<128x128xf32>
    %c9 = arith.constant 9 : index
    %109 = memref.load %arg8[%c9] : memref<32xf32, #tpu.memory_space<smem>>
    %110 = vector.extract_strided_slice %9 {offsets = [0, 9], sizes = [128, 1], strides = [1, 1]} : vector<128x32xf32> to vector<128x1xf32>
    %111 = vector.extract_strided_slice %12 {offsets = [9, 0], sizes = [1, 128], strides = [1, 1]} : vector<33x128xf32> to vector<1x128xf32>
    %112 = vector.broadcast %110 : vector<128x1xf32> to vector<128x128xf32>
    %113 = vector.broadcast %111 : vector<1x128xf32> to vector<128x128xf32>
    %114 = arith.addf %112, %113 : vector<128x128xf32>
    %115 = math.absf %114 : vector<128x128xf32>
    %116 = vector.broadcast %109 : f32 to vector<128x128xf32>
    %117 = arith.mulf %116, %115 : vector<128x128xf32>
    %118 = arith.addf %108, %117 : vector<128x128xf32>
    %c10 = arith.constant 10 : index
    %119 = memref.load %arg8[%c10] : memref<32xf32, #tpu.memory_space<smem>>
    %120 = vector.extract_strided_slice %9 {offsets = [0, 10], sizes = [128, 1], strides = [1, 1]} : vector<128x32xf32> to vector<128x1xf32>
    %121 = vector.extract_strided_slice %12 {offsets = [10, 0], sizes = [1, 128], strides = [1, 1]} : vector<33x128xf32> to vector<1x128xf32>
    %122 = vector.broadcast %120 : vector<128x1xf32> to vector<128x128xf32>
    %123 = vector.broadcast %121 : vector<1x128xf32> to vector<128x128xf32>
    %124 = arith.addf %122, %123 : vector<128x128xf32>
    %125 = math.absf %124 : vector<128x128xf32>
    %126 = vector.broadcast %119 : f32 to vector<128x128xf32>
    %127 = arith.mulf %126, %125 : vector<128x128xf32>
    %128 = arith.addf %118, %127 : vector<128x128xf32>
    %c11 = arith.constant 11 : index
    %129 = memref.load %arg8[%c11] : memref<32xf32, #tpu.memory_space<smem>>
    %130 = vector.extract_strided_slice %9 {offsets = [0, 11], sizes = [128, 1], strides = [1, 1]} : vector<128x32xf32> to vector<128x1xf32>
    %131 = vector.extract_strided_slice %12 {offsets = [11, 0], sizes = [1, 128], strides = [1, 1]} : vector<33x128xf32> to vector<1x128xf32>
    %132 = vector.broadcast %130 : vector<128x1xf32> to vector<128x128xf32>
    %133 = vector.broadcast %131 : vector<1x128xf32> to vector<128x128xf32>
    %134 = arith.addf %132, %133 : vector<128x128xf32>
    %135 = math.absf %134 : vector<128x128xf32>
    %136 = vector.broadcast %129 : f32 to vector<128x128xf32>
    %137 = arith.mulf %136, %135 : vector<128x128xf32>
    %138 = arith.addf %128, %137 : vector<128x128xf32>
    %c12 = arith.constant 12 : index
    %139 = memref.load %arg8[%c12] : memref<32xf32, #tpu.memory_space<smem>>
    %140 = vector.extract_strided_slice %9 {offsets = [0, 12], sizes = [128, 1], strides = [1, 1]} : vector<128x32xf32> to vector<128x1xf32>
    %141 = vector.extract_strided_slice %12 {offsets = [12, 0], sizes = [1, 128], strides = [1, 1]} : vector<33x128xf32> to vector<1x128xf32>
    %142 = vector.broadcast %140 : vector<128x1xf32> to vector<128x128xf32>
    %143 = vector.broadcast %141 : vector<1x128xf32> to vector<128x128xf32>
    %144 = arith.addf %142, %143 : vector<128x128xf32>
    %145 = math.absf %144 : vector<128x128xf32>
    %146 = vector.broadcast %139 : f32 to vector<128x128xf32>
    %147 = arith.mulf %146, %145 : vector<128x128xf32>
    %148 = arith.addf %138, %147 : vector<128x128xf32>
    %c13 = arith.constant 13 : index
    %149 = memref.load %arg8[%c13] : memref<32xf32, #tpu.memory_space<smem>>
    %150 = vector.extract_strided_slice %9 {offsets = [0, 13], sizes = [128, 1], strides = [1, 1]} : vector<128x32xf32> to vector<128x1xf32>
    %151 = vector.extract_strided_slice %12 {offsets = [13, 0], sizes = [1, 128], strides = [1, 1]} : vector<33x128xf32> to vector<1x128xf32>
    %152 = vector.broadcast %150 : vector<128x1xf32> to vector<128x128xf32>
    %153 = vector.broadcast %151 : vector<1x128xf32> to vector<128x128xf32>
    %154 = arith.addf %152, %153 : vector<128x128xf32>
    %155 = math.absf %154 : vector<128x128xf32>
    %156 = vector.broadcast %149 : f32 to vector<128x128xf32>
    %157 = arith.mulf %156, %155 : vector<128x128xf32>
    %158 = arith.addf %148, %157 : vector<128x128xf32>
    %c14 = arith.constant 14 : index
    %159 = memref.load %arg8[%c14] : memref<32xf32, #tpu.memory_space<smem>>
    %160 = vector.extract_strided_slice %9 {offsets = [0, 14], sizes = [128, 1], strides = [1, 1]} : vector<128x32xf32> to vector<128x1xf32>
    %161 = vector.extract_strided_slice %12 {offsets = [14, 0], sizes = [1, 128], strides = [1, 1]} : vector<33x128xf32> to vector<1x128xf32>
    %162 = vector.broadcast %160 : vector<128x1xf32> to vector<128x128xf32>
    %163 = vector.broadcast %161 : vector<1x128xf32> to vector<128x128xf32>
    %164 = arith.addf %162, %163 : vector<128x128xf32>
    %165 = math.absf %164 : vector<128x128xf32>
    %166 = vector.broadcast %159 : f32 to vector<128x128xf32>
    %167 = arith.mulf %166, %165 : vector<128x128xf32>
    %168 = arith.addf %158, %167 : vector<128x128xf32>
    %c15 = arith.constant 15 : index
    %169 = memref.load %arg8[%c15] : memref<32xf32, #tpu.memory_space<smem>>
    %170 = vector.extract_strided_slice %9 {offsets = [0, 15], sizes = [128, 1], strides = [1, 1]} : vector<128x32xf32> to vector<128x1xf32>
    %171 = vector.extract_strided_slice %12 {offsets = [15, 0], sizes = [1, 128], strides = [1, 1]} : vector<33x128xf32> to vector<1x128xf32>
    %172 = vector.broadcast %170 : vector<128x1xf32> to vector<128x128xf32>
    %173 = vector.broadcast %171 : vector<1x128xf32> to vector<128x128xf32>
    %174 = arith.addf %172, %173 : vector<128x128xf32>
    %175 = math.absf %174 : vector<128x128xf32>
    %176 = vector.broadcast %169 : f32 to vector<128x128xf32>
    %177 = arith.mulf %176, %175 : vector<128x128xf32>
    %178 = arith.addf %168, %177 : vector<128x128xf32>
    %c16 = arith.constant 16 : index
    %179 = memref.load %arg8[%c16] : memref<32xf32, #tpu.memory_space<smem>>
    %180 = vector.extract_strided_slice %9 {offsets = [0, 16], sizes = [128, 1], strides = [1, 1]} : vector<128x32xf32> to vector<128x1xf32>
    %181 = vector.extract_strided_slice %12 {offsets = [16, 0], sizes = [1, 128], strides = [1, 1]} : vector<33x128xf32> to vector<1x128xf32>
    %182 = vector.broadcast %180 : vector<128x1xf32> to vector<128x128xf32>
    %183 = vector.broadcast %181 : vector<1x128xf32> to vector<128x128xf32>
    %184 = arith.addf %182, %183 : vector<128x128xf32>
    %185 = math.absf %184 : vector<128x128xf32>
    %186 = vector.broadcast %179 : f32 to vector<128x128xf32>
    %187 = arith.mulf %186, %185 : vector<128x128xf32>
    %188 = arith.addf %178, %187 : vector<128x128xf32>
    %c17 = arith.constant 17 : index
    %189 = memref.load %arg8[%c17] : memref<32xf32, #tpu.memory_space<smem>>
    %190 = vector.extract_strided_slice %9 {offsets = [0, 17], sizes = [128, 1], strides = [1, 1]} : vector<128x32xf32> to vector<128x1xf32>
    %191 = vector.extract_strided_slice %12 {offsets = [17, 0], sizes = [1, 128], strides = [1, 1]} : vector<33x128xf32> to vector<1x128xf32>
    %192 = vector.broadcast %190 : vector<128x1xf32> to vector<128x128xf32>
    %193 = vector.broadcast %191 : vector<1x128xf32> to vector<128x128xf32>
    %194 = arith.addf %192, %193 : vector<128x128xf32>
    %195 = math.absf %194 : vector<128x128xf32>
    %196 = vector.broadcast %189 : f32 to vector<128x128xf32>
    %197 = arith.mulf %196, %195 : vector<128x128xf32>
    %198 = arith.addf %188, %197 : vector<128x128xf32>
    %c18 = arith.constant 18 : index
    %199 = memref.load %arg8[%c18] : memref<32xf32, #tpu.memory_space<smem>>
    %200 = vector.extract_strided_slice %9 {offsets = [0, 18], sizes = [128, 1], strides = [1, 1]} : vector<128x32xf32> to vector<128x1xf32>
    %201 = vector.extract_strided_slice %12 {offsets = [18, 0], sizes = [1, 128], strides = [1, 1]} : vector<33x128xf32> to vector<1x128xf32>
    %202 = vector.broadcast %200 : vector<128x1xf32> to vector<128x128xf32>
    %203 = vector.broadcast %201 : vector<1x128xf32> to vector<128x128xf32>
    %204 = arith.addf %202, %203 : vector<128x128xf32>
    %205 = math.absf %204 : vector<128x128xf32>
    %206 = vector.broadcast %199 : f32 to vector<128x128xf32>
    %207 = arith.mulf %206, %205 : vector<128x128xf32>
    %208 = arith.addf %198, %207 : vector<128x128xf32>
    %c19 = arith.constant 19 : index
    %209 = memref.load %arg8[%c19] : memref<32xf32, #tpu.memory_space<smem>>
    %210 = vector.extract_strided_slice %9 {offsets = [0, 19], sizes = [128, 1], strides = [1, 1]} : vector<128x32xf32> to vector<128x1xf32>
    %211 = vector.extract_strided_slice %12 {offsets = [19, 0], sizes = [1, 128], strides = [1, 1]} : vector<33x128xf32> to vector<1x128xf32>
    %212 = vector.broadcast %210 : vector<128x1xf32> to vector<128x128xf32>
    %213 = vector.broadcast %211 : vector<1x128xf32> to vector<128x128xf32>
    %214 = arith.addf %212, %213 : vector<128x128xf32>
    %215 = math.absf %214 : vector<128x128xf32>
    %216 = vector.broadcast %209 : f32 to vector<128x128xf32>
    %217 = arith.mulf %216, %215 : vector<128x128xf32>
    %218 = arith.addf %208, %217 : vector<128x128xf32>
    %c20 = arith.constant 20 : index
    %219 = memref.load %arg8[%c20] : memref<32xf32, #tpu.memory_space<smem>>
    %220 = vector.extract_strided_slice %9 {offsets = [0, 20], sizes = [128, 1], strides = [1, 1]} : vector<128x32xf32> to vector<128x1xf32>
    %221 = vector.extract_strided_slice %12 {offsets = [20, 0], sizes = [1, 128], strides = [1, 1]} : vector<33x128xf32> to vector<1x128xf32>
    %222 = vector.broadcast %220 : vector<128x1xf32> to vector<128x128xf32>
    %223 = vector.broadcast %221 : vector<1x128xf32> to vector<128x128xf32>
    %224 = arith.addf %222, %223 : vector<128x128xf32>
    %225 = math.absf %224 : vector<128x128xf32>
    %226 = vector.broadcast %219 : f32 to vector<128x128xf32>
    %227 = arith.mulf %226, %225 : vector<128x128xf32>
    %228 = arith.addf %218, %227 : vector<128x128xf32>
    %c21 = arith.constant 21 : index
    %229 = memref.load %arg8[%c21] : memref<32xf32, #tpu.memory_space<smem>>
    %230 = vector.extract_strided_slice %9 {offsets = [0, 21], sizes = [128, 1], strides = [1, 1]} : vector<128x32xf32> to vector<128x1xf32>
    %231 = vector.extract_strided_slice %12 {offsets = [21, 0], sizes = [1, 128], strides = [1, 1]} : vector<33x128xf32> to vector<1x128xf32>
    %232 = vector.broadcast %230 : vector<128x1xf32> to vector<128x128xf32>
    %233 = vector.broadcast %231 : vector<1x128xf32> to vector<128x128xf32>
    %234 = arith.addf %232, %233 : vector<128x128xf32>
    %235 = math.absf %234 : vector<128x128xf32>
    %236 = vector.broadcast %229 : f32 to vector<128x128xf32>
    %237 = arith.mulf %236, %235 : vector<128x128xf32>
    %238 = arith.addf %228, %237 : vector<128x128xf32>
    %c22 = arith.constant 22 : index
    %239 = memref.load %arg8[%c22] : memref<32xf32, #tpu.memory_space<smem>>
    %240 = vector.extract_strided_slice %9 {offsets = [0, 22], sizes = [128, 1], strides = [1, 1]} : vector<128x32xf32> to vector<128x1xf32>
    %241 = vector.extract_strided_slice %12 {offsets = [22, 0], sizes = [1, 128], strides = [1, 1]} : vector<33x128xf32> to vector<1x128xf32>
    %242 = vector.broadcast %240 : vector<128x1xf32> to vector<128x128xf32>
    %243 = vector.broadcast %241 : vector<1x128xf32> to vector<128x128xf32>
    %244 = arith.addf %242, %243 : vector<128x128xf32>
    %245 = math.absf %244 : vector<128x128xf32>
    %246 = vector.broadcast %239 : f32 to vector<128x128xf32>
    %247 = arith.mulf %246, %245 : vector<128x128xf32>
    %248 = arith.addf %238, %247 : vector<128x128xf32>
    %c23 = arith.constant 23 : index
    %249 = memref.load %arg8[%c23] : memref<32xf32, #tpu.memory_space<smem>>
    %250 = vector.extract_strided_slice %9 {offsets = [0, 23], sizes = [128, 1], strides = [1, 1]} : vector<128x32xf32> to vector<128x1xf32>
    %251 = vector.extract_strided_slice %12 {offsets = [23, 0], sizes = [1, 128], strides = [1, 1]} : vector<33x128xf32> to vector<1x128xf32>
    %252 = vector.broadcast %250 : vector<128x1xf32> to vector<128x128xf32>
    %253 = vector.broadcast %251 : vector<1x128xf32> to vector<128x128xf32>
    %254 = arith.addf %252, %253 : vector<128x128xf32>
    %255 = math.absf %254 : vector<128x128xf32>
    %256 = vector.broadcast %249 : f32 to vector<128x128xf32>
    %257 = arith.mulf %256, %255 : vector<128x128xf32>
    %258 = arith.addf %248, %257 : vector<128x128xf32>
    %c24 = arith.constant 24 : index
    %259 = memref.load %arg8[%c24] : memref<32xf32, #tpu.memory_space<smem>>
    %260 = vector.extract_strided_slice %9 {offsets = [0, 24], sizes = [128, 1], strides = [1, 1]} : vector<128x32xf32> to vector<128x1xf32>
    %261 = vector.extract_strided_slice %12 {offsets = [24, 0], sizes = [1, 128], strides = [1, 1]} : vector<33x128xf32> to vector<1x128xf32>
    %262 = vector.broadcast %260 : vector<128x1xf32> to vector<128x128xf32>
    %263 = vector.broadcast %261 : vector<1x128xf32> to vector<128x128xf32>
    %264 = arith.addf %262, %263 : vector<128x128xf32>
    %265 = math.absf %264 : vector<128x128xf32>
    %266 = vector.broadcast %259 : f32 to vector<128x128xf32>
    %267 = arith.mulf %266, %265 : vector<128x128xf32>
    %268 = arith.addf %258, %267 : vector<128x128xf32>
    %c25 = arith.constant 25 : index
    %269 = memref.load %arg8[%c25] : memref<32xf32, #tpu.memory_space<smem>>
    %270 = vector.extract_strided_slice %9 {offsets = [0, 25], sizes = [128, 1], strides = [1, 1]} : vector<128x32xf32> to vector<128x1xf32>
    %271 = vector.extract_strided_slice %12 {offsets = [25, 0], sizes = [1, 128], strides = [1, 1]} : vector<33x128xf32> to vector<1x128xf32>
    %272 = vector.broadcast %270 : vector<128x1xf32> to vector<128x128xf32>
    %273 = vector.broadcast %271 : vector<1x128xf32> to vector<128x128xf32>
    %274 = arith.addf %272, %273 : vector<128x128xf32>
    %275 = math.absf %274 : vector<128x128xf32>
    %276 = vector.broadcast %269 : f32 to vector<128x128xf32>
    %277 = arith.mulf %276, %275 : vector<128x128xf32>
    %278 = arith.addf %268, %277 : vector<128x128xf32>
    %c26 = arith.constant 26 : index
    %279 = memref.load %arg8[%c26] : memref<32xf32, #tpu.memory_space<smem>>
    %280 = vector.extract_strided_slice %9 {offsets = [0, 26], sizes = [128, 1], strides = [1, 1]} : vector<128x32xf32> to vector<128x1xf32>
    %281 = vector.extract_strided_slice %12 {offsets = [26, 0], sizes = [1, 128], strides = [1, 1]} : vector<33x128xf32> to vector<1x128xf32>
    %282 = vector.broadcast %280 : vector<128x1xf32> to vector<128x128xf32>
    %283 = vector.broadcast %281 : vector<1x128xf32> to vector<128x128xf32>
    %284 = arith.addf %282, %283 : vector<128x128xf32>
    %285 = math.absf %284 : vector<128x128xf32>
    %286 = vector.broadcast %279 : f32 to vector<128x128xf32>
    %287 = arith.mulf %286, %285 : vector<128x128xf32>
    %288 = arith.addf %278, %287 : vector<128x128xf32>
    %c27 = arith.constant 27 : index
    %289 = memref.load %arg8[%c27] : memref<32xf32, #tpu.memory_space<smem>>
    %290 = vector.extract_strided_slice %9 {offsets = [0, 27], sizes = [128, 1], strides = [1, 1]} : vector<128x32xf32> to vector<128x1xf32>
    %291 = vector.extract_strided_slice %12 {offsets = [27, 0], sizes = [1, 128], strides = [1, 1]} : vector<33x128xf32> to vector<1x128xf32>
    %292 = vector.broadcast %290 : vector<128x1xf32> to vector<128x128xf32>
    %293 = vector.broadcast %291 : vector<1x128xf32> to vector<128x128xf32>
    %294 = arith.addf %292, %293 : vector<128x128xf32>
    %295 = math.absf %294 : vector<128x128xf32>
    %296 = vector.broadcast %289 : f32 to vector<128x128xf32>
    %297 = arith.mulf %296, %295 : vector<128x128xf32>
    %298 = arith.addf %288, %297 : vector<128x128xf32>
    %c28 = arith.constant 28 : index
    %299 = memref.load %arg8[%c28] : memref<32xf32, #tpu.memory_space<smem>>
    %300 = vector.extract_strided_slice %9 {offsets = [0, 28], sizes = [128, 1], strides = [1, 1]} : vector<128x32xf32> to vector<128x1xf32>
    %301 = vector.extract_strided_slice %12 {offsets = [28, 0], sizes = [1, 128], strides = [1, 1]} : vector<33x128xf32> to vector<1x128xf32>
    %302 = vector.broadcast %300 : vector<128x1xf32> to vector<128x128xf32>
    %303 = vector.broadcast %301 : vector<1x128xf32> to vector<128x128xf32>
    %304 = arith.addf %302, %303 : vector<128x128xf32>
    %305 = math.absf %304 : vector<128x128xf32>
    %306 = vector.broadcast %299 : f32 to vector<128x128xf32>
    %307 = arith.mulf %306, %305 : vector<128x128xf32>
    %308 = arith.addf %298, %307 : vector<128x128xf32>
    %c29 = arith.constant 29 : index
    %309 = memref.load %arg8[%c29] : memref<32xf32, #tpu.memory_space<smem>>
    %310 = vector.extract_strided_slice %9 {offsets = [0, 29], sizes = [128, 1], strides = [1, 1]} : vector<128x32xf32> to vector<128x1xf32>
    %311 = vector.extract_strided_slice %12 {offsets = [29, 0], sizes = [1, 128], strides = [1, 1]} : vector<33x128xf32> to vector<1x128xf32>
    %312 = vector.broadcast %310 : vector<128x1xf32> to vector<128x128xf32>
    %313 = vector.broadcast %311 : vector<1x128xf32> to vector<128x128xf32>
    %314 = arith.addf %312, %313 : vector<128x128xf32>
    %315 = math.absf %314 : vector<128x128xf32>
    %316 = vector.broadcast %309 : f32 to vector<128x128xf32>
    %317 = arith.mulf %316, %315 : vector<128x128xf32>
    %318 = arith.addf %308, %317 : vector<128x128xf32>
    %c30 = arith.constant 30 : index
    %319 = memref.load %arg8[%c30] : memref<32xf32, #tpu.memory_space<smem>>
    %320 = vector.extract_strided_slice %9 {offsets = [0, 30], sizes = [128, 1], strides = [1, 1]} : vector<128x32xf32> to vector<128x1xf32>
    %321 = vector.extract_strided_slice %12 {offsets = [30, 0], sizes = [1, 128], strides = [1, 1]} : vector<33x128xf32> to vector<1x128xf32>
    %322 = vector.broadcast %320 : vector<128x1xf32> to vector<128x128xf32>
    %323 = vector.broadcast %321 : vector<1x128xf32> to vector<128x128xf32>
    %324 = arith.addf %322, %323 : vector<128x128xf32>
    %325 = math.absf %324 : vector<128x128xf32>
    %326 = vector.broadcast %319 : f32 to vector<128x128xf32>
    %327 = arith.mulf %326, %325 : vector<128x128xf32>
    %328 = arith.addf %318, %327 : vector<128x128xf32>
    %c31 = arith.constant 31 : index
    %329 = memref.load %arg8[%c31] : memref<32xf32, #tpu.memory_space<smem>>
    %330 = vector.extract_strided_slice %9 {offsets = [0, 31], sizes = [128, 1], strides = [1, 1]} : vector<128x32xf32> to vector<128x1xf32>
    %331 = vector.extract_strided_slice %12 {offsets = [31, 0], sizes = [1, 128], strides = [1, 1]} : vector<33x128xf32> to vector<1x128xf32>
    %332 = vector.broadcast %330 : vector<128x1xf32> to vector<128x128xf32>
    %333 = vector.broadcast %331 : vector<1x128xf32> to vector<128x128xf32>
    %334 = arith.addf %332, %333 : vector<128x128xf32>
    %335 = math.absf %334 : vector<128x128xf32>
    %336 = vector.broadcast %329 : f32 to vector<128x128xf32>
    %337 = arith.mulf %336, %335 : vector<128x128xf32>
    %338 = arith.addf %328, %337 : vector<128x128xf32>
    %c0_14 = arith.constant 0 : index
    %c0_15 = arith.constant 0 : index
    %339 = vector.load %arg3[%c0_14, %c0_15] : memref<128x128xbf16, #tpu.memory_space<vmem>>, vector<128x128xbf16>
    %cst_16 = arith.constant 0.000000e+00 : bf16
    %340 = vector.broadcast %cst_16 : bf16 to vector<128x128xbf16>
    %341 = arith.cmpf ogt, %339, %340 : vector<128x128xbf16>
    %cst_17 = arith.constant -1.000000e+30 : f32
    %342 = vector.broadcast %cst_17 : f32 to vector<128x128xf32>
    %343 = arith.select %341, %338, %342 : vector<128x128xi1>, vector<128x128xf32>
    %cst_18 = arith.constant dense<0xFF800000> : vector<128xf32>
    %344 = vector.multi_reduction <maximumf>, %343, %cst_18 [1] : vector<128x128xf32> to vector<128xf32>
    %345 = vector.shape_cast %344 : vector<128xf32> to vector<128x1xf32>
    %346 = vector.broadcast %345 : vector<128x1xf32> to vector<128x128xf32>
    %347 = arith.subf %343, %346 : vector<128x128xf32>
    %348 = math.exp %347 : vector<128x128xf32>
    %cst_19 = arith.constant 0.000000e+00 : f32
    %349 = vector.broadcast %cst_19 : f32 to vector<128x128xf32>
    %350 = arith.select %341, %348, %349 : vector<128x128xi1>, vector<128x128xf32>
    %cst_20 = arith.constant dense<0.000000e+00> : vector<128xf32>
    %351 = vector.multi_reduction <add>, %350, %cst_20 [1] : vector<128x128xf32> to vector<128xf32>
    %352 = vector.shape_cast %351 : vector<128xf32> to vector<128x1xf32>
    %cst_21 = arith.constant 1.000000e-30 : f32
    %353 = vector.broadcast %cst_21 : f32 to vector<128x1xf32>
    %354 = arith.maximumf %352, %353 : vector<128x1xf32>
    %355 = tpu.reciprocal %354 {approx = true} : vector<128x1xf32> -> vector<128x1xf32>
    %356 = vector.broadcast %355 : vector<128x1xf32> to vector<128x128xf32>
    %357 = arith.mulf %350, %356 : vector<128x128xf32>
    %358 = arith.truncf %357 : vector<128x128xf32> to vector<128x128xbf16>
    %359 = arith.truncf %8 : vector<128x32xf32> to vector<128x32xbf16>
    %cst_22 = arith.constant dense<0.000000e+00> : vector<128x32xf32>
    %360 = tpu.matmul %358, %359, %cst_22 {dimension_numbers = #tpu.dot_dimension_numbers<[1], [0], [0], [1], [0, 0, 1, 1], [], []>} : vector<128x128xbf16>, vector<128x32xbf16>, vector<128x32xf32> -> vector<128x32xf32>
    %cst_23 = arith.constant 2.000000e-01 : f32
    %361 = vector.broadcast %cst_23 : f32 to vector<128x32xf32>
    %362 = arith.mulf %361, %360 : vector<128x32xf32>
    %363 = arith.maximumf %360, %362 : vector<128x32xf32>
    %c0_24 = arith.constant 0 : index
    %c0_25 = arith.constant 0 : index
    %364 = vector.load %arg6[%c0_24, %c0_25] : memref<96x128xbf16, #tpu.memory_space<vmem>>, vector<64x128xbf16>
    %cst_26 = arith.constant dense<0.000000e+00> : vector<128x128xf32>
    %365 = tpu.matmul %0, %364, %cst_26 {dimension_numbers = #tpu.dot_dimension_numbers<[1], [0], [0], [1], [0, 0, 1, 1], [], []>} : vector<128x64xbf16>, vector<64x128xbf16>, vector<128x128xf32> -> vector<128x128xf32>
    %366 = arith.truncf %363 : vector<128x32xf32> to vector<128x32xbf16>
    %c64 = arith.constant 64 : index
    %c0_27 = arith.constant 0 : index
    %367 = vector.load %arg6[%c64, %c0_27] : memref<96x128xbf16, #tpu.memory_space<vmem>>, vector<32x128xbf16>
    %cst_28 = arith.constant dense<0.000000e+00> : vector<128x128xf32>
    %368 = tpu.matmul %366, %367, %cst_28 {dimension_numbers = #tpu.dot_dimension_numbers<[1], [0], [0], [1], [0, 0, 1, 1], [], []>} : vector<128x32xbf16>, vector<32x128xbf16>, vector<128x128xf32> -> vector<128x128xf32>
    %369 = arith.addf %365, %368 : vector<128x128xf32>
    %370 = vector.broadcast %3 : vector<1x128xf32> to vector<128x128xf32>
    %371 = arith.addf %369, %370 : vector<128x128xf32>
    %c0_29 = arith.constant 0 : index
    %c0_30 = arith.constant 0 : index
    %372 = vector.load %arg9[%c0_29, %c0_30] : memref<128x128xf32, #tpu.memory_space<vmem>>, vector<128x128xf32>
    tpu.vector_store %arg9[%c0_29, %c0_30], %371 {strides = array<i32>} : memref<128x128xf32, #tpu.memory_space<vmem>>, vector<128x128xf32>,
    return
  }
  func.func @transform_0(%arg0: i32) -> (i32, i32) {
    %c0_i32 = arith.constant 0 : i32
    %c0_i32_0 = arith.constant 0 : i32
    return %arg0, %c0_i32 : i32, i32
  }
  func.func @transform_1(%arg0: i32) -> (i32, i32) {
    %c0_i32 = arith.constant 0 : i32
    %c0_i32_0 = arith.constant 0 : i32
    return %c0_i32, %arg0 : i32, i32
  }
  func.func @transform_2(%arg0: i32) -> (i32, i32) {
    %c0_i32 = arith.constant 0 : i32
    %c0_i32_0 = arith.constant 0 : i32
    return %arg0, %c0_i32 : i32, i32
  }
  func.func @transform_3(%arg0: i32) -> (i32, i32) {
    %c0_i32 = arith.constant 0 : i32
    %c0_i32_0 = arith.constant 0 : i32
    %c0_i32_1 = arith.constant 0 : i32
    return %c0_i32, %c0_i32_0 : i32, i32
  }
  func.func @transform_4(%arg0: i32) -> (i32, i32) {
    %c0_i32 = arith.constant 0 : i32
    %c0_i32_0 = arith.constant 0 : i32
    %c0_i32_1 = arith.constant 0 : i32
    return %c0_i32, %c0_i32_0 : i32, i32
  }
  func.func @transform_5(%arg0: i32) -> (i32, i32) {
    %c0_i32 = arith.constant 0 : i32
    %c0_i32_0 = arith.constant 0 : i32
    %c0_i32_1 = arith.constant 0 : i32
    return %c0_i32, %c0_i32_0 : i32, i32
  }
  func.func @transform_6(%arg0: i32) -> (i32, i32) {
    %c0_i32 = arith.constant 0 : i32
    %c0_i32_0 = arith.constant 0 : i32
    %c0_i32_1 = arith.constant 0 : i32
    return %c0_i32, %c0_i32_0 : i32, i32
  }
  func.func @transform_7(%arg0: i32) -> i32 {
    %c0_i32 = arith.constant 0 : i32
    %c0_i32_0 = arith.constant 0 : i32
    return %c0_i32 : i32
  }
  func.func @transform_8(%arg0: i32) -> (i32, i32) {
    %c0_i32 = arith.constant 0 : i32
    %c0_i32_0 = arith.constant 0 : i32
    return %arg0, %c0_i32 : i32, i32
  }
}

</mosaic_0001>

<llo_original>
// kernel: tpu_custom_call.1
$region0: #{tpu_custom_call.1}
  #allocation0 [shape = 'u32[]', space=smem, size = 0x4, offset = 0x4, fixed_abs, tag = 'smem constant byte address 0x4 - core index']
  #allocation1 [shape = 'u32[144,128]{1,0:T(1,128)}', space=vmem, size = 0x12000, scoped, tag = 'internal scratch']
  %s0 = inlined_call_operand.vmem [shape: bf16[512,64], index: 0, kind: input, shape index: {}]
  %s1 = inlined_call_operand.vmem [shape: bf16[64,512], index: 1, kind: input, shape index: {}]
  %s2 = inlined_call_operand.vmem [shape: bf16[512,128], index: 2, kind: input, shape index: {}]
  %s3 = inlined_call_operand.hbm [shape: bf16[64,65], index: 3, kind: input, shape index: {}]
  %s4 = inlined_call_operand.hbm [shape: bf16[33,64], index: 4, kind: input, shape index: {}]
  %s5 = inlined_call_operand.hbm [shape: bf16[96,128], index: 5, kind: input, shape index: {}]
  %s6 = inlined_call_operand.vmem [shape: f32[8,128], index: 6, kind: input, shape index: {}]
  %s7 = inlined_call_operand.vmem [shape: f32[32], index: 7, kind: input, shape index: {}]
  %s8 = inlined_call_operand.hbm [shape: f32[512,128], index: 8, kind: output, shape index: {}]
  %s9 = sld [smem:[#allocation0]]
  $region122: #{tpu_custom_call.1} parent=0
    _
  %s11 = ssub.s32 1, %s9
  %s12 = scalar_select 0, %s11, %s9
  $region1: #{tpu_custom_call.1} parent=0
    #allocation2 [shape = 'u8[32768]{0}', space=vmem, size = 0x8000, scoped, tag = 'input window, operand 1']
    #allocation3 [shape = 'u8[16384]{0}', space=vmem, size = 0x4000, scoped, tag = 'input window, operand 3, single buffered']
    #allocation4 [shape = 's32[2]{0}', space=sflag, size = 0x8, scoped, tag = 'scoped memory for tpu_custom_call.1']
    #allocation5 [shape = 's32[2]{0}', space=sflag, size = 0x8, scoped, tag = 'scoped memory for tpu_custom_call.1']
    #allocation6 [shape = 's32[2]{0}', space=sflag, size = 0x8, scoped, tag = 'scoped memory for tpu_custom_call.1']
    #allocation7 [shape = 'u8[10240]{0}', space=vmem, size = 0x2800, scoped, tag = 'input window, operand 4, single buffered']
    #allocation8 [shape = 's32[1]{0}', space=sflag, size = 0x4, scoped, tag = 'scoped memory for tpu_custom_call.1']
    #allocation9 [shape = 'u8[24576]{0}', space=vmem, size = 0x6000, scoped, tag = 'input window, operand 5, single buffered']
    #allocation10 [shape = 'u8[512]{0}', space=smem, size = 0x200, scoped, tag = 'input window, operand 7, single buffered']
    #allocation11 [shape = 'u8[131072]{0}', space=vmem, size = 0x20000, scoped, tag = 'output window, operand 0']
    %13 = vsyncpa [#allocation4], 0
    %14 = vsyncpa [#allocation8], 0
    %15 = vsyncpa [#allocation6], 0
    %16 = vsyncpa [#allocation5], 0
    %s17 = scalar_lea.sflag [#allocation5], 1
    %18 = vsyncpa %s17, 0
    loop: start=0, step=1, limit=6
    $region2: #{tpu_custom_call.1} parent=1 // loop_pre_header
      _
    $region3: #{tpu_custom_call.1} parent=1 // loop_header
      %s20 = sphi 0, %s24
      %p21 = scmp.ge.s32.totalorder %s20, 6
      %s30 = sphi 0, %s32
      %s33 = sphi 0, %s30
      %s34 = sphi 0, %s33
      %s50 = sphi 0, %s34
      %s56 = sphi 0, %s58
      %s59 = sphi 0, %s56
      %s60 = sphi 0, %s59
      %s76 = sphi 0, %s60
      %s82 = sphi 0, %s84
      %s85 = sphi 0, %s82
      %s86 = sphi 0, %s85
      %s102 = sphi 0, %s86
      %s106 = sphi 0, %s106
      %s108 = sphi 0, %s106
      %s109 = sphi 0, %s108
      %s123 = sphi 0, %s109
      %s127 = sphi 0, %s127
      %s129 = sphi 0, %s127
      %s130 = sphi 0, %s129
      %s144 = sphi 0, %s130
      %s148 = sphi 0, %s148
      %s150 = sphi 0, %s148
      %s151 = sphi 0, %s150
      %s165 = sphi 0, %s151
      %s169 = sphi 0, %s169
      %s171 = sphi 0, %s169
      %s172 = sphi 0, %s171
      %s186 = sphi 0, %s172
      %s190 = sphi 0, %s190
      %s192 = sphi 0, %s190
      %s193 = sphi 0, %s192
      %s207 = sphi 0, %s193
      %s213 = sphi 0, %s215
      %s216 = sphi 0, %s213
      %s217 = sphi 0, %s216
      %s233 = sphi 0, %s217
    $region4: #{tpu_custom_call.1} parent=1 // loop_header_branch
      %23 = sbr.rel (%p21) target = $region8
    $region5: #{tpu_custom_call.1} parent=1 // loop_body
      %s25 = ssub.s32 %s20, 1
      %s26 = ssub.s32 %s20, 2
      %s27 = sadd.s32 %s20, 1
      %s28 = ssub.s32 %s20, %s27
      %p29 = scmp.eq.s32.totalorder %s28, 0
      %s31 = sadd.s32 %s30, 1
      %s32 = scalar_select %p29, %s30, %s31
      %p35 = pneg %p29
      %p36 = scmp.eq.s32.totalorder %s20, 3
      %p37 = por %p35, %p36
      %p38 = scmp.ne.s32.totalorder %s30, %s33
      %p39 = scmp.eq.s32.totalorder %s20, 0
      %p40 = por %p38, %p39
      %p41 = scmp.ne.s32.totalorder %s30, %s33
      %p42 = scmp.eq.s32.totalorder %s25, 3
      %p43 = por %p41, %p42
      %p44 = scmp.ne.s32.totalorder %s33, %s34
      %p45 = scmp.eq.s32.totalorder %s25, 0
      %p46 = por %p44, %p45
      %p47 = scmp.ne.s32.totalorder %s33, %s34
      %p48 = scmp.eq.s32.totalorder %s26, 3
      %p49 = por %p47, %p48
      %p51 = scmp.ne.s32.totalorder %s34, %s50
      %p52 = scmp.eq.s32.totalorder %s26, 0
      %p53 = por %p51, %p52
      %s54 = ssub.s32 %s20, %s27
      %p55 = scmp.eq.s32.totalorder %s54, 0
      %s57 = sadd.s32 %s56, 1
      %s58 = scalar_select %p55, %s56, %s57
      %p61 = pneg %p55
      %p62 = scmp.eq.s32.totalorder %s20, 3
      %p63 = por %p61, %p62
      %p64 = scmp.ne.s32.totalorder %s56, %s59
      %p65 = scmp.eq.s32.totalorder %s20, 0
      %p66 = por %p64, %p65
      %p67 = scmp.ne.s32.totalorder %s56, %s59
      %p68 = scmp.eq.s32.totalorder %s25, 3
      %p69 = por %p67, %p68
      %p70 = scmp.ne.s32.totalorder %s59, %s60
      %p71 = scmp.eq.s32.totalorder %s25, 0
      %p72 = por %p70, %p71
      %p73 = scmp.ne.s32.totalorder %s59, %s60
      %p74 = scmp.eq.s32.totalorder %s26, 3
      %p75 = por %p73, %p74
      %p77 = scmp.ne.s32.totalorder %s60, %s76
      %p78 = scmp.eq.s32.totalorder %s26, 0
      %p79 = por %p77, %p78
      %s80 = ssub.s32 %s20, %s27
      %p81 = scmp.eq.s32.totalorder %s80, 0
      %s83 = sadd.s32 %s82, 1
      %s84 = scalar_select %p81, %s82, %s83
      %p87 = pneg %p81
      %p88 = scmp.eq.s32.totalorder %s20, 3
      %p89 = por %p87, %p88
      %p90 = scmp.ne.s32.totalorder %s82, %s85
      %p91 = scmp.eq.s32.totalorder %s20, 0
      %p92 = por %p90, %p91
      %p93 = scmp.ne.s32.totalorder %s82, %s85
      %p94 = scmp.eq.s32.totalorder %s25, 3
      %p95 = por %p93, %p94
      %p96 = scmp.ne.s32.totalorder %s85, %s86
      %p97 = scmp.eq.s32.totalorder %s25, 0
      %p98 = por %p96, %p97
      %p99 = scmp.ne.s32.totalorder %s85, %s86
      %p100 = scmp.eq.s32.totalorder %s26, 3
      %p101 = por %p99, %p100
      %p103 = scmp.ne.s32.totalorder %s86, %s102
      %p104 = scmp.eq.s32.totalorder %s26, 0
      %p105 = por %p103, %p104
      %s107 = sadd.s32 %s106, 1
      %p110 = scmp.eq.s32.totalorder %s20, 3
      %p111 = scmp.ne.s32.totalorder %s106, %s108
      %p112 = scmp.eq.s32.totalorder %s20, 0
      %p113 = por %p111, %p112
      %p114 = scmp.ne.s32.totalorder %s106, %s108
      %p115 = scmp.eq.s32.totalorder %s25, 3
      %p116 = por %p114, %p115
      %p117 = scmp.ne.s32.totalorder %s108, %s109
      %p118 = scmp.eq.s32.totalorder %s25, 0
      %p119 = por %p117, %p118
      %p120 = scmp.ne.s32.totalorder %s108, %s109
      %p121 = scmp.eq.s32.totalorder %s26, 3
      %p122 = por %p120, %p121
      %p124 = scmp.ne.s32.totalorder %s109, %s123
      %p125 = scmp.eq.s32.totalorder %s26, 0
      %p126 = por %p124, %p125
      %s128 = sadd.s32 %s127, 1
      %p131 = scmp.eq.s32.totalorder %s20, 3
      %p132 = scmp.ne.s32.totalorder %s127, %s129
      %p133 = scmp.eq.s32.totalorder %s20, 0
      %p134 = por %p132, %p133
      %p135 = scmp.ne.s32.totalorder %s127, %s129
      %p136 = scmp.eq.s32.totalorder %s25, 3
      %p137 = por %p135, %p136
      %p138 = scmp.ne.s32.totalorder %s129, %s130
      %p139 = scmp.eq.s32.totalorder %s25, 0
      %p140 = por %p138, %p139
      %p141 = scmp.ne.s32.totalorder %s129, %s130
      %p142 = scmp.eq.s32.totalorder %s26, 3
      %p143 = por %p141, %p142
      %p145 = scmp.ne.s32.totalorder %s130, %s144
      %p146 = scmp.eq.s32.totalorder %s26, 0
      %p147 = por %p145, %p146
      %s149 = sadd.s32 %s148, 1
      %p152 = scmp.eq.s32.totalorder %s20, 3
      %p153 = scmp.ne.s32.totalorder %s148, %s150
      %p154 = scmp.eq.s32.totalorder %s20, 0
      %p155 = por %p153, %p154
      %p156 = scmp.ne.s32.totalorder %s148, %s150
      %p157 = scmp.eq.s32.totalorder %s25, 3
      %p158 = por %p156, %p157
      %p159 = scmp.ne.s32.totalorder %s150, %s151
      %p160 = scmp.eq.s32.totalorder %s25, 0
      %p161 = por %p159, %p160
      %p162 = scmp.ne.s32.totalorder %s150, %s151
      %p163 = scmp.eq.s32.totalorder %s26, 3
      %p164 = por %p162, %p163
      %p166 = scmp.ne.s32.totalorder %s151, %s165
      %p167 = scmp.eq.s32.totalorder %s26, 0
      %p168 = por %p166, %p167
      %s170 = sadd.s32 %s169, 1
      %p173 = scmp.eq.s32.totalorder %s20, 3
      %p174 = scmp.ne.s32.totalorder %s169, %s171
      %p175 = scmp.eq.s32.totalorder %s20, 0
      %p176 = por %p174, %p175
      %p177 = scmp.ne.s32.totalorder %s169, %s171
      %p178 = scmp.eq.s32.totalorder %s25, 3
      %p179 = por %p177, %p178
      %p180 = scmp.ne.s32.totalorder %s171, %s172
      %p181 = scmp.eq.s32.totalorder %s25, 0
      %p182 = por %p180, %p181
      %p183 = scmp.ne.s32.totalorder %s171, %s172
      %p184 = scmp.eq.s32.totalorder %s26, 3
      %p185 = por %p183, %p184
      %p187 = scmp.ne.s32.totalorder %s172, %s186
      %p188 = scmp.eq.s32.totalorder %s26, 0
      %p189 = por %p187, %p188
      %s191 = sadd.s32 %s190, 1
      %p194 = scmp.eq.s32.totalorder %s20, 3
      %p195 = scmp.ne.s32.totalorder %s190, %s192
      %p196 = scmp.eq.s32.totalorder %s20, 0
      %p197 = por %p195, %p196
      %p198 = scmp.ne.s32.totalorder %s190, %s192
      %p199 = scmp.eq.s32.totalorder %s25, 3
      %p200 = por %p198, %p199
      %p201 = scmp.ne.s32.totalorder %s192, %s193
      %p202 = scmp.eq.s32.totalorder %s25, 0
      %p203 = por %p201, %p202
      %p204 = scmp.ne.s32.totalorder %s192, %s193
      %p205 = scmp.eq.s32.totalorder %s26, 3
      %p206 = por %p204, %p205
      %p208 = scmp.ne.s32.totalorder %s193, %s207
      %p209 = scmp.eq.s32.totalorder %s26, 0
      %p210 = por %p208, %p209
      %s211 = ssub.s32 %s20, %s27
      %p212 = scmp.eq.s32.totalorder %s211, 0
      %s214 = sadd.s32 %s213, 1
      %s215 = scalar_select %p212, %s213, %s214
      %p218 = pneg %p212
      %p219 = scmp.eq.s32.totalorder %s20, 3
      %p220 = por %p218, %p219
      %p221 = scmp.ne.s32.totalorder %s213, %s216
      %p222 = scmp.eq.s32.totalorder %s20, 0
      %p223 = por %p221, %p222
      %p224 = scmp.ne.s32.totalorder %s213, %s216
      %p225 = scmp.eq.s32.totalorder %s25, 3
      %p226 = por %p224, %p225
      %p227 = scmp.ne.s32.totalorder %s216, %s217
      %p228 = scmp.eq.s32.totalorder %s25, 0
      %p229 = por %p227, %p228
      %p230 = scmp.ne.s32.totalorder %s216, %s217
      %p231 = scmp.eq.s32.totalorder %s26, 3
      %p232 = por %p230, %p231
      %p234 = scmp.ne.s32.totalorder %s217, %s233
      %p235 = scmp.eq.s32.totalorder %s26, 0
      %p236 = por %p234, %p235
      %p237 = scmp.le.s32.totalorder 1, %s20
      %p238 = scmp.lt.s32.totalorder %s20, 5
      %p239 = pnand %p237, %p238
      %p240 = pneg %p239
      // Predicated region
      $region9: #{tpu_custom_call.1} parent=5 // pred_check
        _
      $region10: #{tpu_custom_call.1} parent=5 // pred_check_branch
        %242 = sbr.rel (%p239) target = $region12
      $region11: #{tpu_custom_call.1} parent=5 // pred_region
        %s243 = ssub.s32 %s20, 1
        // Predicated region
        $region13: #{tpu_custom_call.1} parent=11 // pred_check
          %p244 = pneg %p119
        $region14: #{tpu_custom_call.1} parent=11 // pred_check_branch
          %246 = sbr.rel (%p244) target = $region16
        $region15: #{tpu_custom_call.1} parent=11 // pred_region
          %s248 = ssub.s32 512, 512
          %249 = vsyncadd [#allocation4], %s248
          %s250 = sshll.u32 [#allocation3], 4
          %s251 = int_to_ptr.vmem [resolvable:$true] %s250
          %256 = dma.hbm_to_vmem [thread:$0]  %s3, 512, %s251, [#allocation4], 64, 64, 4
        $region16: #{tpu_custom_call.1} parent=11 // pred_fallthru
          _
        // Predicated region
        $region17: #{tpu_custom_call.1} parent=11 // pred_check
          %p257 = pneg %p140
        $region18: #{tpu_custom_call.1} parent=11 // pred_check_branch
          %259 = sbr.rel (%p257) target = $region20
        $region19: #{tpu_custom_call.1} parent=11 // pred_region
          %s261 = ssub.s32 320, 320
          %262 = vsyncadd [#allocation8], %s261
          %s263 = sshll.u32 [#allocation7], 4
          %s264 = int_to_ptr.vmem [resolvable:$true] %s263
          %269 = dma.hbm_to_vmem [thread:$0]  %s4, 320, %s264, [#allocation8], 64, 64, 4
        $region20: #{tpu_custom_call.1} parent=11 // pred_fallthru
          _
        // Predicated region
        $region21: #{tpu_custom_call.1} parent=11 // pred_check
          %p270 = pneg %p161
        $region22: #{tpu_custom_call.1} parent=11 // pred_check_branch
          %272 = sbr.rel (%p270) target = $region24
        $region23: #{tpu_custom_call.1} parent=11 // pred_region
          %s274 = ssub.s32 768, 768
          %275 = vsyncadd [#allocation8], %s274
          %s276 = sshll.u32 [#allocation9], 4
          %s277 = int_to_ptr.vmem [resolvable:$true] %s276
          %282 = dma.hbm_to_vmem [thread:$0]  %s5, 768, %s277, [#allocation8], 64, 64, 4
        $region24: #{tpu_custom_call.1} parent=11 // pred_fallthru
          _
        // Predicated region
        $region25: #{tpu_custom_call.1} parent=11 // pred_check
          %p283 = pneg %p182
        $region26: #{tpu_custom_call.1} parent=11 // pred_check_branch
          %285 = sbr.rel (%p283) target = $region28
        $region27: #{tpu_custom_call.1} parent=11 // pred_region
          _
        $region28: #{tpu_custom_call.1} parent=11 // pred_fallthru
          _
        // Predicated region
        $region29: #{tpu_custom_call.1} parent=11 // pred_check
          %p286 = pneg %p203
        $region30: #{tpu_custom_call.1} parent=11 // pred_check_branch
          %288 = sbr.rel (%p286) target = $region32
        $region31: #{tpu_custom_call.1} parent=11 // pred_region
          %s290 = ssub.s32 16, 16
          %291 = vsyncadd [#allocation6], %s290
          %s293 = sshll.u32 %s7, 4
          %s294 = int_to_ptr.vmem [resolvable:$true] %s293
          %296 = dma.vmem_to_smem %s294, 16, [#allocation10], [#allocation6]
        $region32: #{tpu_custom_call.1} parent=11 // pred_fallthru
          _
      $region12: #{tpu_custom_call.1} parent=5 // pred_fallthru
        _
      %p297 = scmp.lt.s32.totalorder %s20, 4
      // Predicated region
      $region33: #{tpu_custom_call.1} parent=5 // pred_check
        %p298 = pneg %p297
      $region34: #{tpu_custom_call.1} parent=5 // pred_check_branch
        %300 = sbr.rel (%p298) target = $region36
      $region35: #{tpu_custom_call.1} parent=5 // pred_region
        // Predicated region
        $region37: #{tpu_custom_call.1} parent=35 // pred_check
          %p301 = pneg %p40
        $region38: #{tpu_custom_call.1} parent=35 // pred_check_branch
          %303 = sbr.rel (%p301) target = $region40
        $region39: #{tpu_custom_call.1} parent=35 // pred_region
          %s304 = smul.u32 16, %s20
          %p305 = scmp.lt.s32.totalorder %s304, 63
          %s306 = scalar_select %p305, %s304, 63
          %s307 = smul.addr %s306, 4
          %s308 = scalar_lea.vmem %s0, %s307
          %s309 = smul.u32 16, %s20
        $region40: #{tpu_custom_call.1} parent=35 // pred_fallthru
          _
        // Predicated region
        $region41: #{tpu_custom_call.1} parent=35 // pred_check
          %p310 = pneg %p66
        $region42: #{tpu_custom_call.1} parent=35 // pred_check_branch
          %312 = sbr.rel (%p310) target = $region44
        $region43: #{tpu_custom_call.1} parent=35 // pred_region
          %s313 = sand.u32 %s56, 1
          %s314 = sand.u32 %s56, 1
          %s315 = smul.addr %s314, 32
          %s316 = scalar_lea.vmem [#allocation2], %s315
          %s317 = smul.addr %s20, 4
          %s318 = scalar_lea.vmem %s1, %s317
          // Predicated region
          $region45: #{tpu_custom_call.1} parent=43 // pred_check
            _
          $region46: #{tpu_custom_call.1} parent=43 // pred_check_branch
            %320 = sbr.rel (0) target = $region48
          $region47: #{tpu_custom_call.1} parent=43 // pred_region
            // Predicated region
            $region49: #{tpu_custom_call.1} parent=47 // pred_check
              _
            $region50: #{tpu_custom_call.1} parent=47 // pred_check_branch
              %322 = sbr.rel target = $region52
            $region51: #{tpu_custom_call.1} parent=47 // pred_region
              // Predicated region
              $region64: #{tpu_custom_call.1} parent=51 // pred_check
                _
              $region65: #{tpu_custom_call.1} parent=51 // pred_check_branch
                %352 = sbr.rel (0) target = $region67
              $region66: #{tpu_custom_call.1} parent=51 // pred_region
                loop: start=0, step=1, limit=1
                $region68: #{tpu_custom_call.1} parent=66 // loop_pre_header
                  _
                $region69: #{tpu_custom_call.1} parent=66 // loop_header
                  %s354 = sphi 0, %s358
                  %p355 = scmp.ge.s32.totalorder %s354, 1
                  %s359 = sphi %s318, %s318
                  %s360 = sphi %s316, %s316
                $region70: #{tpu_custom_call.1} parent=66 // loop_header_branch
                  %357 = sbr.rel (%p355) target = $region74
                $region71: #{tpu_custom_call.1} parent=66 // loop_body
                  _
                $region72: #{tpu_custom_call.1} parent=66 // loop_footer
                  %s358 = sadd.s32 1, %s354
                $region73: #{tpu_custom_call.1} parent=66 // loop_footer_branch
                  %353 = sbr.rel target = $region69
                $region74: #{tpu_custom_call.1} parent=66 // loop_exit
                  _
                %s362 = ssub.s32 16, 1
                loop: start=0, step=1, limit=1
                $region75: #{tpu_custom_call.1} parent=66 // loop_pre_header
                  _
                $region76: #{tpu_custom_call.1} parent=66 // loop_header
                  %s364 = sphi 0, %s368
                  %p365 = scmp.ge.s32.totalorder %s364, 1
                  %s369 = sphi %s318, %s318
                  %s370 = sphi %s316, %s316
                $region77: #{tpu_custom_call.1} parent=66 // loop_header_branch
                  %367 = sbr.rel (%p365) target = $region81
                $region78: #{tpu_custom_call.1} parent=66 // loop_body
                  %v371 = vld [vmem:[%s369] sm:%s362]
                  %372 = vst [vmem:[%s370] sm:%s362] %v371
                  %v373 = vld [vmem:[%s369 + $0x10] sm:%s362]
                  %374 = vst [vmem:[%s370 + $0x4] sm:%s362] %v373
                  %v375 = vld [vmem:[%s369 + $0x20] sm:%s362]
                  %376 = vst [vmem:[%s370 + $0x8] sm:%s362] %v375
                  %v377 = vld [vmem:[%s369 + $0x30] sm:%s362]
                  %378 = vst [vmem:[%s370 + $0xc] sm:%s362] %v377
                  %v379 = vld [vmem:[%s369 + $0x40] sm:%s362]
                  %380 = vst [vmem:[%s370 + $0x10] sm:%s362] %v379
                  %v381 = vld [vmem:[%s369 + $0x50] sm:%s362]
                  %382 = vst [vmem:[%s370 + $0x14] sm:%s362] %v381
                  %v383 = vld [vmem:[%s369 + $0x60] sm:%s362]
                  %384 = vst [vmem:[%s370 + $0x18] sm:%s362] %v383
                  %v385 = vld [vmem:[%s369 + $0x70] sm:%s362]
                  %386 = vst [vmem:[%s370 + $0x1c] sm:%s362] %v385
                $region79: #{tpu_custom_call.1} parent=66 // loop_footer
                  %s368 = sadd.s32 1, %s364
                $region80: #{tpu_custom_call.1} parent=66 // loop_footer_branch
                  %363 = sbr.rel target = $region76
                $region81: #{tpu_custom_call.1} parent=66 // loop_exit
                  _
              $region67: #{tpu_custom_call.1} parent=51 // pred_fallthru
                _
            $region52: #{tpu_custom_call.1} parent=47 // pred_fallthru
              _
            // Predicated region
            $region53: #{tpu_custom_call.1} parent=47 // pred_check
              _
            $region54: #{tpu_custom_call.1} parent=47 // pred_check_branch
              %324 = sbr.rel (0) target = $region56
            $region55: #{tpu_custom_call.1} parent=47 // pred_region
              %s326 = ssub.s32 16, 1
              loop: start=0, step=1, limit=1
              $region57: #{tpu_custom_call.1} parent=55 // loop_pre_header
                _
              $region58: #{tpu_custom_call.1} parent=55 // loop_header
                %s328 = sphi 0, %s332
                %p329 = scmp.ge.s32.totalorder %s328, 1
                %s333 = sphi %s318, %s318
                %s334 = sphi %s316, %s316
              $region59: #{tpu_custom_call.1} parent=55 // loop_header_branch
                %331 = sbr.rel (%p329) target = $region63
              $region60: #{tpu_custom_call.1} parent=55 // loop_body
                %v335 = vld [vmem:[%s333] sm:%s326]
                %336 = vst [vmem:[%s334] sm:%s326] %v335
                %v337 = vld [vmem:[%s333 + $0x10] sm:%s326]
                %338 = vst [vmem:[%s334 + $0x4] sm:%s326] %v337
                %v339 = vld [vmem:[%s333 + $0x20] sm:%s326]
                %340 = vst [vmem:[%s334 + $0x8] sm:%s326] %v339
                %v341 = vld [vmem:[%s333 + $0x30] sm:%s326]
                %342 = vst [vmem:[%s334 + $0xc] sm:%s326] %v341
                %v343 = vld [vmem:[%s333 + $0x40] sm:%s326]
                %344 = vst [vmem:[%s334 + $0x10] sm:%s326] %v343
                %v345 = vld [vmem:[%s333 + $0x50] sm:%s326]
                %346 = vst [vmem:[%s334 + $0x14] sm:%s326] %v345
                %v347 = vld [vmem:[%s333 + $0x60] sm:%s326]
                %348 = vst [vmem:[%s334 + $0x18] sm:%s326] %v347
                %v349 = vld [vmem:[%s333 + $0x70] sm:%s326]
                %350 = vst [vmem:[%s334 + $0x1c] sm:%s326] %v349
              $region61: #{tpu_custom_call.1} parent=55 // loop_footer
                %s332 = sadd.s32 1, %s328
              $region62: #{tpu_custom_call.1} parent=55 // loop_footer_branch
                %327 = sbr.rel target = $region58
              $region63: #{tpu_custom_call.1} parent=55 // loop_exit
                _
            $region56: #{tpu_custom_call.1} parent=47 // pred_fallthru
              _
          $region48: #{tpu_custom_call.1} parent=43 // pred_fallthru
            _
          %387 = vnop
        $region44: #{tpu_custom_call.1} parent=35 // pred_fallthru
          _
        // Predicated region
        $region82: #{tpu_custom_call.1} parent=35 // pred_check
          %p388 = pneg %p92
        $region83: #{tpu_custom_call.1} parent=35 // pred_check_branch
          %390 = sbr.rel (%p388) target = $region85
        $region84: #{tpu_custom_call.1} parent=35 // pred_region
          %s391 = smul.u32 16, %s20
          %p392 = scmp.lt.s32.totalorder %s391, 63
          %s393 = scalar_select %p392, %s391, 63
          %s394 = smul.addr %s393, 4
          %s395 = scalar_lea.vmem %s2, %s394
          %s396 = smul.u32 16, %s20
        $region85: #{tpu_custom_call.1} parent=35 // pred_fallthru
          _
      $region36: #{tpu_custom_call.1} parent=5 // pred_fallthru
        _
      %p397 = scmp.le.s32.totalorder 1, %s20
      %p398 = scmp.lt.s32.totalorder %s20, 5
      %p399 = pnand %p397, %p398
      %p400 = pneg %p399
      // Predicated region
      $region86: #{tpu_custom_call.1} parent=5 // pred_check
        _
      $region87: #{tpu_custom_call.1} parent=5 // pred_check_branch
        %402 = sbr.rel (%p399) target = $region89
      $region88: #{tpu_custom_call.1} parent=5 // pred_region
        %s403 = ssub.s32 %s20, 1
        %s404 = sand.u32 %s59, 1
        %s405 = sand.u32 %s59, 1
        %s406 = smul.addr %s405, 32
        %s407 = scalar_lea.vmem [#allocation2], %s406
        // Predicated region
        $region90: #{tpu_custom_call.1} parent=88 // pred_check
          %p408 = pneg %p72
        $region91: #{tpu_custom_call.1} parent=88 // pred_check_branch
          %410 = sbr.rel (%p408) target = $region93
        $region92: #{tpu_custom_call.1} parent=88 // pred_region
          _
        $region93: #{tpu_custom_call.1} parent=88 // pred_fallthru
          _
        // Predicated region
        $region94: #{tpu_custom_call.1} parent=88 // pred_check
          %p411 = pneg %p119
        $region95: #{tpu_custom_call.1} parent=88 // pred_check_branch
          %413 = sbr.rel (%p411) target = $region97
        $region96: #{tpu_custom_call.1} parent=88 // pred_region
          %414 = dma.done [#allocation4], 512
        $region97: #{tpu_custom_call.1} parent=88 // pred_fallthru
          _
        // Predicated region
        $region98: #{tpu_custom_call.1} parent=88 // pred_check
          %p415 = pneg %p140
        $region99: #{tpu_custom_call.1} parent=88 // pred_check_branch
          %417 = sbr.rel (%p415) target = $region101
        $region100: #{tpu_custom_call.1} parent=88 // pred_region
          %418 = dma.done [#allocation8], 320
        $region101: #{tpu_custom_call.1} parent=88 // pred_fallthru
          _
        // Predicated region
        $region102: #{tpu_custom_call.1} parent=88 // pred_check
          %p419 = pneg %p161
        $region103: #{tpu_custom_call.1} parent=88 // pred_check_branch
          %421 = sbr.rel (%p419) target = $region105
        $region104: #{tpu_custom_call.1} parent=88 // pred_region
          %422 = dma.done [#allocation8], 768
        $region105: #{tpu_custom_call.1} parent=88 // pred_fallthru
          _
        // Predicated region
        $region106: #{tpu_custom_call.1} parent=88 // pred_check
          %p423 = pneg %p203
        $region107: #{tpu_custom_call.1} parent=88 // pred_check_branch
          %425 = sbr.rel (%p423) target = $region109
        $region108: #{tpu_custom_call.1} parent=88 // pred_region
          %426 = dma.done [#allocation6], 16
        $region109: #{tpu_custom_call.1} parent=88 // pred_fallthru
          _
        %427 = sfence
        %s428 = smul.u32 16, %s25
        %p429 = scmp.lt.s32.totalorder %s428, 63
        %s430 = scalar_select %p429, %s428, 63
        %s431 = smul.addr %s430, 4
        %s432 = scalar_lea.vmem %s0, %s431
        %p433 = pneg %p46
        %p434 = pneg %p43
        %s435 = sand.u32 %s59, 1
        %s436 = sand.u32 %s59, 1
        %s437 = smul.addr %s436, 32
        %s438 = scalar_lea.vmem [#allocation2], %s437
        %p439 = pneg %p72
        %p440 = pneg %p69
        %s441 = smul.u32 16, %s25
        %p442 = scmp.lt.s32.totalorder %s441, 63
        %s443 = scalar_select %p442, %s441, 63
        %s444 = smul.addr %s443, 4
        %s445 = scalar_lea.vmem %s2, %s444
        %p446 = pneg %p98
        %p447 = pneg %p95
        %p448 = pneg %p119
        %p449 = pneg %p116
        %p450 = pneg %p140
        %p451 = pneg %p137
        %p452 = pneg %p161
        %p453 = pneg %p158
        %p454 = pneg %p182
        %p455 = pneg %p179
        %p456 = pneg %p203
        %p457 = pneg %p200
        %p458 = pneg %p229
        %p459 = pneg %p226
        %s460 = sand.u32 %s216, 1
        %s461 = scalar_lea.sflag [#allocation5], %s460
        %s462 = sand.u32 %s216, 1
        %s463 = smul.addr %s462, 128
        %s464 = scalar_lea.vmem [#allocation11], %s463
        %s465 = smul.u32 16, %s25
        %p466 = scmp.lt.s32.totalorder %s465, 63
        %s467 = scalar_select %p466, %s465, 63
        %s468 = smul.addr %s467, 4
        %s469 = scalar_lea.vmem %s0, %s468
        %s470 = smul.u32 16, %s25
        %s471 = smul.u32 16, %s25
        %p472 = scmp.lt.s32.totalorder %s471, 63
        %s473 = scalar_select %p472, %s471, 63
        %s474 = smul.addr %s473, 4
        %s475 = scalar_lea.vmem %s2, %s474
        %s476 = smul.u32 16, %s25
        %s477 = smul.u32 16, %s25
        %v481 = vld [vmem:[%s469] sm:$0xf]
        %v482 = vld [vmem:[%s469 + $0x4] sm:$0xf]
        %v483 = vld [vmem:[%s469 + $0x8] sm:$0xf]
        %v484 = vld [vmem:[%s469 + $0xc] sm:$0xf]
        %v485 = vld [vmem:[%s469 + $0x10] sm:$0xf]
        %v486 = vld [vmem:[%s469 + $0x14] sm:$0xf]
        %v487 = vld [vmem:[%s469 + $0x18] sm:$0xf]
        %v488 = vld [vmem:[%s469 + $0x1c] sm:$0xf]
        %v489 = vld [vmem:[%s469 + $0x20] sm:$0xf]
        %v490 = vld [vmem:[%s469 + $0x24] sm:$0xf]
        %v491 = vld [vmem:[%s469 + $0x28] sm:$0xf]
        %v492 = vld [vmem:[%s469 + $0x2c] sm:$0xf]
        %v493 = vld [vmem:[%s469 + $0x30] sm:$0xf]
        %v494 = vld [vmem:[%s469 + $0x34] sm:$0xf]
        %v495 = vld [vmem:[%s469 + $0x38] sm:$0xf]
        %v496 = vld [vmem:[%s469 + $0x3c] sm:$0xf]
        %v497 = vld [vmem:[%s407] sm:$0xf]
        %v498 = vld [vmem:[%s407 + $0x4] sm:$0xf]
        %v499 = vld [vmem:[%s407 + $0x8] sm:$0xf]
        %v500 = vld [vmem:[%s407 + $0xc] sm:$0xf]
        %v501 = vld [vmem:[%s407 + $0x10] sm:$0xf]
        %v502 = vld [vmem:[%s407 + $0x14] sm:$0xf]
        %v503 = vld [vmem:[%s407 + $0x18] sm:$0xf]
        %v504 = vld [vmem:[%s407 + $0x1c] sm:$0xf]
        %v505 = vld [vmem:[%s6] sm:$0x1]
        %v506 = vld [vmem:[%s6 + $0x1] sm:$0x1]
        %v507 = vld [vmem:[#allocation3] sm:$0xf]
        %v508 = vld [vmem:[#allocation3 + $0x4] sm:$0xf]
        %v509 = vld [vmem:[#allocation3 + $0x8] sm:$0xf]
        %v510 = vld [vmem:[#allocation3 + $0xc] sm:$0xf]
        %v511 = vld [vmem:[#allocation3 + $0x10] sm:$0xf]
        %v512 = vld [vmem:[#allocation3 + $0x14] sm:$0xf]
        %v513 = vld [vmem:[#allocation3 + $0x18] sm:$0xf]
        %v514 = vld [vmem:[#allocation3 + $0x1c] sm:$0xf]
        %v515 = vlaneseq
        %v516 = vshrl.u32 %v515, 7
        %v517 = vsub.s32 0, %v516
        %v518 = vrot.slane %v505, %v517
        %v535 = vunpack.c.l.b16 %v481
        %v536 = vunpack.c.l.b16 %v482
        %v537 = vunpack.c.l.b16 %v483
        %v538 = vunpack.c.l.b16 %v484
        %v539 = vunpack.c.l.b16 %v485
        %v540 = vunpack.c.l.b16 %v486
        %v541 = vunpack.c.l.b16 %v487
        %v542 = vunpack.c.l.b16 %v488
        %v543 = vunpack.c.l.b16 %v489
        %v544 = vunpack.c.l.b16 %v490
        %v545 = vunpack.c.l.b16 %v491
        %v546 = vunpack.c.l.b16 %v492
        %v547 = vunpack.c.l.b16 %v493
        %v548 = vunpack.c.l.b16 %v494
        %v549 = vunpack.c.l.b16 %v495
        %v550 = vunpack.c.l.b16 %v496
        %v551 = vpack.c.b16 %v536, %v535
        %v552 = vpack.c.b16 %v538, %v537
        %v553 = vpack.c.b16 %v540, %v539
        %v554 = vpack.c.b16 %v542, %v541
        %v555 = vpack.c.b16 %v544, %v543
        %v556 = vpack.c.b16 %v546, %v545
        %v557 = vpack.c.b16 %v548, %v547
        %v558 = vpack.c.b16 %v550, %v549
        %v567 = vunpack.c.l.b16 %v507
        %v568 = vunpack.c.l.b16 %v508
        %v569 = vunpack.c.l.b16 %v509
        %v570 = vunpack.c.l.b16 %v510
        %v571 = vunpack.c.l.b16 %v511
        %v572 = vunpack.c.l.b16 %v512
        %v573 = vunpack.c.l.b16 %v513
        %v574 = vunpack.c.l.b16 %v514
        %v575 = vpack.c.b16 %v568, %v567
        %v576 = vpack.c.b16 %v570, %v569
        %v577 = vpack.c.b16 %v572, %v571
        %v578 = vpack.c.b16 %v574, %v573
        %vm583 = vcmask 523264
        %v585 = vsel %vm583, %v551, 0
        %v588 = vsel %vm583, %v552, 0
        %v591 = vsel %vm583, %v553, 0
        %v594 = vsel %vm583, %v554, 0
        %v597 = vsel %vm583, %v555, 0
        %v600 = vsel %vm583, %v556, 0
        %v603 = vsel %vm583, %v557, 0
        %v606 = vsel %vm583, %v558, 0
        %608 = vmatprep.subr.bf16.mxu0 0
        %609 = vmatpush1.bf16.msra.mxu0 0
        %610 = vmatprep.subr.bf16.mxu0 0
        %611 = vmatpush1.bf16.msra.mxu0 0
        %612 = vmatprep.subr.bf16.mxu0 0
        %613 = vmatpush1.bf16.msra.mxu0 0
        %614 = vmatprep.subr.bf16.mxu0 0
        %615 = vmatpush1.bf16.msra.mxu0 0
        %616 = vmatprep.subr.bf16.mxu0 0
        %617 = vmatpush1.bf16.msra.mxu0 %v578
        %618 = vmatprep.subr.bf16.mxu0 0
        %619 = vmatpush1.bf16.msra.mxu0 %v577
        %620 = vmatprep.subr.bf16.mxu0 0
        %621 = vmatpush1.bf16.msra.mxu0 %v576
        %622 = vmatprep.subr.bf16.mxu0 0
        %623 = vmatpush1.bf16.msra.mxu0 %v575
        %624 = vmatprep.subr.bf16.mxu0 0
        %625 = vmatpush2.bf16.msra.mxu0 0
        %626 = vmatprep.subr.bf16.mxu0 0
        %627 = vmatpush2.bf16.msra.mxu0 0
        %628 = vmatprep.subr.bf16.mxu0 0
        %629 = vmatpush2.bf16.msra.mxu0 0
        %630 = vmatprep.subr.bf16.mxu0 0
        %631 = vmatpush2.bf16.msra.mxu0 0
        %632 = vmatprep.subr.bf16.mxu0 0
        %633 = vmatpush2.bf16.msra.mxu0 0
        %634 = vmatprep.subr.bf16.mxu0 0
        %635 = vmatpush2.bf16.msra.mxu0 0
        %636 = vmatprep.subr.bf16.mxu0 0
        %637 = vmatpush2.bf16.msra.mxu0 0
        %638 = vmatprep.subr.bf16.mxu0 0
        %639 = vmatpush2.bf16.msra.mxu0 0
        %640 = vmatprep.mubr.bf16.mxu0 0
        %641 = vmatmul.mubr.bf16.gmra.mxu0 %v585
        %v642 = vpop.f32.mrf.mxu0
        %v643 = vadd.f32 %v518, %v642
        %v644 = vpop.f32.mrf.mxu0
        %v645 = vpop.f32.mrf.mxu0
        %v646 = vadd.f32 %v518, %v645
        %v647 = vpop.f32.mrf.mxu0
        %648 = vmatprep.mubr.bf16.mxu0 0
        %649 = vmatmul.mubr.bf16.gmra.mxu0 %v588
        %v650 = vpop.f32.mrf.mxu0
        %v651 = vadd.f32 %v518, %v650
        %v652 = vpop.f32.mrf.mxu0
        %v653 = vpop.f32.mrf.mxu0
        %v654 = vadd.f32 %v518, %v653
        %v655 = vpop.f32.mrf.mxu0
        %656 = vmatprep.mubr.bf16.mxu0 0
        %657 = vmatmul.mubr.bf16.gmra.mxu0 %v591
        %v658 = vpop.f32.mrf.mxu0
        %v659 = vadd.f32 %v518, %v658
        %v660 = vpop.f32.mrf.mxu0
        %v661 = vpop.f32.mrf.mxu0
        %v662 = vadd.f32 %v518, %v661
        %v663 = vpop.f32.mrf.mxu0
        %664 = vmatprep.mubr.bf16.mxu0 0
        %665 = vmatmul.mubr.bf16.gmra.mxu0 %v594
        %v666 = vpop.f32.mrf.mxu0
        %v667 = vadd.f32 %v518, %v666
        %v668 = vpop.f32.mrf.mxu0
        %v669 = vpop.f32.mrf.mxu0
        %v670 = vadd.f32 %v518, %v669
        %v671 = vpop.f32.mrf.mxu0
        %672 = vmatprep.mubr.bf16.mxu0 0
        %673 = vmatmul.mubr.bf16.gmra.mxu0 %v597
        %v674 = vpop.f32.mrf.mxu0
        %v675 = vadd.f32 %v518, %v674
        %v676 = vpop.f32.mrf.mxu0
        %v677 = vpop.f32.mrf.mxu0
        %v678 = vadd.f32 %v518, %v677
        %v679 = vpop.f32.mrf.mxu0
        %680 = vmatprep.mubr.bf16.mxu0 0
        %681 = vmatmul.mubr.bf16.gmra.mxu0 %v600
        %v682 = vpop.f32.mrf.mxu0
        %v683 = vadd.f32 %v518, %v682
        %v684 = vpop.f32.mrf.mxu0
        %v685 = vpop.f32.mrf.mxu0
        %v686 = vadd.f32 %v518, %v685
        %v687 = vpop.f32.mrf.mxu0
        %688 = vmatprep.mubr.bf16.mxu0 0
        %689 = vmatmul.mubr.bf16.gmra.mxu0 %v603
        %v690 = vpop.f32.mrf.mxu0
        %v691 = vadd.f32 %v518, %v690
        %v692 = vpop.f32.mrf.mxu0
        %v693 = vpop.f32.mrf.mxu0
        %v694 = vadd.f32 %v518, %v693
        %v695 = vpop.f32.mrf.mxu0
        %696 = vmatprep.mubr.bf16.mxu0 0
        %697 = vmatmul.mubr.bf16.gmra.mxu0 %v606
        %v698 = vpop.f32.mrf.mxu0
        %v699 = vadd.f32 %v518, %v698
        %v700 = vpop.f32.mrf.mxu0
        %v701 = vpop.f32.mrf.mxu0
        %v702 = vadd.f32 %v518, %v701
        %v703 = vpop.f32.mrf.mxu0
        %704 = vdwg.mxu0
        %v705 = vld [vmem:[#allocation7] sm:$0xf]
        %v706 = vld [vmem:[#allocation7 + $0x4] sm:$0xf]
        %v707 = vld [vmem:[#allocation7 + $0x8] sm:$0xf]
        %v708 = vld [vmem:[#allocation7 + $0xc] sm:$0xf]
        %v709 = vld [vmem:[#allocation7 + $0x10] sm:$0x1]
        %v715 = vunpack.c.l.b16 %v705
        %v716 = vunpack.c.l.b16 %v706
        %v717 = vunpack.c.l.b16 %v707
        %v718 = vunpack.c.l.b16 %v708
        %v719 = vunpack.c.l.b16 %v709
        %v720 = vpack.c.b16 %v716, %v715
        %v721 = vpack.c.b16 %v718, %v717
        %v722 = vpack.c.b16 %v719, %v719
        %v731 = vunpack.c.l.b16 %v497
        %v732 = vunpack.c.l.b16 %v498
        %v733 = vunpack.c.l.b16 %v499
        %v734 = vunpack.c.l.b16 %v500
        %v735 = vunpack.c.l.b16 %v501
        %v736 = vunpack.c.l.b16 %v502
        %v737 = vunpack.c.l.b16 %v503
        %v738 = vunpack.c.l.b16 %v504
        %v739 = vpack.c.b16 %v732, %v731
        %v740 = vpack.c.b16 %v734, %v733
        %v741 = vpack.c.b16 %v736, %v735
        %v742 = vpack.c.b16 %v738, %v737
        %v748 = vsel %vm583, %v720, 0
        %v751 = vsel %vm583, %v721, 0
        %v754 = vsel %vm583, %v722, 0
        %756 = vmatprep.subr.bf16.mxu0 0
        %757 = vmatpush1.bf16.msra.mxu0 0
        %758 = vmatprep.subr.bf16.mxu0 0
        %759 = vmatpush1.bf16.msra.mxu0 0
        %760 = vmatprep.subr.bf16.mxu0 0
        %761 = vmatpush1.bf16.msra.mxu0 0
        %762 = vmatprep.subr.bf16.mxu0 0
        %763 = vmatpush1.bf16.msra.mxu0 0
        %764 = vmatprep.subr.bf16.mxu0 0
        %765 = vmatpush1.bf16.msra.mxu0 %v742
        %766 = vmatprep.subr.bf16.mxu0 0
        %767 = vmatpush1.bf16.msra.mxu0 %v741
        %768 = vmatprep.subr.bf16.mxu0 0
        %769 = vmatpush1.bf16.msra.mxu0 %v740
        %770 = vmatprep.subr.bf16.mxu0 0
        %771 = vmatpush1.bf16.msra.mxu0 %v739
        %772 = vmatprep.subr.bf16.mxu0 0
        %773 = vmatpush2.bf16.msra.mxu0 0
        %774 = vmatprep.subr.bf16.mxu0 0
        %775 = vmatpush2.bf16.msra.mxu0 0
        %776 = vmatprep.subr.bf16.mxu0 0
        %777 = vmatpush2.bf16.msra.mxu0 0
        %778 = vmatprep.subr.bf16.mxu0 0
        %779 = vmatpush2.bf16.msra.mxu0 0
        %780 = vmatprep.subr.bf16.mxu0 0
        %781 = vmatpush2.bf16.msra.mxu0 0
        %782 = vmatprep.subr.bf16.mxu0 0
        %783 = vmatpush2.bf16.msra.mxu0 0
        %784 = vmatprep.subr.bf16.mxu0 0
        %785 = vmatpush2.bf16.msra.mxu0 0
        %786 = vmatprep.subr.bf16.mxu0 0
        %787 = vmatpush2.bf16.msra.mxu0 0
        %788 = vmatprep.mubr.bf16.mxu0 0
        %789 = vmatmul.mubr.bf16.gmra.mxu0 %v748
        %v790 = vpop.f32.mrf.mxu0
        %v791 = vadd.f32 0.0, %v790
        %v792 = vpop.f32.mrf.mxu0
        %v793 = vpop.f32.mrf.mxu0
        %v794 = vadd.f32 0.0, %v793
        %v795 = vpop.f32.mrf.mxu0
        %796 = vmatprep.mubr.bf16.mxu0 0
        %797 = vmatmul.mubr.bf16.gmra.mxu0 %v751
        %v798 = vpop.f32.mrf.mxu0
        %v799 = vadd.f32 0.0, %v798
        %v800 = vpop.f32.mrf.mxu0
        %v801 = vpop.f32.mrf.mxu0
        %v802 = vadd.f32 0.0, %v801
        %v803 = vpop.f32.mrf.mxu0
        %804 = vmatprep.mubr.bf16.mxu0 0
        %805 = vmatmul.mubr.bf16.gmra.mxu0 %v754
        %v806 = vpop.f32.mrf.mxu0
        %v807 = vadd.f32 0.0, %v806
        %v808 = vpop.f32.mrf.mxu0
        %v809 = vpop.f32.mrf.mxu0
        %v810 = vpop.f32.mrf.mxu0
        %811 = vdwg.mxu0
        %813 = vset.pattern.permute.xlu0 64
        %814 = vperm.xlu0 %813, %v643
        %v815 = vpop.permute.xlu0 %814
        %818 = vset.pattern.permute.xlu0 64
        %819 = vperm.xlu0 %818, %v646
        %v820 = vpop.permute.xlu0 %819
        %823 = vset.pattern.permute.xlu0 64
        %824 = vperm.xlu0 %823, %v651
        %v825 = vpop.permute.xlu0 %824
        %828 = vset.pattern.permute.xlu0 64
        %829 = vperm.xlu0 %828, %v654
        %v830 = vpop.permute.xlu0 %829
        %833 = vset.pattern.permute.xlu0 64
        %834 = vperm.xlu0 %833, %v659
        %v835 = vpop.permute.xlu0 %834
        %838 = vset.pattern.permute.xlu0 64
        %839 = vperm.xlu0 %838, %v662
        %v840 = vpop.permute.xlu0 %839
        %843 = vset.pattern.permute.xlu0 64
        %844 = vperm.xlu0 %843, %v667
        %v845 = vpop.permute.xlu0 %844
        %848 = vset.pattern.permute.xlu0 64
        %849 = vperm.xlu0 %848, %v670
        %v850 = vpop.permute.xlu0 %849
        %853 = vset.pattern.permute.xlu0 64
        %854 = vperm.xlu0 %853, %v675
        %v855 = vpop.permute.xlu0 %854
        %858 = vset.pattern.permute.xlu0 64
        %859 = vperm.xlu0 %858, %v678
        %v860 = vpop.permute.xlu0 %859
        %863 = vset.pattern.permute.xlu0 64
        %864 = vperm.xlu0 %863, %v683
        %v865 = vpop.permute.xlu0 %864
        %868 = vset.pattern.permute.xlu0 64
        %869 = vperm.xlu0 %868, %v686
        %v870 = vpop.permute.xlu0 %869
        %873 = vset.pattern.permute.xlu0 64
        %874 = vperm.xlu0 %873, %v691
        %v875 = vpop.permute.xlu0 %874
        %878 = vset.pattern.permute.xlu0 64
        %879 = vperm.xlu0 %878, %v694
        %v880 = vpop.permute.xlu0 %879
        %883 = vset.pattern.permute.xlu0 64
        %884 = vperm.xlu0 %883, %v699
        %v885 = vpop.permute.xlu0 %884
        %888 = vset.pattern.permute.xlu0 64
        %889 = vperm.xlu0 %888, %v702
        %v890 = vpop.permute.xlu0 %889
        %v892 = vlaneseq
        %v893 = vshrl.u32 %v892, 7
        %v894 = vsub.s32 0, %v893
        %v895 = vrot.slane %v807, %v894
        %v896 = vadd.f32 %v815, %v895
        %v897 = vadd.f32 %v820, %v895
        %v898 = vadd.f32 %v825, %v895
        %v899 = vadd.f32 %v830, %v895
        %v900 = vadd.f32 %v835, %v895
        %v901 = vadd.f32 %v840, %v895
        %v902 = vadd.f32 %v845, %v895
        %v903 = vadd.f32 %v850, %v895
        %v904 = vadd.f32 %v855, %v895
        %v905 = vadd.f32 %v860, %v895
        %v906 = vadd.f32 %v865, %v895
        %v907 = vadd.f32 %v870, %v895
        %v908 = vadd.f32 %v875, %v895
        %v909 = vadd.f32 %v880, %v895
        %v910 = vadd.f32 %v885, %v895
        %v911 = vadd.f32 %v890, %v895
        %v912 = vmul.f32 %v896, 0.6
        %v913 = vmul.f32 %v897, 0.6
        %v914 = vmul.f32 %v898, 0.6
        %v915 = vmul.f32 %v899, 0.6
        %v916 = vmul.f32 %v900, 0.6
        %v917 = vmul.f32 %v901, 0.6
        %v918 = vmul.f32 %v902, 0.6
        %v919 = vmul.f32 %v903, 0.6
        %v920 = vmul.f32 %v904, 0.6
        %v921 = vmul.f32 %v905, 0.6
        %v922 = vmul.f32 %v906, 0.6
        %v923 = vmul.f32 %v907, 0.6
        %v924 = vmul.f32 %v908, 0.6
        %v925 = vmul.f32 %v909, 0.6
        %v926 = vmul.f32 %v910, 0.6
        %v927 = vmul.f32 %v911, 0.6
        %s928 = sld [smem:[#allocation10]]
        %929 = vset.pattern.permute.xlu0 32
        %930 = vperm.xlu0 %929, %v643
        %v931 = vpop.permute.xlu0 %930
        %933 = vset.pattern.permute.xlu0 32
        %934 = vperm.xlu0 %933, %v646
        %v935 = vpop.permute.xlu0 %934
        %937 = vset.pattern.permute.xlu0 32
        %938 = vperm.xlu0 %937, %v651
        %v939 = vpop.permute.xlu0 %938
        %941 = vset.pattern.permute.xlu0 32
        %942 = vperm.xlu0 %941, %v654
        %v943 = vpop.permute.xlu0 %942
        %945 = vset.pattern.permute.xlu0 32
        %946 = vperm.xlu0 %945, %v659
        %v947 = vpop.permute.xlu0 %946
        %949 = vset.pattern.permute.xlu0 32
        %950 = vperm.xlu0 %949, %v662
        %v951 = vpop.permute.xlu0 %950
        %953 = vset.pattern.permute.xlu0 32
        %954 = vperm.xlu0 %953, %v667
        %v955 = vpop.permute.xlu0 %954
        %957 = vset.pattern.permute.xlu0 32
        %958 = vperm.xlu0 %957, %v670
        %v959 = vpop.permute.xlu0 %958
        %961 = vset.pattern.permute.xlu0 32
        %962 = vperm.xlu0 %961, %v675
        %v963 = vpop.permute.xlu0 %962
        %965 = vset.pattern.permute.xlu0 32
        %966 = vperm.xlu0 %965, %v678
        %v967 = vpop.permute.xlu0 %966
        %969 = vset.pattern.permute.xlu0 32
        %970 = vperm.xlu0 %969, %v683
        %v971 = vpop.permute.xlu0 %970
        %973 = vset.pattern.permute.xlu0 32
        %974 = vperm.xlu0 %973, %v686
        %v975 = vpop.permute.xlu0 %974
        %977 = vset.pattern.permute.xlu0 32
        %978 = vperm.xlu0 %977, %v691
        %v979 = vpop.permute.xlu0 %978
        %981 = vset.pattern.permute.xlu0 32
        %982 = vperm.xlu0 %981, %v694
        %v983 = vpop.permute.xlu0 %982
        %985 = vset.pattern.permute.xlu0 32
        %986 = vperm.xlu0 %985, %v699
        %v987 = vpop.permute.xlu0 %986
        %989 = vset.pattern.permute.xlu0 32
        %990 = vperm.xlu0 %989, %v702
        %v991 = vpop.permute.xlu0 %990
        %v993 = vlaneseq
        %v994 = vshrl.u32 %v993, 7
        %v995 = vsub.s32 0, %v994
        %v996 = vrot.slane %v791, %v995
        %v997 = vadd.f32 %v931, %v996
        %v998 = vadd.f32 %v935, %v996
        %v999 = vadd.f32 %v939, %v996
        %v1000 = vadd.f32 %v943, %v996
        %v1001 = vadd.f32 %v947, %v996
        %v1002 = vadd.f32 %v951, %v996
        %v1003 = vadd.f32 %v955, %v996
        %v1004 = vadd.f32 %v959, %v996
        %v1005 = vadd.f32 %v963, %v996
        %v1006 = vadd.f32 %v967, %v996
        %v1007 = vadd.f32 %v971, %v996
        %v1008 = vadd.f32 %v975, %v996
        %v1009 = vadd.f32 %v979, %v996
        %v1010 = vadd.f32 %v983, %v996
        %v1011 = vadd.f32 %v987, %v996
        %v1012 = vadd.f32 %v991, %v996
        %v1013 = vand.u32 2147483647, %v997
        %v1014 = vand.u32 2147483647, %v998
        %v1015 = vand.u32 2147483647, %v999
        %v1016 = vand.u32 2147483647, %v1000
        %v1017 = vand.u32 2147483647, %v1001
        %v1018 = vand.u32 2147483647, %v1002
        %v1019 = vand.u32 2147483647, %v1003
        %v1020 = vand.u32 2147483647, %v1004
        %v1021 = vand.u32 2147483647, %v1005
        %v1022 = vand.u32 2147483647, %v1006
        %v1023 = vand.u32 2147483647, %v1007
        %v1024 = vand.u32 2147483647, %v1008
        %v1025 = vand.u32 2147483647, %v1009
        %v1026 = vand.u32 2147483647, %v1010
        %v1027 = vand.u32 2147483647, %v1011
        %v1028 = vand.u32 2147483647, %v1012
        %v1029 = vstv %s928
        %v1030 = vmul.f32 %v1029, %v1013
        %v1031 = vmul.f32 %v1029, %v1014
        %v1032 = vmul.f32 %v1029, %v1015
        %v1033 = vmul.f32 %v1029, %v1016
        %v1034 = vmul.f32 %v1029, %v1017
        %v1035 = vmul.f32 %v1029, %v1018
        %v1036 = vmul.f32 %v1029, %v1019
        %v1037 = vmul.f32 %v1029, %v1020
        %v1038 = vmul.f32 %v1029, %v1021
        %v1039 = vmul.f32 %v1029, %v1022
        %v1040 = vmul.f32 %v1029, %v1023
        %v1041 = vmul.f32 %v1029, %v1024
        %v1042 = vmul.f32 %v1029, %v1025
        %v1043 = vmul.f32 %v1029, %v1026
        %v1044 = vmul.f32 %v1029, %v1027
        %v1045 = vmul.f32 %v1029, %v1028
        %v1046 = vadd.f32 %v912, %v1030
        %v1047 = vadd.f32 %v913, %v1031
        %v1048 = vadd.f32 %v914, %v1032
        %v1049 = vadd.f32 %v915, %v1033
        %v1050 = vadd.f32 %v916, %v1034
        %v1051 = vadd.f32 %v917, %v1035
        %v1052 = vadd.f32 %v918, %v1036
        %v1053 = vadd.f32 %v919, %v1037
        %v1054 = vadd.f32 %v920, %v1038
        %v1055 = vadd.f32 %v921, %v1039
        %v1056 = vadd.f32 %v922, %v1040
        %v1057 = vadd.f32 %v923, %v1041
        %v1058 = vadd.f32 %v924, %v1042
        %v1059 = vadd.f32 %v925, %v1043
        %v1060 = vadd.f32 %v926, %v1044
        %v1061 = vadd.f32 %v927, %v1045
        %s1062 = sld [smem:[#allocation10 + $0x1]]
        %1063 = vset.pattern.permute.xlu0 33
        %1064 = vperm.xlu0 %1063, %v643
        %v1065 = vpop.permute.xlu0 %1064
        %1067 = vset.pattern.permute.xlu0 33
        %1068 = vperm.xlu0 %1067, %v646
        %v1069 = vpop.permute.xlu0 %1068
        %1071 = vset.pattern.permute.xlu0 33
        %1072 = vperm.xlu0 %1071, %v651
        %v1073 = vpop.permute.xlu0 %1072
        %1075 = vset.pattern.permute.xlu0 33
        %1076 = vperm.xlu0 %1075, %v654
        %v1077 = vpop.permute.xlu0 %1076
        %1079 = vset.pattern.permute.xlu0 33
        %1080 = vperm.xlu0 %1079, %v659
        %v1081 = vpop.permute.xlu0 %1080
        %1083 = vset.pattern.permute.xlu0 33
        %1084 = vperm.xlu0 %1083, %v662
        %v1085 = vpop.permute.xlu0 %1084
        %1087 = vset.pattern.permute.xlu0 33
        %1088 = vperm.xlu0 %1087, %v667
        %v1089 = vpop.permute.xlu0 %1088
        %1091 = vset.pattern.permute.xlu0 33
        %1092 = vperm.xlu0 %1091, %v670
        %v1093 = vpop.permute.xlu0 %1092
        %1095 = vset.pattern.permute.xlu0 33
        %1096 = vperm.xlu0 %1095, %v675
        %v1097 = vpop.permute.xlu0 %1096
        %1099 = vset.pattern.permute.xlu0 33
        %1100 = vperm.xlu0 %1099, %v678
        %v1101 = vpop.permute.xlu0 %1100
        %1103 = vset.pattern.permute.xlu0 33
        %1104 = vperm.xlu0 %1103, %v683
        %v1105 = vpop.permute.xlu0 %1104
        %1107 = vset.pattern.permute.xlu0 33
        %1108 = vperm.xlu0 %1107, %v686
        %v1109 = vpop.permute.xlu0 %1108
        %1111 = vset.pattern.permute.xlu0 33
        %1112 = vperm.xlu0 %1111, %v691
        %v1113 = vpop.permute.xlu0 %1112
        %1115 = vset.pattern.permute.xlu0 33
        %1116 = vperm.xlu0 %1115, %v694
        %v1117 = vpop.permute.xlu0 %1116
        %1119 = vset.pattern.permute.xlu0 33
        %1120 = vperm.xlu0 %1119, %v699
        %v1121 = vpop.permute.xlu0 %1120
        %1123 = vset.pattern.permute.xlu0 33
        %1124 = vperm.xlu0 %1123, %v702
        %v1125 = vpop.permute.xlu0 %1124
        %v1127 = vlaneseq
        %v1128 = vshrl.u32 %v1127, 7
        %v1129 = vsub.s32 1, %v1128
        %v1130 = vrot.slane %v791, %v1129
        %v1131 = vadd.f32 %v1065, %v1130
        %v1132 = vadd.f32 %v1069, %v1130
        %v1133 = vadd.f32 %v1073, %v1130
        %v1134 = vadd.f32 %v1077, %v1130
        %v1135 = vadd.f32 %v1081, %v1130
        %v1136 = vadd.f32 %v1085, %v1130
        %v1137 = vadd.f32 %v1089, %v1130
        %v1138 = vadd.f32 %v1093, %v1130
        %v1139 = vadd.f32 %v1097, %v1130
        %v1140 = vadd.f32 %v1101, %v1130
        %v1141 = vadd.f32 %v1105, %v1130
        %v1142 = vadd.f32 %v1109, %v1130
        %v1143 = vadd.f32 %v1113, %v1130
        %v1144 = vadd.f32 %v1117, %v1130
        %v1145 = vadd.f32 %v1121, %v1130
        %v1146 = vadd.f32 %v1125, %v1130
        %v1147 = vand.u32 2147483647, %v1131
        %v1148 = vand.u32 2147483647, %v1132
        %v1149 = vand.u32 2147483647, %v1133
        %v1150 = vand.u32 2147483647, %v1134
        %v1151 = vand.u32 2147483647, %v1135
        %v1152 = vand.u32 2147483647, %v1136
        %v1153 = vand.u32 2147483647, %v1137
        %v1154 = vand.u32 2147483647, %v1138
        %v1155 = vand.u32 2147483647, %v1139
        %v1156 = vand.u32 2147483647, %v1140
        %v1157 = vand.u32 2147483647, %v1141
        %v1158 = vand.u32 2147483647, %v1142
        %v1159 = vand.u32 2147483647, %v1143
        %v1160 = vand.u32 2147483647, %v1144
        %v1161 = vand.u32 2147483647, %v1145
        %v1162 = vand.u32 2147483647, %v1146
        %v1163 = vstv %s1062
        %v1164 = vmul.f32 %v1163, %v1147
        %v1165 = vmul.f32 %v1163, %v1148
        %v1166 = vmul.f32 %v1163, %v1149
        %v1167 = vmul.f32 %v1163, %v1150
        %v1168 = vmul.f32 %v1163, %v1151
        %v1169 = vmul.f32 %v1163, %v1152
        %v1170 = vmul.f32 %v1163, %v1153
        %v1171 = vmul.f32 %v1163, %v1154
        %v1172 = vmul.f32 %v1163, %v1155
        %v1173 = vmul.f32 %v1163, %v1156
        %v1174 = vmul.f32 %v1163, %v1157
        %v1175 = vmul.f32 %v1163, %v1158
        %v1176 = vmul.f32 %v1163, %v1159
        %v1177 = vmul.f32 %v1163, %v1160
        %v1178 = vmul.f32 %v1163, %v1161
        %v1179 = vmul.f32 %v1163, %v1162
        %v1180 = vadd.f32 %v1046, %v1164
        %v1181 = vadd.f32 %v1047, %v1165
        %v1182 = vadd.f32 %v1048, %v1166
        %v1183 = vadd.f32 %v1049, %v1167
        %v1184 = vadd.f32 %v1050, %v1168
        %v1185 = vadd.f32 %v1051, %v1169
        %v1186 = vadd.f32 %v1052, %v1170
        %v1187 = vadd.f32 %v1053, %v1171
        %v1188 = vadd.f32 %v1054, %v1172
        %v1189 = vadd.f32 %v1055, %v1173
        %v1190 = vadd.f32 %v1056, %v1174
        %v1191 = vadd.f32 %v1057, %v1175
        %v1192 = vadd.f32 %v1058, %v1176
        %v1193 = vadd.f32 %v1059, %v1177
        %v1194 = vadd.f32 %v1060, %v1178
        %v1195 = vadd.f32 %v1061, %v1179
        %s1196 = sld [smem:[#allocation10 + $0x2]]
        %1197 = vset.pattern.permute.xlu0 34
        %1198 = vperm.xlu0 %1197, %v643
        %v1199 = vpop.permute.xlu0 %1198
        %1201 = vset.pattern.permute.xlu0 34
        %1202 = vperm.xlu0 %1201, %v646
        %v1203 = vpop.permute.xlu0 %1202
        %1205 = vset.pattern.permute.xlu0 34
        %1206 = vperm.xlu0 %1205, %v651
        %v1207 = vpop.permute.xlu0 %1206
        %1209 = vset.pattern.permute.xlu0 34
        %1210 = vperm.xlu0 %1209, %v654
        %v1211 = vpop.permute.xlu0 %1210
        %1213 = vset.pattern.permute.xlu0 34
        %1214 = vperm.xlu0 %1213, %v659
        %v1215 = vpop.permute.xlu0 %1214
        %1217 = vset.pattern.permute.xlu0 34
        %1218 = vperm.xlu0 %1217, %v662
        %v1219 = vpop.permute.xlu0 %1218
        %1221 = vset.pattern.permute.xlu0 34
        %1222 = vperm.xlu0 %1221, %v667
        %v1223 = vpop.permute.xlu0 %1222
        %1225 = vset.pattern.permute.xlu0 34
        %1226 = vperm.xlu0 %1225, %v670
        %v1227 = vpop.permute.xlu0 %1226
        %1229 = vset.pattern.permute.xlu0 34
        %1230 = vperm.xlu0 %1229, %v675
        %v1231 = vpop.permute.xlu0 %1230
        %1233 = vset.pattern.permute.xlu0 34
        %1234 = vperm.xlu0 %1233, %v678
        %v1235 = vpop.permute.xlu0 %1234
        %1237 = vset.pattern.permute.xlu0 34
        %1238 = vperm.xlu0 %1237, %v683
        %v1239 = vpop.permute.xlu0 %1238
        %1241 = vset.pattern.permute.xlu0 34
        %1242 = vperm.xlu0 %1241, %v686
        %v1243 = vpop.permute.xlu0 %1242
        %1245 = vset.pattern.permute.xlu0 34
        %1246 = vperm.xlu0 %1245, %v691
        %v1247 = vpop.permute.xlu0 %1246
        %1249 = vset.pattern.permute.xlu0 34
        %1250 = vperm.xlu0 %1249, %v694
        %v1251 = vpop.permute.xlu0 %1250
        %1253 = vset.pattern.permute.xlu0 34
        %1254 = vperm.xlu0 %1253, %v699
        %v1255 = vpop.permute.xlu0 %1254
        %1257 = vset.pattern.permute.xlu0 34
        %1258 = vperm.xlu0 %1257, %v702
        %v1259 = vpop.permute.xlu0 %1258
        %v1261 = vlaneseq
        %v1262 = vshrl.u32 %v1261, 7
        %v1263 = vsub.s32 2, %v1262
        %v1264 = vrot.slane %v791, %v1263
        %v1265 = vadd.f32 %v1199, %v1264
        %v1266 = vadd.f32 %v1203, %v1264
        %v1267 = vadd.f32 %v1207, %v1264
        %v1268 = vadd.f32 %v1211, %v1264
        %v1269 = vadd.f32 %v1215, %v1264
        %v1270 = vadd.f32 %v1219, %v1264
        %v1271 = vadd.f32 %v1223, %v1264
        %v1272 = vadd.f32 %v1227, %v1264
        %v1273 = vadd.f32 %v1231, %v1264
        %v1274 = vadd.f32 %v1235, %v1264
        %v1275 = vadd.f32 %v1239, %v1264
        %v1276 = vadd.f32 %v1243, %v1264
        %v1277 = vadd.f32 %v1247, %v1264
        %v1278 = vadd.f32 %v1251, %v1264
        %v1279 = vadd.f32 %v1255, %v1264
        %v1280 = vadd.f32 %v1259, %v1264
        %v1281 = vand.u32 2147483647, %v1265
        %v1282 = vand.u32 2147483647, %v1266
        %v1283 = vand.u32 2147483647, %v1267
        %v1284 = vand.u32 2147483647, %v1268
        %v1285 = vand.u32 2147483647, %v1269
        %v1286 = vand.u32 2147483647, %v1270
        %v1287 = vand.u32 2147483647, %v1271
        %v1288 = vand.u32 2147483647, %v1272
        %v1289 = vand.u32 2147483647, %v1273
        %v1290 = vand.u32 2147483647, %v1274
        %v1291 = vand.u32 2147483647, %v1275
        %v1292 = vand.u32 2147483647, %v1276
        %v1293 = vand.u32 2147483647, %v1277
        %v1294 = vand.u32 2147483647, %v1278
        %v1295 = vand.u32 2147483647, %v1279
        %v1296 = vand.u32 2147483647, %v1280
        %v1297 = vstv %s1196
        %v1298 = vmul.f32 %v1297, %v1281
        %v1299 = vmul.f32 %v1297, %v1282
        %v1300 = vmul.f32 %v1297, %v1283
        %v1301 = vmul.f32 %v1297, %v1284
        %v1302 = vmul.f32 %v1297, %v1285
        %v1303 = vmul.f32 %v1297, %v1286
        %v1304 = vmul.f32 %v1297, %v1287
        %v1305 = vmul.f32 %v1297, %v1288
        %v1306 = vmul.f32 %v1297, %v1289
        %v1307 = vmul.f32 %v1297, %v1290
        %v1308 = vmul.f32 %v1297, %v1291
        %v1309 = vmul.f32 %v1297, %v1292
        %v1310 = vmul.f32 %v1297, %v1293
        %v1311 = vmul.f32 %v1297, %v1294
        %v1312 = vmul.f32 %v1297, %v1295
        %v1313 = vmul.f32 %v1297, %v1296
        %v1314 = vadd.f32 %v1180, %v1298
        %v1315 = vadd.f32 %v1181, %v1299
        %v1316 = vadd.f32 %v1182, %v1300
        %v1317 = vadd.f32 %v1183, %v1301
        %v1318 = vadd.f32 %v1184, %v1302
        %v1319 = vadd.f32 %v1185, %v1303
        %v1320 = vadd.f32 %v1186, %v1304
        %v1321 = vadd.f32 %v1187, %v1305
        %v1322 = vadd.f32 %v1188, %v1306
        %v1323 = vadd.f32 %v1189, %v1307
        %v1324 = vadd.f32 %v1190, %v1308
        %v1325 = vadd.f32 %v1191, %v1309
        %v1326 = vadd.f32 %v1192, %v1310
        %v1327 = vadd.f32 %v1193, %v1311
        %v1328 = vadd.f32 %v1194, %v1312
        %v1329 = vadd.f32 %v1195, %v1313
        %s1330 = sld [smem:[#allocation10 + $0x3]]
        %1331 = vset.pattern.permute.xlu0 35
        %1332 = vperm.xlu0 %1331, %v643
        %v1333 = vpop.permute.xlu0 %1332
        %1335 = vset.pattern.permute.xlu0 35
        %1336 = vperm.xlu0 %1335, %v646
        %v1337 = vpop.permute.xlu0 %1336
        %1339 = vset.pattern.permute.xlu0 35
        %1340 = vperm.xlu0 %1339, %v651
        %v1341 = vpop.permute.xlu0 %1340
        %1343 = vset.pattern.permute.xlu0 35
        %1344 = vperm.xlu0 %1343, %v654
        %v1345 = vpop.permute.xlu0 %1344
        %1347 = vset.pattern.permute.xlu0 35
        %1348 = vperm.xlu0 %1347, %v659
        %v1349 = vpop.permute.xlu0 %1348
        %1351 = vset.pattern.permute.xlu0 35
        %1352 = vperm.xlu0 %1351, %v662
        %v1353 = vpop.permute.xlu0 %1352
        %1355 = vset.pattern.permute.xlu0 35
        %1356 = vperm.xlu0 %1355, %v667
        %v1357 = vpop.permute.xlu0 %1356
        %1359 = vset.pattern.permute.xlu0 35
        %1360 = vperm.xlu0 %1359, %v670
        %v1361 = vpop.permute.xlu0 %1360
        %1363 = vset.pattern.permute.xlu0 35
        %1364 = vperm.xlu0 %1363, %v675
        %v1365 = vpop.permute.xlu0 %1364
        %1367 = vset.pattern.permute.xlu0 35
        %1368 = vperm.xlu0 %1367, %v678
        %v1369 = vpop.permute.xlu0 %1368
        %1371 = vset.pattern.permute.xlu0 35
        %1372 = vperm.xlu0 %1371, %v683
        %v1373 = vpop.permute.xlu0 %1372
        %1375 = vset.pattern.permute.xlu0 35
        %1376 = vperm.xlu0 %1375, %v686
        %v1377 = vpop.permute.xlu0 %1376
        %1379 = vset.pattern.permute.xlu0 35
        %1380 = vperm.xlu0 %1379, %v691
        %v1381 = vpop.permute.xlu0 %1380
        %1383 = vset.pattern.permute.xlu0 35
        %1384 = vperm.xlu0 %1383, %v694
        %v1385 = vpop.permute.xlu0 %1384
        %1387 = vset.pattern.permute.xlu0 35
        %1388 = vperm.xlu0 %1387, %v699
        %v1389 = vpop.permute.xlu0 %1388
        %1391 = vset.pattern.permute.xlu0 35
        %1392 = vperm.xlu0 %1391, %v702
        %v1393 = vpop.permute.xlu0 %1392
        %v1395 = vlaneseq
        %v1396 = vshrl.u32 %v1395, 7
        %v1397 = vsub.s32 3, %v1396
        %v1398 = vrot.slane %v791, %v1397
        %v1399 = vadd.f32 %v1333, %v1398
        %v1400 = vadd.f32 %v1337, %v1398
        %v1401 = vadd.f32 %v1341, %v1398
        %v1402 = vadd.f32 %v1345, %v1398
        %v1403 = vadd.f32 %v1349, %v1398
        %v1404 = vadd.f32 %v1353, %v1398
        %v1405 = vadd.f32 %v1357, %v1398
        %v1406 = vadd.f32 %v1361, %v1398
        %v1407 = vadd.f32 %v1365, %v1398
        %v1408 = vadd.f32 %v1369, %v1398
        %v1409 = vadd.f32 %v1373, %v1398
        %v1410 = vadd.f32 %v1377, %v1398
        %v1411 = vadd.f32 %v1381, %v1398
        %v1412 = vadd.f32 %v1385, %v1398
        %v1413 = vadd.f32 %v1389, %v1398
        %v1414 = vadd.f32 %v1393, %v1398
        %v1415 = vand.u32 2147483647, %v1399
        %v1416 = vand.u32 2147483647, %v1400
        %v1417 = vand.u32 2147483647, %v1401
        %v1418 = vand.u32 2147483647, %v1402
        %v1419 = vand.u32 2147483647, %v1403
        %v1420 = vand.u32 2147483647, %v1404
        %v1421 = vand.u32 2147483647, %v1405
        %v1422 = vand.u32 2147483647, %v1406
        %v1423 = vand.u32 2147483647, %v1407
        %v1424 = vand.u32 2147483647, %v1408
        %v1425 = vand.u32 2147483647, %v1409
        %v1426 = vand.u32 2147483647, %v1410
        %v1427 = vand.u32 2147483647, %v1411
        %v1428 = vand.u32 2147483647, %v1412
        %v1429 = vand.u32 2147483647, %v1413
        %v1430 = vand.u32 2147483647, %v1414
        %v1431 = vstv %s1330
        %v1432 = vmul.f32 %v1431, %v1415
        %v1433 = vmul.f32 %v1431, %v1416
        %v1434 = vmul.f32 %v1431, %v1417
        %v1435 = vmul.f32 %v1431, %v1418
        %v1436 = vmul.f32 %v1431, %v1419
        %v1437 = vmul.f32 %v1431, %v1420
        %v1438 = vmul.f32 %v1431, %v1421
        %v1439 = vmul.f32 %v1431, %v1422
        %v1440 = vmul.f32 %v1431, %v1423
        %v1441 = vmul.f32 %v1431, %v1424
        %v1442 = vmul.f32 %v1431, %v1425
        %v1443 = vmul.f32 %v1431, %v1426
        %v1444 = vmul.f32 %v1431, %v1427
        %v1445 = vmul.f32 %v1431, %v1428
        %v1446 = vmul.f32 %v1431, %v1429
        %v1447 = vmul.f32 %v1431, %v1430
        %v1448 = vadd.f32 %v1314, %v1432
        %v1449 = vadd.f32 %v1315, %v1433
        %v1450 = vadd.f32 %v1316, %v1434
        %v1451 = vadd.f32 %v1317, %v1435
        %v1452 = vadd.f32 %v1318, %v1436
        %v1453 = vadd.f32 %v1319, %v1437
        %v1454 = vadd.f32 %v1320, %v1438
        %v1455 = vadd.f32 %v1321, %v1439
        %v1456 = vadd.f32 %v1322, %v1440
        %v1457 = vadd.f32 %v1323, %v1441
        %v1458 = vadd.f32 %v1324, %v1442
        %v1459 = vadd.f32 %v1325, %v1443
        %v1460 = vadd.f32 %v1326, %v1444
        %v1461 = vadd.f32 %v1327, %v1445
        %v1462 = vadd.f32 %v1328, %v1446
        %v1463 = vadd.f32 %v1329, %v1447
        %s1464 = sld [smem:[#allocation10 + $0x4]]
        %1465 = vset.pattern.permute.xlu0 36
        %1466 = vperm.xlu0 %1465, %v643
        %v1467 = vpop.permute.xlu0 %1466
        %1469 = vset.pattern.permute.xlu0 36
        %1470 = vperm.xlu0 %1469, %v646
        %v1471 = vpop.permute.xlu0 %1470
        %1473 = vset.pattern.permute.xlu0 36
        %1474 = vperm.xlu0 %1473, %v651
        %v1475 = vpop.permute.xlu0 %1474
        %1477 = vset.pattern.permute.xlu0 36
        %1478 = vperm.xlu0 %1477, %v654
        %v1479 = vpop.permute.xlu0 %1478
        %1481 = vset.pattern.permute.xlu0 36
        %1482 = vperm.xlu0 %1481, %v659
        %v1483 = vpop.permute.xlu0 %1482
        %1485 = vset.pattern.permute.xlu0 36
        %1486 = vperm.xlu0 %1485, %v662
        %v1487 = vpop.permute.xlu0 %1486
        %1489 = vset.pattern.permute.xlu0 36
        %1490 = vperm.xlu0 %1489, %v667
        %v1491 = vpop.permute.xlu0 %1490
        %1493 = vset.pattern.permute.xlu0 36
        %1494 = vperm.xlu0 %1493, %v670
        %v1495 = vpop.permute.xlu0 %1494
        %1497 = vset.pattern.permute.xlu0 36
        %1498 = vperm.xlu0 %1497, %v675
        %v1499 = vpop.permute.xlu0 %1498
        %1501 = vset.pattern.permute.xlu0 36
        %1502 = vperm.xlu0 %1501, %v678
        %v1503 = vpop.permute.xlu0 %1502
        %1505 = vset.pattern.permute.xlu0 36
        %1506 = vperm.xlu0 %1505, %v683
        %v1507 = vpop.permute.xlu0 %1506
        %1509 = vset.pattern.permute.xlu0 36
        %1510 = vperm.xlu0 %1509, %v686
        %v1511 = vpop.permute.xlu0 %1510
        %1513 = vset.pattern.permute.xlu0 36
        %1514 = vperm.xlu0 %1513, %v691
        %v1515 = vpop.permute.xlu0 %1514
        %1517 = vset.pattern.permute.xlu0 36
        %1518 = vperm.xlu0 %1517, %v694
        %v1519 = vpop.permute.xlu0 %1518
        %1521 = vset.pattern.permute.xlu0 36
        %1522 = vperm.xlu0 %1521, %v699
        %v1523 = vpop.permute.xlu0 %1522
        %1525 = vset.pattern.permute.xlu0 36
        %1526 = vperm.xlu0 %1525, %v702
        %v1527 = vpop.permute.xlu0 %1526
        %v1529 = vlaneseq
        %v1530 = vshrl.u32 %v1529, 7
        %v1531 = vsub.s32 4, %v1530
        %v1532 = vrot.slane %v791, %v1531
        %v1533 = vadd.f32 %v1467, %v1532
        %v1534 = vadd.f32 %v1471, %v1532
        %v1535 = vadd.f32 %v1475, %v1532
        %v1536 = vadd.f32 %v1479, %v1532
        %v1537 = vadd.f32 %v1483, %v1532
        %v1538 = vadd.f32 %v1487, %v1532
        %v1539 = vadd.f32 %v1491, %v1532
        %v1540 = vadd.f32 %v1495, %v1532
        %v1541 = vadd.f32 %v1499, %v1532
        %v1542 = vadd.f32 %v1503, %v1532
        %v1543 = vadd.f32 %v1507, %v1532
        %v1544 = vadd.f32 %v1511, %v1532
        %v1545 = vadd.f32 %v1515, %v1532
        %v1546 = vadd.f32 %v1519, %v1532
        %v1547 = vadd.f32 %v1523, %v1532
        %v1548 = vadd.f32 %v1527, %v1532
        %v1549 = vand.u32 2147483647, %v1533
        %v1550 = vand.u32 2147483647, %v1534
        %v1551 = vand.u32 2147483647, %v1535
        %v1552 = vand.u32 2147483647, %v1536
        %v1553 = vand.u32 2147483647, %v1537
        %v1554 = vand.u32 2147483647, %v1538
        %v1555 = vand.u32 2147483647, %v1539
        %v1556 = vand.u32 2147483647, %v1540
        %v1557 = vand.u32 2147483647, %v1541
        %v1558 = vand.u32 2147483647, %v1542
        %v1559 = vand.u32 2147483647, %v1543
        %v1560 = vand.u32 2147483647, %v1544
        %v1561 = vand.u32 2147483647, %v1545
        %v1562 = vand.u32 2147483647, %v1546
        %v1563 = vand.u32 2147483647, %v1547
        %v1564 = vand.u32 2147483647, %v1548
        %v1565 = vstv %s1464
        %v1566 = vmul.f32 %v1565, %v1549
        %v1567 = vmul.f32 %v1565, %v1550
        %v1568 = vmul.f32 %v1565, %v1551
        %v1569 = vmul.f32 %v1565, %v1552
        %v1570 = vmul.f32 %v1565, %v1553
        %v1571 = vmul.f32 %v1565, %v1554
        %v1572 = vmul.f32 %v1565, %v1555
        %v1573 = vmul.f32 %v1565, %v1556
        %v1574 = vmul.f32 %v1565, %v1557
        %v1575 = vmul.f32 %v1565, %v1558
        %v1576 = vmul.f32 %v1565, %v1559
        %v1577 = vmul.f32 %v1565, %v1560
        %v1578 = vmul.f32 %v1565, %v1561
        %v1579 = vmul.f32 %v1565, %v1562
        %v1580 = vmul.f32 %v1565, %v1563
        %v1581 = vmul.f32 %v1565, %v1564
        %v1582 = vadd.f32 %v1448, %v1566
        %v1583 = vadd.f32 %v1449, %v1567
        %v1584 = vadd.f32 %v1450, %v1568
        %v1585 = vadd.f32 %v1451, %v1569
        %v1586 = vadd.f32 %v1452, %v1570
        %v1587 = vadd.f32 %v1453, %v1571
        %v1588 = vadd.f32 %v1454, %v1572
        %v1589 = vadd.f32 %v1455, %v1573
        %v1590 = vadd.f32 %v1456, %v1574
        %v1591 = vadd.f32 %v1457, %v1575
        %v1592 = vadd.f32 %v1458, %v1576
        %v1593 = vadd.f32 %v1459, %v1577
        %v1594 = vadd.f32 %v1460, %v1578
        %v1595 = vadd.f32 %v1461, %v1579
        %v1596 = vadd.f32 %v1462, %v1580
        %v1597 = vadd.f32 %v1463, %v1581
        %s1598 = sld [smem:[#allocation10 + $0x5]]
        %1599 = vset.pattern.permute.xlu0 37
        %1600 = vperm.xlu0 %1599, %v643
        %v1601 = vpop.permute.xlu0 %1600
        %1603 = vset.pattern.permute.xlu0 37
        %1604 = vperm.xlu0 %1603, %v646
        %v1605 = vpop.permute.xlu0 %1604
        %1607 = vset.pattern.permute.xlu0 37
        %1608 = vperm.xlu0 %1607, %v651
        %v1609 = vpop.permute.xlu0 %1608
        %1611 = vset.pattern.permute.xlu0 37
        %1612 = vperm.xlu0 %1611, %v654
        %v1613 = vpop.permute.xlu0 %1612
        %1615 = vset.pattern.permute.xlu0 37
        %1616 = vperm.xlu0 %1615, %v659
        %v1617 = vpop.permute.xlu0 %1616
        %1619 = vset.pattern.permute.xlu0 37
        %1620 = vperm.xlu0 %1619, %v662
        %v1621 = vpop.permute.xlu0 %1620
        %1623 = vset.pattern.permute.xlu0 37
        %1624 = vperm.xlu0 %1623, %v667
        %v1625 = vpop.permute.xlu0 %1624
        %1627 = vset.pattern.permute.xlu0 37
        %1628 = vperm.xlu0 %1627, %v670
        %v1629 = vpop.permute.xlu0 %1628
        %1631 = vset.pattern.permute.xlu0 37
        %1632 = vperm.xlu0 %1631, %v675
        %v1633 = vpop.permute.xlu0 %1632
        %1635 = vset.pattern.permute.xlu0 37
        %1636 = vperm.xlu0 %1635, %v678
        %v1637 = vpop.permute.xlu0 %1636
        %1639 = vset.pattern.permute.xlu0 37
        %1640 = vperm.xlu0 %1639, %v683
        %v1641 = vpop.permute.xlu0 %1640
        %1643 = vset.pattern.permute.xlu0 37
        %1644 = vperm.xlu0 %1643, %v686
        %v1645 = vpop.permute.xlu0 %1644
        %1647 = vset.pattern.permute.xlu0 37
        %1648 = vperm.xlu0 %1647, %v691
        %v1649 = vpop.permute.xlu0 %1648
        %1651 = vset.pattern.permute.xlu0 37
        %1652 = vperm.xlu0 %1651, %v694
        %v1653 = vpop.permute.xlu0 %1652
        %1655 = vset.pattern.permute.xlu0 37
        %1656 = vperm.xlu0 %1655, %v699
        %v1657 = vpop.permute.xlu0 %1656
        %1659 = vset.pattern.permute.xlu0 37
        %1660 = vperm.xlu0 %1659, %v702
        %v1661 = vpop.permute.xlu0 %1660
        %v1663 = vlaneseq
        %v1664 = vshrl.u32 %v1663, 7
        %v1665 = vsub.s32 5, %v1664
        %v1666 = vrot.slane %v791, %v1665
        %v1667 = vadd.f32 %v1601, %v1666
        %v1668 = vadd.f32 %v1605, %v1666
        %v1669 = vadd.f32 %v1609, %v1666
        %v1670 = vadd.f32 %v1613, %v1666
        %v1671 = vadd.f32 %v1617, %v1666
        %v1672 = vadd.f32 %v1621, %v1666
        %v1673 = vadd.f32 %v1625, %v1666
        %v1674 = vadd.f32 %v1629, %v1666
        %v1675 = vadd.f32 %v1633, %v1666
        %v1676 = vadd.f32 %v1637, %v1666
        %v1677 = vadd.f32 %v1641, %v1666
        %v1678 = vadd.f32 %v1645, %v1666
        %v1679 = vadd.f32 %v1649, %v1666
        %v1680 = vadd.f32 %v1653, %v1666
        %v1681 = vadd.f32 %v1657, %v1666
        %v1682 = vadd.f32 %v1661, %v1666
        %v1683 = vand.u32 2147483647, %v1667
        %v1684 = vand.u32 2147483647, %v1668
        %v1685 = vand.u32 2147483647, %v1669
        %v1686 = vand.u32 2147483647, %v1670
        %v1687 = vand.u32 2147483647, %v1671
        %v1688 = vand.u32 2147483647, %v1672
        %v1689 = vand.u32 2147483647, %v1673
        %v1690 = vand.u32 2147483647, %v1674
        %v1691 = vand.u32 2147483647, %v1675
        %v1692 = vand.u32 2147483647, %v1676
        %v1693 = vand.u32 2147483647, %v1677
        %v1694 = vand.u32 2147483647, %v1678
        %v1695 = vand.u32 2147483647, %v1679
        %v1696 = vand.u32 2147483647, %v1680
        %v1697 = vand.u32 2147483647, %v1681
        %v1698 = vand.u32 2147483647, %v1682
        %v1699 = vstv %s1598
        %v1700 = vmul.f32 %v1699, %v1683
        %v1701 = vmul.f32 %v1699, %v1684
        %v1702 = vmul.f32 %v1699, %v1685
        %v1703 = vmul.f32 %v1699, %v1686
        %v1704 = vmul.f32 %v1699, %v1687
        %v1705 = vmul.f32 %v1699, %v1688
        %v1706 = vmul.f32 %v1699, %v1689
        %v1707 = vmul.f32 %v1699, %v1690
        %v1708 = vmul.f32 %v1699, %v1691
        %v1709 = vmul.f32 %v1699, %v1692
        %v1710 = vmul.f32 %v1699, %v1693
        %v1711 = vmul.f32 %v1699, %v1694
        %v1712 = vmul.f32 %v1699, %v1695
        %v1713 = vmul.f32 %v1699, %v1696
        %v1714 = vmul.f32 %v1699, %v1697
        %v1715 = vmul.f32 %v1699, %v1698
        %v1716 = vadd.f32 %v1582, %v1700
        %v1717 = vadd.f32 %v1583, %v1701
        %v1718 = vadd.f32 %v1584, %v1702
        %v1719 = vadd.f32 %v1585, %v1703
        %v1720 = vadd.f32 %v1586, %v1704
        %v1721 = vadd.f32 %v1587, %v1705
        %v1722 = vadd.f32 %v1588, %v1706
        %v1723 = vadd.f32 %v1589, %v1707
        %v1724 = vadd.f32 %v1590, %v1708
        %v1725 = vadd.f32 %v1591, %v1709
        %v1726 = vadd.f32 %v1592, %v1710
        %v1727 = vadd.f32 %v1593, %v1711
        %v1728 = vadd.f32 %v1594, %v1712
        %v1729 = vadd.f32 %v1595, %v1713
        %v1730 = vadd.f32 %v1596, %v1714
        %v1731 = vadd.f32 %v1597, %v1715
        %s1732 = sld [smem:[#allocation10 + $0x6]]
        %1733 = vset.pattern.permute.xlu0 38
        %1734 = vperm.xlu0 %1733, %v643
        %v1735 = vpop.permute.xlu0 %1734
        %1737 = vset.pattern.permute.xlu0 38
        %1738 = vperm.xlu0 %1737, %v646
        %v1739 = vpop.permute.xlu0 %1738
        %1741 = vset.pattern.permute.xlu0 38
        %1742 = vperm.xlu0 %1741, %v651
        %v1743 = vpop.permute.xlu0 %1742
        %1745 = vset.pattern.permute.xlu0 38
        %1746 = vperm.xlu0 %1745, %v654
        %v1747 = vpop.permute.xlu0 %1746
        %1749 = vset.pattern.permute.xlu0 38
        %1750 = vperm.xlu0 %1749, %v659
        %v1751 = vpop.permute.xlu0 %1750
        %1753 = vset.pattern.permute.xlu0 38
        %1754 = vperm.xlu0 %1753, %v662
        %v1755 = vpop.permute.xlu0 %1754
        %1757 = vset.pattern.permute.xlu0 38
        %1758 = vperm.xlu0 %1757, %v667
        %v1759 = vpop.permute.xlu0 %1758
        %1761 = vset.pattern.permute.xlu0 38
        %1762 = vperm.xlu0 %1761, %v670
        %v1763 = vpop.permute.xlu0 %1762
        %1765 = vset.pattern.permute.xlu0 38
        %1766 = vperm.xlu0 %1765, %v675
        %v1767 = vpop.permute.xlu0 %1766
        %1769 = vset.pattern.permute.xlu0 38
        %1770 = vperm.xlu0 %1769, %v678
        %v1771 = vpop.permute.xlu0 %1770
        %1773 = vset.pattern.permute.xlu0 38
        %1774 = vperm.xlu0 %1773, %v683
        %v1775 = vpop.permute.xlu0 %1774
        %1777 = vset.pattern.permute.xlu0 38
        %1778 = vperm.xlu0 %1777, %v686
        %v1779 = vpop.permute.xlu0 %1778
        %1781 = vset.pattern.permute.xlu0 38
        %1782 = vperm.xlu0 %1781, %v691
        %v1783 = vpop.permute.xlu0 %1782
        %1785 = vset.pattern.permute.xlu0 38
        %1786 = vperm.xlu0 %1785, %v694
        %v1787 = vpop.permute.xlu0 %1786
        %1789 = vset.pattern.permute.xlu0 38
        %1790 = vperm.xlu0 %1789, %v699
        %v1791 = vpop.permute.xlu0 %1790
        %1793 = vset.pattern.permute.xlu0 38
        %1794 = vperm.xlu0 %1793, %v702
        %v1795 = vpop.permute.xlu0 %1794
        %v1797 = vlaneseq
        %v1798 = vshrl.u32 %v1797, 7
        %v1799 = vsub.s32 6, %v1798
        %v1800 = vrot.slane %v791, %v1799
        %v1801 = vadd.f32 %v1735, %v1800
        %v1802 = vadd.f32 %v1739, %v1800
        %v1803 = vadd.f32 %v1743, %v1800
        %v1804 = vadd.f32 %v1747, %v1800
        %v1805 = vadd.f32 %v1751, %v1800
        %v1806 = vadd.f32 %v1755, %v1800
        %v1807 = vadd.f32 %v1759, %v1800
        %v1808 = vadd.f32 %v1763, %v1800
        %v1809 = vadd.f32 %v1767, %v1800
        %v1810 = vadd.f32 %v1771, %v1800
        %v1811 = vadd.f32 %v1775, %v1800
        %v1812 = vadd.f32 %v1779, %v1800
        %v1813 = vadd.f32 %v1783, %v1800
        %v1814 = vadd.f32 %v1787, %v1800
        %v1815 = vadd.f32 %v1791, %v1800
        %v1816 = vadd.f32 %v1795, %v1800
        %v1817 = vand.u32 2147483647, %v1801
        %v1818 = vand.u32 2147483647, %v1802
        %v1819 = vand.u32 2147483647, %v1803
        %v1820 = vand.u32 2147483647, %v1804
        %v1821 = vand.u32 2147483647, %v1805
        %v1822 = vand.u32 2147483647, %v1806
        %v1823 = vand.u32 2147483647, %v1807
        %v1824 = vand.u32 2147483647, %v1808
        %v1825 = vand.u32 2147483647, %v1809
        %v1826 = vand.u32 2147483647, %v1810
        %v1827 = vand.u32 2147483647, %v1811
        %v1828 = vand.u32 2147483647, %v1812
        %v1829 = vand.u32 2147483647, %v1813
        %v1830 = vand.u32 2147483647, %v1814
        %v1831 = vand.u32 2147483647, %v1815
        %v1832 = vand.u32 2147483647, %v1816
        %v1833 = vstv %s1732
        %v1834 = vmul.f32 %v1833, %v1817
        %v1835 = vmul.f32 %v1833, %v1818
        %v1836 = vmul.f32 %v1833, %v1819
        %v1837 = vmul.f32 %v1833, %v1820
        %v1838 = vmul.f32 %v1833, %v1821
        %v1839 = vmul.f32 %v1833, %v1822
        %v1840 = vmul.f32 %v1833, %v1823
        %v1841 = vmul.f32 %v1833, %v1824
        %v1842 = vmul.f32 %v1833, %v1825
        %v1843 = vmul.f32 %v1833, %v1826
        %v1844 = vmul.f32 %v1833, %v1827
        %v1845 = vmul.f32 %v1833, %v1828
        %v1846 = vmul.f32 %v1833, %v1829
        %v1847 = vmul.f32 %v1833, %v1830
        %v1848 = vmul.f32 %v1833, %v1831
        %v1849 = vmul.f32 %v1833, %v1832
        %v1850 = vadd.f32 %v1716, %v1834
        %v1851 = vadd.f32 %v1717, %v1835
        %v1852 = vadd.f32 %v1718, %v1836
        %v1853 = vadd.f32 %v1719, %v1837
        %v1854 = vadd.f32 %v1720, %v1838
        %v1855 = vadd.f32 %v1721, %v1839
        %v1856 = vadd.f32 %v1722, %v1840
        %v1857 = vadd.f32 %v1723, %v1841
        %v1858 = vadd.f32 %v1724, %v1842
        %v1859 = vadd.f32 %v1725, %v1843
        %v1860 = vadd.f32 %v1726, %v1844
        %v1861 = vadd.f32 %v1727, %v1845
        %v1862 = vadd.f32 %v1728, %v1846
        %v1863 = vadd.f32 %v1729, %v1847
        %v1864 = vadd.f32 %v1730, %v1848
        %v1865 = vadd.f32 %v1731, %v1849
        %s1866 = sld [smem:[#allocation10 + $0x7]]
        %1867 = vset.pattern.permute.xlu0 39
        %1868 = vperm.xlu0 %1867, %v643
        %v1869 = vpop.permute.xlu0 %1868
        %1871 = vset.pattern.permute.xlu0 39
        %1872 = vperm.xlu0 %1871, %v646
        %v1873 = vpop.permute.xlu0 %1872
        %1875 = vset.pattern.permute.xlu0 39
        %1876 = vperm.xlu0 %1875, %v651
        %v1877 = vpop.permute.xlu0 %1876
        %1879 = vset.pattern.permute.xlu0 39
        %1880 = vperm.xlu0 %1879, %v654
        %v1881 = vpop.permute.xlu0 %1880
        %1883 = vset.pattern.permute.xlu0 39
        %1884 = vperm.xlu0 %1883, %v659
        %v1885 = vpop.permute.xlu0 %1884
        %1887 = vset.pattern.permute.xlu0 39
        %1888 = vperm.xlu0 %1887, %v662
        %v1889 = vpop.permute.xlu0 %1888
        %1891 = vset.pattern.permute.xlu0 39
        %1892 = vperm.xlu0 %1891, %v667
        %v1893 = vpop.permute.xlu0 %1892
        %1895 = vset.pattern.permute.xlu0 39
        %1896 = vperm.xlu0 %1895, %v670
        %v1897 = vpop.permute.xlu0 %1896
        %1899 = vset.pattern.permute.xlu0 39
        %1900 = vperm.xlu0 %1899, %v675
        %v1901 = vpop.permute.xlu0 %1900
        %1903 = vset.pattern.permute.xlu0 39
        %1904 = vperm.xlu0 %1903, %v678
        %v1905 = vpop.permute.xlu0 %1904
        %1907 = vset.pattern.permute.xlu0 39
        %1908 = vperm.xlu0 %1907, %v683
        %v1909 = vpop.permute.xlu0 %1908
        %1911 = vset.pattern.permute.xlu0 39
        %1912 = vperm.xlu0 %1911, %v686
        %v1913 = vpop.permute.xlu0 %1912
        %1915 = vset.pattern.permute.xlu0 39
        %1916 = vperm.xlu0 %1915, %v691
        %v1917 = vpop.permute.xlu0 %1916
        %1919 = vset.pattern.permute.xlu0 39
        %1920 = vperm.xlu0 %1919, %v694
        %v1921 = vpop.permute.xlu0 %1920
        %1923 = vset.pattern.permute.xlu0 39
        %1924 = vperm.xlu0 %1923, %v699
        %v1925 = vpop.permute.xlu0 %1924
        %1927 = vset.pattern.permute.xlu0 39
        %1928 = vperm.xlu0 %1927, %v702
        %v1929 = vpop.permute.xlu0 %1928
        %v1931 = vlaneseq
        %v1932 = vshrl.u32 %v1931, 7
        %v1933 = vsub.s32 7, %v1932
        %v1934 = vrot.slane %v791, %v1933
        %v1935 = vadd.f32 %v1869, %v1934
        %v1936 = vadd.f32 %v1873, %v1934
        %v1937 = vadd.f32 %v1877, %v1934
        %v1938 = vadd.f32 %v1881, %v1934
        %v1939 = vadd.f32 %v1885, %v1934
        %v1940 = vadd.f32 %v1889, %v1934
        %v1941 = vadd.f32 %v1893, %v1934
        %v1942 = vadd.f32 %v1897, %v1934
        %v1943 = vadd.f32 %v1901, %v1934
        %v1944 = vadd.f32 %v1905, %v1934
        %v1945 = vadd.f32 %v1909, %v1934
        %v1946 = vadd.f32 %v1913, %v1934
        %v1947 = vadd.f32 %v1917, %v1934
        %v1948 = vadd.f32 %v1921, %v1934
        %v1949 = vadd.f32 %v1925, %v1934
        %v1950 = vadd.f32 %v1929, %v1934
        %v1951 = vand.u32 2147483647, %v1935
        %v1952 = vand.u32 2147483647, %v1936
        %v1953 = vand.u32 2147483647, %v1937
        %v1954 = vand.u32 2147483647, %v1938
        %v1955 = vand.u32 2147483647, %v1939
        %v1956 = vand.u32 2147483647, %v1940
        %v1957 = vand.u32 2147483647, %v1941
        %v1958 = vand.u32 2147483647, %v1942
        %v1959 = vand.u32 2147483647, %v1943
        %v1960 = vand.u32 2147483647, %v1944
        %v1961 = vand.u32 2147483647, %v1945
        %v1962 = vand.u32 2147483647, %v1946
        %v1963 = vand.u32 2147483647, %v1947
        %v1964 = vand.u32 2147483647, %v1948
        %v1965 = vand.u32 2147483647, %v1949
        %v1966 = vand.u32 2147483647, %v1950
        %v1967 = vstv %s1866
        %v1968 = vmul.f32 %v1967, %v1951
        %v1969 = vmul.f32 %v1967, %v1952
        %v1970 = vmul.f32 %v1967, %v1953
        %v1971 = vmul.f32 %v1967, %v1954
        %v1972 = vmul.f32 %v1967, %v1955
        %v1973 = vmul.f32 %v1967, %v1956
        %v1974 = vmul.f32 %v1967, %v1957
        %v1975 = vmul.f32 %v1967, %v1958
        %v1976 = vmul.f32 %v1967, %v1959
        %v1977 = vmul.f32 %v1967, %v1960
        %v1978 = vmul.f32 %v1967, %v1961
        %v1979 = vmul.f32 %v1967, %v1962
        %v1980 = vmul.f32 %v1967, %v1963
        %v1981 = vmul.f32 %v1967, %v1964
        %v1982 = vmul.f32 %v1967, %v1965
        %v1983 = vmul.f32 %v1967, %v1966
        %v1984 = vadd.f32 %v1850, %v1968
        %v1985 = vadd.f32 %v1851, %v1969
        %v1986 = vadd.f32 %v1852, %v1970
        %v1987 = vadd.f32 %v1853, %v1971
        %v1988 = vadd.f32 %v1854, %v1972
        %v1989 = vadd.f32 %v1855, %v1973
        %v1990 = vadd.f32 %v1856, %v1974
        %v1991 = vadd.f32 %v1857, %v1975
        %v1992 = vadd.f32 %v1858, %v1976
        %v1993 = vadd.f32 %v1859, %v1977
        %v1994 = vadd.f32 %v1860, %v1978
        %v1995 = vadd.f32 %v1861, %v1979
        %v1996 = vadd.f32 %v1862, %v1980
        %v1997 = vadd.f32 %v1863, %v1981
        %v1998 = vadd.f32 %v1864, %v1982
        %v1999 = vadd.f32 %v1865, %v1983
        %s2000 = sld [smem:[#allocation10 + $0x8]]
        %2001 = vset.pattern.permute.xlu0 40
        %2002 = vperm.xlu0 %2001, %v643
        %v2003 = vpop.permute.xlu0 %2002
        %2005 = vset.pattern.permute.xlu0 40
        %2006 = vperm.xlu0 %2005, %v646
        %v2007 = vpop.permute.xlu0 %2006
        %2009 = vset.pattern.permute.xlu0 40
        %2010 = vperm.xlu0 %2009, %v651
        %v2011 = vpop.permute.xlu0 %2010
        %2013 = vset.pattern.permute.xlu0 40
        %2014 = vperm.xlu0 %2013, %v654
        %v2015 = vpop.permute.xlu0 %2014
        %2017 = vset.pattern.permute.xlu0 40
        %2018 = vperm.xlu0 %2017, %v659
        %v2019 = vpop.permute.xlu0 %2018
        %2021 = vset.pattern.permute.xlu0 40
        %2022 = vperm.xlu0 %2021, %v662
        %v2023 = vpop.permute.xlu0 %2022
        %2025 = vset.pattern.permute.xlu0 40
        %2026 = vperm.xlu0 %2025, %v667
        %v2027 = vpop.permute.xlu0 %2026
        %2029 = vset.pattern.permute.xlu0 40
        %2030 = vperm.xlu0 %2029, %v670
        %v2031 = vpop.permute.xlu0 %2030
        %2033 = vset.pattern.permute.xlu0 40
        %2034 = vperm.xlu0 %2033, %v675
        %v2035 = vpop.permute.xlu0 %2034
        %2037 = vset.pattern.permute.xlu0 40
        %2038 = vperm.xlu0 %2037, %v678
        %v2039 = vpop.permute.xlu0 %2038
        %2041 = vset.pattern.permute.xlu0 40
        %2042 = vperm.xlu0 %2041, %v683
        %v2043 = vpop.permute.xlu0 %2042
        %2045 = vset.pattern.permute.xlu0 40
        %2046 = vperm.xlu0 %2045, %v686
        %v2047 = vpop.permute.xlu0 %2046
        %2049 = vset.pattern.permute.xlu0 40
        %2050 = vperm.xlu0 %2049, %v691
        %v2051 = vpop.permute.xlu0 %2050
        %2053 = vset.pattern.permute.xlu0 40
        %2054 = vperm.xlu0 %2053, %v694
        %v2055 = vpop.permute.xlu0 %2054
        %2057 = vset.pattern.permute.xlu0 40
        %2058 = vperm.xlu0 %2057, %v699
        %v2059 = vpop.permute.xlu0 %2058
        %2061 = vset.pattern.permute.xlu0 40
        %2062 = vperm.xlu0 %2061, %v702
        %v2063 = vpop.permute.xlu0 %2062
        %v2065 = vlaneseq
        %v2066 = vshrl.u32 %v2065, 7
        %v2067 = vsub.s32 0, %v2066
        %v2068 = vrot.slane %v794, %v2067
        %v2069 = vadd.f32 %v2003, %v2068
        %v2070 = vadd.f32 %v2007, %v2068
        %v2071 = vadd.f32 %v2011, %v2068
        %v2072 = vadd.f32 %v2015, %v2068
        %v2073 = vadd.f32 %v2019, %v2068
        %v2074 = vadd.f32 %v2023, %v2068
        %v2075 = vadd.f32 %v2027, %v2068
        %v2076 = vadd.f32 %v2031, %v2068
        %v2077 = vadd.f32 %v2035, %v2068
        %v2078 = vadd.f32 %v2039, %v2068
        %v2079 = vadd.f32 %v2043, %v2068
        %v2080 = vadd.f32 %v2047, %v2068
        %v2081 = vadd.f32 %v2051, %v2068
        %v2082 = vadd.f32 %v2055, %v2068
        %v2083 = vadd.f32 %v2059, %v2068
        %v2084 = vadd.f32 %v2063, %v2068
        %v2085 = vand.u32 2147483647, %v2069
        %v2086 = vand.u32 2147483647, %v2070
        %v2087 = vand.u32 2147483647, %v2071
        %v2088 = vand.u32 2147483647, %v2072
        %v2089 = vand.u32 2147483647, %v2073
        %v2090 = vand.u32 2147483647, %v2074
        %v2091 = vand.u32 2147483647, %v2075
        %v2092 = vand.u32 2147483647, %v2076
        %v2093 = vand.u32 2147483647, %v2077
        %v2094 = vand.u32 2147483647, %v2078
        %v2095 = vand.u32 2147483647, %v2079
        %v2096 = vand.u32 2147483647, %v2080
        %v2097 = vand.u32 2147483647, %v2081
        %v2098 = vand.u32 2147483647, %v2082
        %v2099 = vand.u32 2147483647, %v2083
        %v2100 = vand.u32 2147483647, %v2084
        %v2101 = vstv %s2000
        %v2102 = vmul.f32 %v2101, %v2085
        %v2103 = vmul.f32 %v2101, %v2086
        %v2104 = vmul.f32 %v2101, %v2087
        %v2105 = vmul.f32 %v2101, %v2088
        %v2106 = vmul.f32 %v2101, %v2089
        %v2107 = vmul.f32 %v2101, %v2090
        %v2108 = vmul.f32 %v2101, %v2091
        %v2109 = vmul.f32 %v2101, %v2092
        %v2110 = vmul.f32 %v2101, %v2093
        %v2111 = vmul.f32 %v2101, %v2094
        %v2112 = vmul.f32 %v2101, %v2095
        %v2113 = vmul.f32 %v2101, %v2096
        %v2114 = vmul.f32 %v2101, %v2097
        %v2115 = vmul.f32 %v2101, %v2098
        %v2116 = vmul.f32 %v2101, %v2099
        %v2117 = vmul.f32 %v2101, %v2100
        %v2118 = vadd.f32 %v1984, %v2102
        %v2119 = vadd.f32 %v1985, %v2103
        %v2120 = vadd.f32 %v1986, %v2104
        %v2121 = vadd.f32 %v1987, %v2105
        %v2122 = vadd.f32 %v1988, %v2106
        %v2123 = vadd.f32 %v1989, %v2107
        %v2124 = vadd.f32 %v1990, %v2108
        %v2125 = vadd.f32 %v1991, %v2109
        %v2126 = vadd.f32 %v1992, %v2110
        %v2127 = vadd.f32 %v1993, %v2111
        %v2128 = vadd.f32 %v1994, %v2112
        %v2129 = vadd.f32 %v1995, %v2113
        %v2130 = vadd.f32 %v1996, %v2114
        %v2131 = vadd.f32 %v1997, %v2115
        %v2132 = vadd.f32 %v1998, %v2116
        %v2133 = vadd.f32 %v1999, %v2117
        %s2134 = sld [smem:[#allocation10 + $0x9]]
        %2135 = vset.pattern.permute.xlu0 41
        %2136 = vperm.xlu0 %2135, %v643
        %v2137 = vpop.permute.xlu0 %2136
        %2139 = vset.pattern.permute.xlu0 41
        %2140 = vperm.xlu0 %2139, %v646
        %v2141 = vpop.permute.xlu0 %2140
        %2143 = vset.pattern.permute.xlu0 41
        %2144 = vperm.xlu0 %2143, %v651
        %v2145 = vpop.permute.xlu0 %2144
        %2147 = vset.pattern.permute.xlu0 41
        %2148 = vperm.xlu0 %2147, %v654
        %v2149 = vpop.permute.xlu0 %2148
        %2151 = vset.pattern.permute.xlu0 41
        %2152 = vperm.xlu0 %2151, %v659
        %v2153 = vpop.permute.xlu0 %2152
        %2155 = vset.pattern.permute.xlu0 41
        %2156 = vperm.xlu0 %2155, %v662
        %v2157 = vpop.permute.xlu0 %2156
        %2159 = vset.pattern.permute.xlu0 41
        %2160 = vperm.xlu0 %2159, %v667
        %v2161 = vpop.permute.xlu0 %2160
        %2163 = vset.pattern.permute.xlu0 41
        %2164 = vperm.xlu0 %2163, %v670
        %v2165 = vpop.permute.xlu0 %2164
        %2167 = vset.pattern.permute.xlu0 41
        %2168 = vperm.xlu0 %2167, %v675
        %v2169 = vpop.permute.xlu0 %2168
        %2171 = vset.pattern.permute.xlu0 41
        %2172 = vperm.xlu0 %2171, %v678
        %v2173 = vpop.permute.xlu0 %2172
        %2175 = vset.pattern.permute.xlu0 41
        %2176 = vperm.xlu0 %2175, %v683
        %v2177 = vpop.permute.xlu0 %2176
        %2179 = vset.pattern.permute.xlu0 41
        %2180 = vperm.xlu0 %2179, %v686
        %v2181 = vpop.permute.xlu0 %2180
        %2183 = vset.pattern.permute.xlu0 41
        %2184 = vperm.xlu0 %2183, %v691
        %v2185 = vpop.permute.xlu0 %2184
        %2187 = vset.pattern.permute.xlu0 41
        %2188 = vperm.xlu0 %2187, %v694
        %v2189 = vpop.permute.xlu0 %2188
        %2191 = vset.pattern.permute.xlu0 41
        %2192 = vperm.xlu0 %2191, %v699
        %v2193 = vpop.permute.xlu0 %2192
        %2195 = vset.pattern.permute.xlu0 41
        %2196 = vperm.xlu0 %2195, %v702
        %v2197 = vpop.permute.xlu0 %2196
        %v2199 = vlaneseq
        %v2200 = vshrl.u32 %v2199, 7
        %v2201 = vsub.s32 1, %v2200
        %v2202 = vrot.slane %v794, %v2201
        %v2203 = vadd.f32 %v2137, %v2202
        %v2204 = vadd.f32 %v2141, %v2202
        %v2205 = vadd.f32 %v2145, %v2202
        %v2206 = vadd.f32 %v2149, %v2202
        %v2207 = vadd.f32 %v2153, %v2202
        %v2208 = vadd.f32 %v2157, %v2202
        %v2209 = vadd.f32 %v2161, %v2202
        %v2210 = vadd.f32 %v2165, %v2202
        %v2211 = vadd.f32 %v2169, %v2202
        %v2212 = vadd.f32 %v2173, %v2202
        %v2213 = vadd.f32 %v2177, %v2202
        %v2214 = vadd.f32 %v2181, %v2202
        %v2215 = vadd.f32 %v2185, %v2202
        %v2216 = vadd.f32 %v2189, %v2202
        %v2217 = vadd.f32 %v2193, %v2202
        %v2218 = vadd.f32 %v2197, %v2202
        %v2219 = vand.u32 2147483647, %v2203
        %v2220 = vand.u32 2147483647, %v2204
        %v2221 = vand.u32 2147483647, %v2205
        %v2222 = vand.u32 2147483647, %v2206
        %v2223 = vand.u32 2147483647, %v2207
        %v2224 = vand.u32 2147483647, %v2208
        %v2225 = vand.u32 2147483647, %v2209
        %v2226 = vand.u32 2147483647, %v2210
        %v2227 = vand.u32 2147483647, %v2211
        %v2228 = vand.u32 2147483647, %v2212
        %v2229 = vand.u32 2147483647, %v2213
        %v2230 = vand.u32 2147483647, %v2214
        %v2231 = vand.u32 2147483647, %v2215
        %v2232 = vand.u32 2147483647, %v2216
        %v2233 = vand.u32 2147483647, %v2217
        %v2234 = vand.u32 2147483647, %v2218
        %v2235 = vstv %s2134
        %v2236 = vmul.f32 %v2235, %v2219
        %v2237 = vmul.f32 %v2235, %v2220
        %v2238 = vmul.f32 %v2235, %v2221
        %v2239 = vmul.f32 %v2235, %v2222
        %v2240 = vmul.f32 %v2235, %v2223
        %v2241 = vmul.f32 %v2235, %v2224
        %v2242 = vmul.f32 %v2235, %v2225
        %v2243 = vmul.f32 %v2235, %v2226
        %v2244 = vmul.f32 %v2235, %v2227
        %v2245 = vmul.f32 %v2235, %v2228
        %v2246 = vmul.f32 %v2235, %v2229
        %v2247 = vmul.f32 %v2235, %v2230
        %v2248 = vmul.f32 %v2235, %v2231
        %v2249 = vmul.f32 %v2235, %v2232
        %v2250 = vmul.f32 %v2235, %v2233
        %v2251 = vmul.f32 %v2235, %v2234
        %v2252 = vadd.f32 %v2118, %v2236
        %v2253 = vadd.f32 %v2119, %v2237
        %v2254 = vadd.f32 %v2120, %v2238
        %v2255 = vadd.f32 %v2121, %v2239
        %v2256 = vadd.f32 %v2122, %v2240
        %v2257 = vadd.f32 %v2123, %v2241
        %v2258 = vadd.f32 %v2124, %v2242
        %v2259 = vadd.f32 %v2125, %v2243
        %v2260 = vadd.f32 %v2126, %v2244
        %v2261 = vadd.f32 %v2127, %v2245
        %v2262 = vadd.f32 %v2128, %v2246
        %v2263 = vadd.f32 %v2129, %v2247
        %v2264 = vadd.f32 %v2130, %v2248
        %v2265 = vadd.f32 %v2131, %v2249
        %v2266 = vadd.f32 %v2132, %v2250
        %v2267 = vadd.f32 %v2133, %v2251
        %s2268 = sld [smem:[#allocation10 + $0xa]]
        %2269 = vset.pattern.permute.xlu0 42
        %2270 = vperm.xlu0 %2269, %v643
        %v2271 = vpop.permute.xlu0 %2270
        %2273 = vset.pattern.permute.xlu0 42
        %2274 = vperm.xlu0 %2273, %v646
        %v2275 = vpop.permute.xlu0 %2274
        %2277 = vset.pattern.permute.xlu0 42
        %2278 = vperm.xlu0 %2277, %v651
        %v2279 = vpop.permute.xlu0 %2278
        %2281 = vset.pattern.permute.xlu0 42
        %2282 = vperm.xlu0 %2281, %v654
        %v2283 = vpop.permute.xlu0 %2282
        %2285 = vset.pattern.permute.xlu0 42
        %2286 = vperm.xlu0 %2285, %v659
        %v2287 = vpop.permute.xlu0 %2286
        %2289 = vset.pattern.permute.xlu0 42
        %2290 = vperm.xlu0 %2289, %v662
        %v2291 = vpop.permute.xlu0 %2290
        %2293 = vset.pattern.permute.xlu0 42
        %2294 = vperm.xlu0 %2293, %v667
        %v2295 = vpop.permute.xlu0 %2294
        %2297 = vset.pattern.permute.xlu0 42
        %2298 = vperm.xlu0 %2297, %v670
        %v2299 = vpop.permute.xlu0 %2298
        %2301 = vset.pattern.permute.xlu0 42
        %2302 = vperm.xlu0 %2301, %v675
        %v2303 = vpop.permute.xlu0 %2302
        %2305 = vset.pattern.permute.xlu0 42
        %2306 = vperm.xlu0 %2305, %v678
        %v2307 = vpop.permute.xlu0 %2306
        %2309 = vset.pattern.permute.xlu0 42
        %2310 = vperm.xlu0 %2309, %v683
        %v2311 = vpop.permute.xlu0 %2310
        %2313 = vset.pattern.permute.xlu0 42
        %2314 = vperm.xlu0 %2313, %v686
        %v2315 = vpop.permute.xlu0 %2314
        %2317 = vset.pattern.permute.xlu0 42
        %2318 = vperm.xlu0 %2317, %v691
        %v2319 = vpop.permute.xlu0 %2318
        %2321 = vset.pattern.permute.xlu0 42
        %2322 = vperm.xlu0 %2321, %v694
        %v2323 = vpop.permute.xlu0 %2322
        %2325 = vset.pattern.permute.xlu0 42
        %2326 = vperm.xlu0 %2325, %v699
        %v2327 = vpop.permute.xlu0 %2326
        %2329 = vset.pattern.permute.xlu0 42
        %2330 = vperm.xlu0 %2329, %v702
        %v2331 = vpop.permute.xlu0 %2330
        %v2333 = vlaneseq
        %v2334 = vshrl.u32 %v2333, 7
        %v2335 = vsub.s32 2, %v2334
        %v2336 = vrot.slane %v794, %v2335
        %v2337 = vadd.f32 %v2271, %v2336
        %v2338 = vadd.f32 %v2275, %v2336
        %v2339 = vadd.f32 %v2279, %v2336
        %v2340 = vadd.f32 %v2283, %v2336
        %v2341 = vadd.f32 %v2287, %v2336
        %v2342 = vadd.f32 %v2291, %v2336
        %v2343 = vadd.f32 %v2295, %v2336
        %v2344 = vadd.f32 %v2299, %v2336
        %v2345 = vadd.f32 %v2303, %v2336
        %v2346 = vadd.f32 %v2307, %v2336
        %v2347 = vadd.f32 %v2311, %v2336
        %v2348 = vadd.f32 %v2315, %v2336
        %v2349 = vadd.f32 %v2319, %v2336
        %v2350 = vadd.f32 %v2323, %v2336
        %v2351 = vadd.f32 %v2327, %v2336
        %v2352 = vadd.f32 %v2331, %v2336
        %v2353 = vand.u32 2147483647, %v2337
        %v2354 = vand.u32 2147483647, %v2338
        %v2355 = vand.u32 2147483647, %v2339
        %v2356 = vand.u32 2147483647, %v2340
        %v2357 = vand.u32 2147483647, %v2341
        %v2358 = vand.u32 2147483647, %v2342
        %v2359 = vand.u32 2147483647, %v2343
        %v2360 = vand.u32 2147483647, %v2344
        %v2361 = vand.u32 2147483647, %v2345
        %v2362 = vand.u32 2147483647, %v2346
        %v2363 = vand.u32 2147483647, %v2347
        %v2364 = vand.u32 2147483647, %v2348
        %v2365 = vand.u32 2147483647, %v2349
        %v2366 = vand.u32 2147483647, %v2350
        %v2367 = vand.u32 2147483647, %v2351
        %v2368 = vand.u32 2147483647, %v2352
        %v2369 = vstv %s2268
        %v2370 = vmul.f32 %v2369, %v2353
        %v2371 = vmul.f32 %v2369, %v2354
        %v2372 = vmul.f32 %v2369, %v2355
        %v2373 = vmul.f32 %v2369, %v2356
        %v2374 = vmul.f32 %v2369, %v2357
        %v2375 = vmul.f32 %v2369, %v2358
        %v2376 = vmul.f32 %v2369, %v2359
        %v2377 = vmul.f32 %v2369, %v2360
        %v2378 = vmul.f32 %v2369, %v2361
        %v2379 = vmul.f32 %v2369, %v2362
        %v2380 = vmul.f32 %v2369, %v2363
        %v2381 = vmul.f32 %v2369, %v2364
        %v2382 = vmul.f32 %v2369, %v2365
        %v2383 = vmul.f32 %v2369, %v2366
        %v2384 = vmul.f32 %v2369, %v2367
        %v2385 = vmul.f32 %v2369, %v2368
        %v2386 = vadd.f32 %v2252, %v2370
        %v2387 = vadd.f32 %v2253, %v2371
        %v2388 = vadd.f32 %v2254, %v2372
        %v2389 = vadd.f32 %v2255, %v2373
        %v2390 = vadd.f32 %v2256, %v2374
        %v2391 = vadd.f32 %v2257, %v2375
        %v2392 = vadd.f32 %v2258, %v2376
        %v2393 = vadd.f32 %v2259, %v2377
        %v2394 = vadd.f32 %v2260, %v2378
        %v2395 = vadd.f32 %v2261, %v2379
        %v2396 = vadd.f32 %v2262, %v2380
        %v2397 = vadd.f32 %v2263, %v2381
        %v2398 = vadd.f32 %v2264, %v2382
        %v2399 = vadd.f32 %v2265, %v2383
        %v2400 = vadd.f32 %v2266, %v2384
        %v2401 = vadd.f32 %v2267, %v2385
        %s2402 = sld [smem:[#allocation10 + $0xb]]
        %2403 = vset.pattern.permute.xlu0 43
        %2404 = vperm.xlu0 %2403, %v643
        %v2405 = vpop.permute.xlu0 %2404
        %2407 = vset.pattern.permute.xlu0 43
        %2408 = vperm.xlu0 %2407, %v646
        %v2409 = vpop.permute.xlu0 %2408
        %2411 = vset.pattern.permute.xlu0 43
        %2412 = vperm.xlu0 %2411, %v651
        %v2413 = vpop.permute.xlu0 %2412
        %2415 = vset.pattern.permute.xlu0 43
        %2416 = vperm.xlu0 %2415, %v654
        %v2417 = vpop.permute.xlu0 %2416
        %2419 = vset.pattern.permute.xlu0 43
        %2420 = vperm.xlu0 %2419, %v659
        %v2421 = vpop.permute.xlu0 %2420
        %2423 = vset.pattern.permute.xlu0 43
        %2424 = vperm.xlu0 %2423, %v662
        %v2425 = vpop.permute.xlu0 %2424
        %2427 = vset.pattern.permute.xlu0 43
        %2428 = vperm.xlu0 %2427, %v667
        %v2429 = vpop.permute.xlu0 %2428
        %2431 = vset.pattern.permute.xlu0 43
        %2432 = vperm.xlu0 %2431, %v670
        %v2433 = vpop.permute.xlu0 %2432
        %2435 = vset.pattern.permute.xlu0 43
        %2436 = vperm.xlu0 %2435, %v675
        %v2437 = vpop.permute.xlu0 %2436
        %2439 = vset.pattern.permute.xlu0 43
        %2440 = vperm.xlu0 %2439, %v678
        %v2441 = vpop.permute.xlu0 %2440
        %2443 = vset.pattern.permute.xlu0 43
        %2444 = vperm.xlu0 %2443, %v683
        %v2445 = vpop.permute.xlu0 %2444
        %2447 = vset.pattern.permute.xlu0 43
        %2448 = vperm.xlu0 %2447, %v686
        %v2449 = vpop.permute.xlu0 %2448
        %2451 = vset.pattern.permute.xlu0 43
        %2452 = vperm.xlu0 %2451, %v691
        %v2453 = vpop.permute.xlu0 %2452
        %2455 = vset.pattern.permute.xlu0 43
        %2456 = vperm.xlu0 %2455, %v694
        %v2457 = vpop.permute.xlu0 %2456
        %2459 = vset.pattern.permute.xlu0 43
        %2460 = vperm.xlu0 %2459, %v699
        %v2461 = vpop.permute.xlu0 %2460
        %2463 = vset.pattern.permute.xlu0 43
        %2464 = vperm.xlu0 %2463, %v702
        %v2465 = vpop.permute.xlu0 %2464
        %v2467 = vlaneseq
        %v2468 = vshrl.u32 %v2467, 7
        %v2469 = vsub.s32 3, %v2468
        %v2470 = vrot.slane %v794, %v2469
        %v2471 = vadd.f32 %v2405, %v2470
        %v2472 = vadd.f32 %v2409, %v2470
        %v2473 = vadd.f32 %v2413, %v2470
        %v2474 = vadd.f32 %v2417, %v2470
        %v2475 = vadd.f32 %v2421, %v2470
        %v2476 = vadd.f32 %v2425, %v2470
        %v2477 = vadd.f32 %v2429, %v2470
        %v2478 = vadd.f32 %v2433, %v2470
        %v2479 = vadd.f32 %v2437, %v2470
        %v2480 = vadd.f32 %v2441, %v2470
        %v2481 = vadd.f32 %v2445, %v2470
        %v2482 = vadd.f32 %v2449, %v2470
        %v2483 = vadd.f32 %v2453, %v2470
        %v2484 = vadd.f32 %v2457, %v2470
        %v2485 = vadd.f32 %v2461, %v2470
        %v2486 = vadd.f32 %v2465, %v2470
        %v2487 = vand.u32 2147483647, %v2471
        %v2488 = vand.u32 2147483647, %v2472
        %v2489 = vand.u32 2147483647, %v2473
        %v2490 = vand.u32 2147483647, %v2474
        %v2491 = vand.u32 2147483647, %v2475
        %v2492 = vand.u32 2147483647, %v2476
        %v2493 = vand.u32 2147483647, %v2477
        %v2494 = vand.u32 2147483647, %v2478
        %v2495 = vand.u32 2147483647, %v2479
        %v2496 = vand.u32 2147483647, %v2480
        %v2497 = vand.u32 2147483647, %v2481
        %v2498 = vand.u32 2147483647, %v2482
        %v2499 = vand.u32 2147483647, %v2483
        %v2500 = vand.u32 2147483647, %v2484
        %v2501 = vand.u32 2147483647, %v2485
        %v2502 = vand.u32 2147483647, %v2486
        %v2503 = vstv %s2402
        %v2504 = vmul.f32 %v2503, %v2487
        %v2505 = vmul.f32 %v2503, %v2488
        %v2506 = vmul.f32 %v2503, %v2489
        %v2507 = vmul.f32 %v2503, %v2490
        %v2508 = vmul.f32 %v2503, %v2491
        %v2509 = vmul.f32 %v2503, %v2492
        %v2510 = vmul.f32 %v2503, %v2493
        %v2511 = vmul.f32 %v2503, %v2494
        %v2512 = vmul.f32 %v2503, %v2495
        %v2513 = vmul.f32 %v2503, %v2496
        %v2514 = vmul.f32 %v2503, %v2497
        %v2515 = vmul.f32 %v2503, %v2498
        %v2516 = vmul.f32 %v2503, %v2499
        %v2517 = vmul.f32 %v2503, %v2500
        %v2518 = vmul.f32 %v2503, %v2501
        %v2519 = vmul.f32 %v2503, %v2502
        %v2520 = vadd.f32 %v2386, %v2504
        %v2521 = vadd.f32 %v2387, %v2505
        %v2522 = vadd.f32 %v2388, %v2506
        %v2523 = vadd.f32 %v2389, %v2507
        %v2524 = vadd.f32 %v2390, %v2508
        %v2525 = vadd.f32 %v2391, %v2509
        %v2526 = vadd.f32 %v2392, %v2510
        %v2527 = vadd.f32 %v2393, %v2511
        %v2528 = vadd.f32 %v2394, %v2512
        %v2529 = vadd.f32 %v2395, %v2513
        %v2530 = vadd.f32 %v2396, %v2514
        %v2531 = vadd.f32 %v2397, %v2515
        %v2532 = vadd.f32 %v2398, %v2516
        %v2533 = vadd.f32 %v2399, %v2517
        %v2534 = vadd.f32 %v2400, %v2518
        %v2535 = vadd.f32 %v2401, %v2519
        %s2536 = sld [smem:[#allocation10 + $0xc]]
        %2537 = vset.pattern.permute.xlu0 44
        %2538 = vperm.xlu0 %2537, %v643
        %v2539 = vpop.permute.xlu0 %2538
        %2541 = vset.pattern.permute.xlu0 44
        %2542 = vperm.xlu0 %2541, %v646
        %v2543 = vpop.permute.xlu0 %2542
        %2545 = vset.pattern.permute.xlu0 44
        %2546 = vperm.xlu0 %2545, %v651
        %v2547 = vpop.permute.xlu0 %2546
        %2549 = vset.pattern.permute.xlu0 44
        %2550 = vperm.xlu0 %2549, %v654
        %v2551 = vpop.permute.xlu0 %2550
        %2553 = vset.pattern.permute.xlu0 44
        %2554 = vperm.xlu0 %2553, %v659
        %v2555 = vpop.permute.xlu0 %2554
        %2557 = vset.pattern.permute.xlu0 44
        %2558 = vperm.xlu0 %2557, %v662
        %v2559 = vpop.permute.xlu0 %2558
        %2561 = vset.pattern.permute.xlu0 44
        %2562 = vperm.xlu0 %2561, %v667
        %v2563 = vpop.permute.xlu0 %2562
        %2565 = vset.pattern.permute.xlu0 44
        %2566 = vperm.xlu0 %2565, %v670
        %v2567 = vpop.permute.xlu0 %2566
        %2569 = vset.pattern.permute.xlu0 44
        %2570 = vperm.xlu0 %2569, %v675
        %v2571 = vpop.permute.xlu0 %2570
        %2573 = vset.pattern.permute.xlu0 44
        %2574 = vperm.xlu0 %2573, %v678
        %v2575 = vpop.permute.xlu0 %2574
        %2577 = vset.pattern.permute.xlu0 44
        %2578 = vperm.xlu0 %2577, %v683
        %v2579 = vpop.permute.xlu0 %2578
        %2581 = vset.pattern.permute.xlu0 44
        %2582 = vperm.xlu0 %2581, %v686
        %v2583 = vpop.permute.xlu0 %2582
        %2585 = vset.pattern.permute.xlu0 44
        %2586 = vperm.xlu0 %2585, %v691
        %v2587 = vpop.permute.xlu0 %2586
        %2589 = vset.pattern.permute.xlu0 44
        %2590 = vperm.xlu0 %2589, %v694
        %v2591 = vpop.permute.xlu0 %2590
        %2593 = vset.pattern.permute.xlu0 44
        %2594 = vperm.xlu0 %2593, %v699
        %v2595 = vpop.permute.xlu0 %2594
        %2597 = vset.pattern.permute.xlu0 44
        %2598 = vperm.xlu0 %2597, %v702
        %v2599 = vpop.permute.xlu0 %2598
        %v2601 = vlaneseq
        %v2602 = vshrl.u32 %v2601, 7
        %v2603 = vsub.s32 4, %v2602
        %v2604 = vrot.slane %v794, %v2603
        %v2605 = vadd.f32 %v2539, %v2604
        %v2606 = vadd.f32 %v2543, %v2604
        %v2607 = vadd.f32 %v2547, %v2604
        %v2608 = vadd.f32 %v2551, %v2604
        %v2609 = vadd.f32 %v2555, %v2604
        %v2610 = vadd.f32 %v2559, %v2604
        %v2611 = vadd.f32 %v2563, %v2604
        %v2612 = vadd.f32 %v2567, %v2604
        %v2613 = vadd.f32 %v2571, %v2604
        %v2614 = vadd.f32 %v2575, %v2604
        %v2615 = vadd.f32 %v2579, %v2604
        %v2616 = vadd.f32 %v2583, %v2604
        %v2617 = vadd.f32 %v2587, %v2604
        %v2618 = vadd.f32 %v2591, %v2604
        %v2619 = vadd.f32 %v2595, %v2604
        %v2620 = vadd.f32 %v2599, %v2604
        %v2621 = vand.u32 2147483647, %v2605
        %v2622 = vand.u32 2147483647, %v2606
        %v2623 = vand.u32 2147483647, %v2607
        %v2624 = vand.u32 2147483647, %v2608
        %v2625 = vand.u32 2147483647, %v2609
        %v2626 = vand.u32 2147483647, %v2610
        %v2627 = vand.u32 2147483647, %v2611
        %v2628 = vand.u32 2147483647, %v2612
        %v2629 = vand.u32 2147483647, %v2613
        %v2630 = vand.u32 2147483647, %v2614
        %v2631 = vand.u32 2147483647, %v2615
        %v2632 = vand.u32 2147483647, %v2616
        %v2633 = vand.u32 2147483647, %v2617
        %v2634 = vand.u32 2147483647, %v2618
        %v2635 = vand.u32 2147483647, %v2619
        %v2636 = vand.u32 2147483647, %v2620
        %v2637 = vstv %s2536
        %v2638 = vmul.f32 %v2637, %v2621
        %v2639 = vmul.f32 %v2637, %v2622
        %v2640 = vmul.f32 %v2637, %v2623
        %v2641 = vmul.f32 %v2637, %v2624
        %v2642 = vmul.f32 %v2637, %v2625
        %v2643 = vmul.f32 %v2637, %v2626
        %v2644 = vmul.f32 %v2637, %v2627
        %v2645 = vmul.f32 %v2637, %v2628
        %v2646 = vmul.f32 %v2637, %v2629
        %v2647 = vmul.f32 %v2637, %v2630
        %v2648 = vmul.f32 %v2637, %v2631
        %v2649 = vmul.f32 %v2637, %v2632
        %v2650 = vmul.f32 %v2637, %v2633
        %v2651 = vmul.f32 %v2637, %v2634
        %v2652 = vmul.f32 %v2637, %v2635
        %v2653 = vmul.f32 %v2637, %v2636
        %v2654 = vadd.f32 %v2520, %v2638
        %v2655 = vadd.f32 %v2521, %v2639
        %v2656 = vadd.f32 %v2522, %v2640
        %v2657 = vadd.f32 %v2523, %v2641
        %v2658 = vadd.f32 %v2524, %v2642
        %v2659 = vadd.f32 %v2525, %v2643
        %v2660 = vadd.f32 %v2526, %v2644
        %v2661 = vadd.f32 %v2527, %v2645
        %v2662 = vadd.f32 %v2528, %v2646
        %v2663 = vadd.f32 %v2529, %v2647
        %v2664 = vadd.f32 %v2530, %v2648
        %v2665 = vadd.f32 %v2531, %v2649
        %v2666 = vadd.f32 %v2532, %v2650
        %v2667 = vadd.f32 %v2533, %v2651
        %v2668 = vadd.f32 %v2534, %v2652
        %v2669 = vadd.f32 %v2535, %v2653
        %s2670 = sld [smem:[#allocation10 + $0xd]]
        %2671 = vset.pattern.permute.xlu0 45
        %2672 = vperm.xlu0 %2671, %v643
        %v2673 = vpop.permute.xlu0 %2672
        %2675 = vset.pattern.permute.xlu0 45
        %2676 = vperm.xlu0 %2675, %v646
        %v2677 = vpop.permute.xlu0 %2676
        %2679 = vset.pattern.permute.xlu0 45
        %2680 = vperm.xlu0 %2679, %v651
        %v2681 = vpop.permute.xlu0 %2680
        %2683 = vset.pattern.permute.xlu0 45
        %2684 = vperm.xlu0 %2683, %v654
        %v2685 = vpop.permute.xlu0 %2684
        %2687 = vset.pattern.permute.xlu0 45
        %2688 = vperm.xlu0 %2687, %v659
        %v2689 = vpop.permute.xlu0 %2688
        %2691 = vset.pattern.permute.xlu0 45
        %2692 = vperm.xlu0 %2691, %v662
        %v2693 = vpop.permute.xlu0 %2692
        %2695 = vset.pattern.permute.xlu0 45
        %2696 = vperm.xlu0 %2695, %v667
        %v2697 = vpop.permute.xlu0 %2696
        %2699 = vset.pattern.permute.xlu0 45
        %2700 = vperm.xlu0 %2699, %v670
        %v2701 = vpop.permute.xlu0 %2700
        %2703 = vset.pattern.permute.xlu0 45
        %2704 = vperm.xlu0 %2703, %v675
        %v2705 = vpop.permute.xlu0 %2704
        %2707 = vset.pattern.permute.xlu0 45
        %2708 = vperm.xlu0 %2707, %v678
        %v2709 = vpop.permute.xlu0 %2708
        %2711 = vset.pattern.permute.xlu0 45
        %2712 = vperm.xlu0 %2711, %v683
        %v2713 = vpop.permute.xlu0 %2712
        %2715 = vset.pattern.permute.xlu0 45
        %2716 = vperm.xlu0 %2715, %v686
        %v2717 = vpop.permute.xlu0 %2716
        %2719 = vset.pattern.permute.xlu0 45
        %2720 = vperm.xlu0 %2719, %v691
        %v2721 = vpop.permute.xlu0 %2720
        %2723 = vset.pattern.permute.xlu0 45
        %2724 = vperm.xlu0 %2723, %v694
        %v2725 = vpop.permute.xlu0 %2724
        %2727 = vset.pattern.permute.xlu0 45
        %2728 = vperm.xlu0 %2727, %v699
        %v2729 = vpop.permute.xlu0 %2728
        %2731 = vset.pattern.permute.xlu0 45
        %2732 = vperm.xlu0 %2731, %v702
        %v2733 = vpop.permute.xlu0 %2732
        %v2735 = vlaneseq
        %v2736 = vshrl.u32 %v2735, 7
        %v2737 = vsub.s32 5, %v2736
        %v2738 = vrot.slane %v794, %v2737
        %v2739 = vadd.f32 %v2673, %v2738
        %v2740 = vadd.f32 %v2677, %v2738
        %v2741 = vadd.f32 %v2681, %v2738
        %v2742 = vadd.f32 %v2685, %v2738
        %v2743 = vadd.f32 %v2689, %v2738
        %v2744 = vadd.f32 %v2693, %v2738
        %v2745 = vadd.f32 %v2697, %v2738
        %v2746 = vadd.f32 %v2701, %v2738
        %v2747 = vadd.f32 %v2705, %v2738
        %v2748 = vadd.f32 %v2709, %v2738
        %v2749 = vadd.f32 %v2713, %v2738
        %v2750 = vadd.f32 %v2717, %v2738
        %v2751 = vadd.f32 %v2721, %v2738
        %v2752 = vadd.f32 %v2725, %v2738
        %v2753 = vadd.f32 %v2729, %v2738
        %v2754 = vadd.f32 %v2733, %v2738
        %v2755 = vand.u32 2147483647, %v2739
        %v2756 = vand.u32 2147483647, %v2740
        %v2757 = vand.u32 2147483647, %v2741
        %v2758 = vand.u32 2147483647, %v2742
        %v2759 = vand.u32 2147483647, %v2743
        %v2760 = vand.u32 2147483647, %v2744
        %v2761 = vand.u32 2147483647, %v2745
        %v2762 = vand.u32 2147483647, %v2746
        %v2763 = vand.u32 2147483647, %v2747
        %v2764 = vand.u32 2147483647, %v2748
        %v2765 = vand.u32 2147483647, %v2749
        %v2766 = vand.u32 2147483647, %v2750
        %v2767 = vand.u32 2147483647, %v2751
        %v2768 = vand.u32 2147483647, %v2752
        %v2769 = vand.u32 2147483647, %v2753
        %v2770 = vand.u32 2147483647, %v2754
        %v2771 = vstv %s2670
        %v2772 = vmul.f32 %v2771, %v2755
        %v2773 = vmul.f32 %v2771, %v2756
        %v2774 = vmul.f32 %v2771, %v2757
        %v2775 = vmul.f32 %v2771, %v2758
        %v2776 = vmul.f32 %v2771, %v2759
        %v2777 = vmul.f32 %v2771, %v2760
        %v2778 = vmul.f32 %v2771, %v2761
        %v2779 = vmul.f32 %v2771, %v2762
        %v2780 = vmul.f32 %v2771, %v2763
        %v2781 = vmul.f32 %v2771, %v2764
        %v2782 = vmul.f32 %v2771, %v2765
        %v2783 = vmul.f32 %v2771, %v2766
        %v2784 = vmul.f32 %v2771, %v2767
        %v2785 = vmul.f32 %v2771, %v2768
        %v2786 = vmul.f32 %v2771, %v2769
        %v2787 = vmul.f32 %v2771, %v2770
        %v2788 = vadd.f32 %v2654, %v2772
        %v2789 = vadd.f32 %v2655, %v2773
        %v2790 = vadd.f32 %v2656, %v2774
        %v2791 = vadd.f32 %v2657, %v2775
        %v2792 = vadd.f32 %v2658, %v2776
        %v2793 = vadd.f32 %v2659, %v2777
        %v2794 = vadd.f32 %v2660, %v2778
        %v2795 = vadd.f32 %v2661, %v2779
        %v2796 = vadd.f32 %v2662, %v2780
        %v2797 = vadd.f32 %v2663, %v2781
        %v2798 = vadd.f32 %v2664, %v2782
        %v2799 = vadd.f32 %v2665, %v2783
        %v2800 = vadd.f32 %v2666, %v2784
        %v2801 = vadd.f32 %v2667, %v2785
        %v2802 = vadd.f32 %v2668, %v2786
        %v2803 = vadd.f32 %v2669, %v2787
        %s2804 = sld [smem:[#allocation10 + $0xe]]
        %2805 = vset.pattern.permute.xlu0 46
        %2806 = vperm.xlu0 %2805, %v643
        %v2807 = vpop.permute.xlu0 %2806
        %2809 = vset.pattern.permute.xlu0 46
        %2810 = vperm.xlu0 %2809, %v646
        %v2811 = vpop.permute.xlu0 %2810
        %2813 = vset.pattern.permute.xlu0 46
        %2814 = vperm.xlu0 %2813, %v651
        %v2815 = vpop.permute.xlu0 %2814
        %2817 = vset.pattern.permute.xlu0 46
        %2818 = vperm.xlu0 %2817, %v654
        %v2819 = vpop.permute.xlu0 %2818
        %2821 = vset.pattern.permute.xlu0 46
        %2822 = vperm.xlu0 %2821, %v659
        %v2823 = vpop.permute.xlu0 %2822
        %2825 = vset.pattern.permute.xlu0 46
        %2826 = vperm.xlu0 %2825, %v662
        %v2827 = vpop.permute.xlu0 %2826
        %2829 = vset.pattern.permute.xlu0 46
        %2830 = vperm.xlu0 %2829, %v667
        %v2831 = vpop.permute.xlu0 %2830
        %2833 = vset.pattern.permute.xlu0 46
        %2834 = vperm.xlu0 %2833, %v670
        %v2835 = vpop.permute.xlu0 %2834
        %2837 = vset.pattern.permute.xlu0 46
        %2838 = vperm.xlu0 %2837, %v675
        %v2839 = vpop.permute.xlu0 %2838
        %2841 = vset.pattern.permute.xlu0 46
        %2842 = vperm.xlu0 %2841, %v678
        %v2843 = vpop.permute.xlu0 %2842
        %2845 = vset.pattern.permute.xlu0 46
        %2846 = vperm.xlu0 %2845, %v683
        %v2847 = vpop.permute.xlu0 %2846
        %2849 = vset.pattern.permute.xlu0 46
        %2850 = vperm.xlu0 %2849, %v686
        %v2851 = vpop.permute.xlu0 %2850
        %2853 = vset.pattern.permute.xlu0 46
        %2854 = vperm.xlu0 %2853, %v691
        %v2855 = vpop.permute.xlu0 %2854
        %2857 = vset.pattern.permute.xlu0 46
        %2858 = vperm.xlu0 %2857, %v694
        %v2859 = vpop.permute.xlu0 %2858
        %2861 = vset.pattern.permute.xlu0 46
        %2862 = vperm.xlu0 %2861, %v699
        %v2863 = vpop.permute.xlu0 %2862
        %2865 = vset.pattern.permute.xlu0 46
        %2866 = vperm.xlu0 %2865, %v702
        %v2867 = vpop.permute.xlu0 %2866
        %v2869 = vlaneseq
        %v2870 = vshrl.u32 %v2869, 7
        %v2871 = vsub.s32 6, %v2870
        %v2872 = vrot.slane %v794, %v2871
        %v2873 = vadd.f32 %v2807, %v2872
        %v2874 = vadd.f32 %v2811, %v2872
        %v2875 = vadd.f32 %v2815, %v2872
        %v2876 = vadd.f32 %v2819, %v2872
        %v2877 = vadd.f32 %v2823, %v2872
        %v2878 = vadd.f32 %v2827, %v2872
        %v2879 = vadd.f32 %v2831, %v2872
        %v2880 = vadd.f32 %v2835, %v2872
        %v2881 = vadd.f32 %v2839, %v2872
        %v2882 = vadd.f32 %v2843, %v2872
        %v2883 = vadd.f32 %v2847, %v2872
        %v2884 = vadd.f32 %v2851, %v2872
        %v2885 = vadd.f32 %v2855, %v2872
        %v2886 = vadd.f32 %v2859, %v2872
        %v2887 = vadd.f32 %v2863, %v2872
        %v2888 = vadd.f32 %v2867, %v2872
        %v2889 = vand.u32 2147483647, %v2873
        %v2890 = vand.u32 2147483647, %v2874
        %v2891 = vand.u32 2147483647, %v2875
        %v2892 = vand.u32 2147483647, %v2876
        %v2893 = vand.u32 2147483647, %v2877
        %v2894 = vand.u32 2147483647, %v2878
        %v2895 = vand.u32 2147483647, %v2879
        %v2896 = vand.u32 2147483647, %v2880
        %v2897 = vand.u32 2147483647, %v2881
        %v2898 = vand.u32 2147483647, %v2882
        %v2899 = vand.u32 2147483647, %v2883
        %v2900 = vand.u32 2147483647, %v2884
        %v2901 = vand.u32 2147483647, %v2885
        %v2902 = vand.u32 2147483647, %v2886
        %v2903 = vand.u32 2147483647, %v2887
        %v2904 = vand.u32 2147483647, %v2888
        %v2905 = vstv %s2804
        %v2906 = vmul.f32 %v2905, %v2889
        %v2907 = vmul.f32 %v2905, %v2890
        %v2908 = vmul.f32 %v2905, %v2891
        %v2909 = vmul.f32 %v2905, %v2892
        %v2910 = vmul.f32 %v2905, %v2893
        %v2911 = vmul.f32 %v2905, %v2894
        %v2912 = vmul.f32 %v2905, %v2895
        %v2913 = vmul.f32 %v2905, %v2896
        %v2914 = vmul.f32 %v2905, %v2897
        %v2915 = vmul.f32 %v2905, %v2898
        %v2916 = vmul.f32 %v2905, %v2899
        %v2917 = vmul.f32 %v2905, %v2900
        %v2918 = vmul.f32 %v2905, %v2901
        %v2919 = vmul.f32 %v2905, %v2902
        %v2920 = vmul.f32 %v2905, %v2903
        %v2921 = vmul.f32 %v2905, %v2904
        %v2922 = vadd.f32 %v2788, %v2906
        %v2923 = vadd.f32 %v2789, %v2907
        %v2924 = vadd.f32 %v2790, %v2908
        %v2925 = vadd.f32 %v2791, %v2909
        %v2926 = vadd.f32 %v2792, %v2910
        %v2927 = vadd.f32 %v2793, %v2911
        %v2928 = vadd.f32 %v2794, %v2912
        %v2929 = vadd.f32 %v2795, %v2913
        %v2930 = vadd.f32 %v2796, %v2914
        %v2931 = vadd.f32 %v2797, %v2915
        %v2932 = vadd.f32 %v2798, %v2916
        %v2933 = vadd.f32 %v2799, %v2917
        %v2934 = vadd.f32 %v2800, %v2918
        %v2935 = vadd.f32 %v2801, %v2919
        %v2936 = vadd.f32 %v2802, %v2920
        %v2937 = vadd.f32 %v2803, %v2921
        %s2938 = sld [smem:[#allocation10 + $0xf]]
        %2939 = vset.pattern.permute.xlu0 47
        %2940 = vperm.xlu0 %2939, %v643
        %v2941 = vpop.permute.xlu0 %2940
        %2943 = vset.pattern.permute.xlu0 47
        %2944 = vperm.xlu0 %2943, %v646
        %v2945 = vpop.permute.xlu0 %2944
        %2947 = vset.pattern.permute.xlu0 47
        %2948 = vperm.xlu0 %2947, %v651
        %v2949 = vpop.permute.xlu0 %2948
        %2951 = vset.pattern.permute.xlu0 47
        %2952 = vperm.xlu0 %2951, %v654
        %v2953 = vpop.permute.xlu0 %2952
        %2955 = vset.pattern.permute.xlu0 47
        %2956 = vperm.xlu0 %2955, %v659
        %v2957 = vpop.permute.xlu0 %2956
        %2959 = vset.pattern.permute.xlu0 47
        %2960 = vperm.xlu0 %2959, %v662
        %v2961 = vpop.permute.xlu0 %2960
        %2963 = vset.pattern.permute.xlu0 47
        %2964 = vperm.xlu0 %2963, %v667
        %v2965 = vpop.permute.xlu0 %2964
        %2967 = vset.pattern.permute.xlu0 47
        %2968 = vperm.xlu0 %2967, %v670
        %v2969 = vpop.permute.xlu0 %2968
        %2971 = vset.pattern.permute.xlu0 47
        %2972 = vperm.xlu0 %2971, %v675
        %v2973 = vpop.permute.xlu0 %2972
        %2975 = vset.pattern.permute.xlu0 47
        %2976 = vperm.xlu0 %2975, %v678
        %v2977 = vpop.permute.xlu0 %2976
        %2979 = vset.pattern.permute.xlu0 47
        %2980 = vperm.xlu0 %2979, %v683
        %v2981 = vpop.permute.xlu0 %2980
        %2983 = vset.pattern.permute.xlu0 47
        %2984 = vperm.xlu0 %2983, %v686
        %v2985 = vpop.permute.xlu0 %2984
        %2987 = vset.pattern.permute.xlu0 47
        %2988 = vperm.xlu0 %2987, %v691
        %v2989 = vpop.permute.xlu0 %2988
        %2991 = vset.pattern.permute.xlu0 47
        %2992 = vperm.xlu0 %2991, %v694
        %v2993 = vpop.permute.xlu0 %2992
        %2995 = vset.pattern.permute.xlu0 47
        %2996 = vperm.xlu0 %2995, %v699
        %v2997 = vpop.permute.xlu0 %2996
        %2999 = vset.pattern.permute.xlu0 47
        %3000 = vperm.xlu0 %2999, %v702
        %v3001 = vpop.permute.xlu0 %3000
        %v3003 = vlaneseq
        %v3004 = vshrl.u32 %v3003, 7
        %v3005 = vsub.s32 7, %v3004
        %v3006 = vrot.slane %v794, %v3005
        %v3007 = vadd.f32 %v2941, %v3006
        %v3008 = vadd.f32 %v2945, %v3006
        %v3009 = vadd.f32 %v2949, %v3006
        %v3010 = vadd.f32 %v2953, %v3006
        %v3011 = vadd.f32 %v2957, %v3006
        %v3012 = vadd.f32 %v2961, %v3006
        %v3013 = vadd.f32 %v2965, %v3006
        %v3014 = vadd.f32 %v2969, %v3006
        %v3015 = vadd.f32 %v2973, %v3006
        %v3016 = vadd.f32 %v2977, %v3006
        %v3017 = vadd.f32 %v2981, %v3006
        %v3018 = vadd.f32 %v2985, %v3006
        %v3019 = vadd.f32 %v2989, %v3006
        %v3020 = vadd.f32 %v2993, %v3006
        %v3021 = vadd.f32 %v2997, %v3006
        %v3022 = vadd.f32 %v3001, %v3006
        %v3023 = vand.u32 2147483647, %v3007
        %v3024 = vand.u32 2147483647, %v3008
        %v3025 = vand.u32 2147483647, %v3009
        %v3026 = vand.u32 2147483647, %v3010
        %v3027 = vand.u32 2147483647, %v3011
        %v3028 = vand.u32 2147483647, %v3012
        %v3029 = vand.u32 2147483647, %v3013
        %v3030 = vand.u32 2147483647, %v3014
        %v3031 = vand.u32 2147483647, %v3015
        %v3032 = vand.u32 2147483647, %v3016
        %v3033 = vand.u32 2147483647, %v3017
        %v3034 = vand.u32 2147483647, %v3018
        %v3035 = vand.u32 2147483647, %v3019
        %v3036 = vand.u32 2147483647, %v3020
        %v3037 = vand.u32 2147483647, %v3021
        %v3038 = vand.u32 2147483647, %v3022
        %v3039 = vstv %s2938
        %v3040 = vmul.f32 %v3039, %v3023
        %v3041 = vmul.f32 %v3039, %v3024
        %v3042 = vmul.f32 %v3039, %v3025
        %v3043 = vmul.f32 %v3039, %v3026
        %v3044 = vmul.f32 %v3039, %v3027
        %v3045 = vmul.f32 %v3039, %v3028
        %v3046 = vmul.f32 %v3039, %v3029
        %v3047 = vmul.f32 %v3039, %v3030
        %v3048 = vmul.f32 %v3039, %v3031
        %v3049 = vmul.f32 %v3039, %v3032
        %v3050 = vmul.f32 %v3039, %v3033
        %v3051 = vmul.f32 %v3039, %v3034
        %v3052 = vmul.f32 %v3039, %v3035
        %v3053 = vmul.f32 %v3039, %v3036
        %v3054 = vmul.f32 %v3039, %v3037
        %v3055 = vmul.f32 %v3039, %v3038
        %v3056 = vadd.f32 %v2922, %v3040
        %v3057 = vadd.f32 %v2923, %v3041
        %v3058 = vadd.f32 %v2924, %v3042
        %v3059 = vadd.f32 %v2925, %v3043
        %v3060 = vadd.f32 %v2926, %v3044
        %v3061 = vadd.f32 %v2927, %v3045
        %v3062 = vadd.f32 %v2928, %v3046
        %v3063 = vadd.f32 %v2929, %v3047
        %v3064 = vadd.f32 %v2930, %v3048
        %v3065 = vadd.f32 %v2931, %v3049
        %v3066 = vadd.f32 %v2932, %v3050
        %v3067 = vadd.f32 %v2933, %v3051
        %v3068 = vadd.f32 %v2934, %v3052
        %v3069 = vadd.f32 %v2935, %v3053
        %v3070 = vadd.f32 %v2936, %v3054
        %v3071 = vadd.f32 %v2937, %v3055
        %s3072 = sld [smem:[#allocation10 + $0x10]]
        %3073 = vset.pattern.permute.xlu0 48
        %3074 = vperm.xlu0 %3073, %v643
        %v3075 = vpop.permute.xlu0 %3074
        %3077 = vset.pattern.permute.xlu0 48
        %3078 = vperm.xlu0 %3077, %v646
        %v3079 = vpop.permute.xlu0 %3078
        %3081 = vset.pattern.permute.xlu0 48
        %3082 = vperm.xlu0 %3081, %v651
        %v3083 = vpop.permute.xlu0 %3082
        %3085 = vset.pattern.permute.xlu0 48
        %3086 = vperm.xlu0 %3085, %v654
        %v3087 = vpop.permute.xlu0 %3086
        %3089 = vset.pattern.permute.xlu0 48
        %3090 = vperm.xlu0 %3089, %v659
        %v3091 = vpop.permute.xlu0 %3090
        %3093 = vset.pattern.permute.xlu0 48
        %3094 = vperm.xlu0 %3093, %v662
        %v3095 = vpop.permute.xlu0 %3094
        %3097 = vset.pattern.permute.xlu0 48
        %3098 = vperm.xlu0 %3097, %v667
        %v3099 = vpop.permute.xlu0 %3098
        %3101 = vset.pattern.permute.xlu0 48
        %3102 = vperm.xlu0 %3101, %v670
        %v3103 = vpop.permute.xlu0 %3102
        %3105 = vset.pattern.permute.xlu0 48
        %3106 = vperm.xlu0 %3105, %v675
        %v3107 = vpop.permute.xlu0 %3106
        %3109 = vset.pattern.permute.xlu0 48
        %3110 = vperm.xlu0 %3109, %v678
        %v3111 = vpop.permute.xlu0 %3110
        %3113 = vset.pattern.permute.xlu0 48
        %3114 = vperm.xlu0 %3113, %v683
        %v3115 = vpop.permute.xlu0 %3114
        %3117 = vset.pattern.permute.xlu0 48
        %3118 = vperm.xlu0 %3117, %v686
        %v3119 = vpop.permute.xlu0 %3118
        %3121 = vset.pattern.permute.xlu0 48
        %3122 = vperm.xlu0 %3121, %v691
        %v3123 = vpop.permute.xlu0 %3122
        %3125 = vset.pattern.permute.xlu0 48
        %3126 = vperm.xlu0 %3125, %v694
        %v3127 = vpop.permute.xlu0 %3126
        %3129 = vset.pattern.permute.xlu0 48
        %3130 = vperm.xlu0 %3129, %v699
        %v3131 = vpop.permute.xlu0 %3130
        %3133 = vset.pattern.permute.xlu0 48
        %3134 = vperm.xlu0 %3133, %v702
        %v3135 = vpop.permute.xlu0 %3134
        %v3137 = vlaneseq
        %v3138 = vshrl.u32 %v3137, 7
        %v3139 = vsub.s32 0, %v3138
        %v3140 = vrot.slane %v799, %v3139
        %v3141 = vadd.f32 %v3075, %v3140
        %v3142 = vadd.f32 %v3079, %v3140
        %v3143 = vadd.f32 %v3083, %v3140
        %v3144 = vadd.f32 %v3087, %v3140
        %v3145 = vadd.f32 %v3091, %v3140
        %v3146 = vadd.f32 %v3095, %v3140
        %v3147 = vadd.f32 %v3099, %v3140
        %v3148 = vadd.f32 %v3103, %v3140
        %v3149 = vadd.f32 %v3107, %v3140
        %v3150 = vadd.f32 %v3111, %v3140
        %v3151 = vadd.f32 %v3115, %v3140
        %v3152 = vadd.f32 %v3119, %v3140
        %v3153 = vadd.f32 %v3123, %v3140
        %v3154 = vadd.f32 %v3127, %v3140
        %v3155 = vadd.f32 %v3131, %v3140
        %v3156 = vadd.f32 %v3135, %v3140
        %v3157 = vand.u32 2147483647, %v3141
        %v3158 = vand.u32 2147483647, %v3142
        %v3159 = vand.u32 2147483647, %v3143
        %v3160 = vand.u32 2147483647, %v3144
        %v3161 = vand.u32 2147483647, %v3145
        %v3162 = vand.u32 2147483647, %v3146
        %v3163 = vand.u32 2147483647, %v3147
        %v3164 = vand.u32 2147483647, %v3148
        %v3165 = vand.u32 2147483647, %v3149
        %v3166 = vand.u32 2147483647, %v3150
        %v3167 = vand.u32 2147483647, %v3151
        %v3168 = vand.u32 2147483647, %v3152
        %v3169 = vand.u32 2147483647, %v3153
        %v3170 = vand.u32 2147483647, %v3154
        %v3171 = vand.u32 2147483647, %v3155
        %v3172 = vand.u32 2147483647, %v3156
        %v3173 = vstv %s3072
        %v3174 = vmul.f32 %v3173, %v3157
        %v3175 = vmul.f32 %v3173, %v3158
        %v3176 = vmul.f32 %v3173, %v3159
        %v3177 = vmul.f32 %v3173, %v3160
        %v3178 = vmul.f32 %v3173, %v3161
        %v3179 = vmul.f32 %v3173, %v3162
        %v3180 = vmul.f32 %v3173, %v3163
        %v3181 = vmul.f32 %v3173, %v3164
        %v3182 = vmul.f32 %v3173, %v3165
        %v3183 = vmul.f32 %v3173, %v3166
        %v3184 = vmul.f32 %v3173, %v3167
        %v3185 = vmul.f32 %v3173, %v3168
        %v3186 = vmul.f32 %v3173, %v3169
        %v3187 = vmul.f32 %v3173, %v3170
        %v3188 = vmul.f32 %v3173, %v3171
        %v3189 = vmul.f32 %v3173, %v3172
        %v3190 = vadd.f32 %v3056, %v3174
        %v3191 = vadd.f32 %v3057, %v3175
        %v3192 = vadd.f32 %v3058, %v3176
        %v3193 = vadd.f32 %v3059, %v3177
        %v3194 = vadd.f32 %v3060, %v3178
        %v3195 = vadd.f32 %v3061, %v3179
        %v3196 = vadd.f32 %v3062, %v3180
        %v3197 = vadd.f32 %v3063, %v3181
        %v3198 = vadd.f32 %v3064, %v3182
        %v3199 = vadd.f32 %v3065, %v3183
        %v3200 = vadd.f32 %v3066, %v3184
        %v3201 = vadd.f32 %v3067, %v3185
        %v3202 = vadd.f32 %v3068, %v3186
        %v3203 = vadd.f32 %v3069, %v3187
        %v3204 = vadd.f32 %v3070, %v3188
        %v3205 = vadd.f32 %v3071, %v3189
        %s3206 = sld [smem:[#allocation10 + $0x11]]
        %3207 = vset.pattern.permute.xlu0 49
        %3208 = vperm.xlu0 %3207, %v643
        %v3209 = vpop.permute.xlu0 %3208
        %3211 = vset.pattern.permute.xlu0 49
        %3212 = vperm.xlu0 %3211, %v646
        %v3213 = vpop.permute.xlu0 %3212
        %3215 = vset.pattern.permute.xlu0 49
        %3216 = vperm.xlu0 %3215, %v651
        %v3217 = vpop.permute.xlu0 %3216
        %3219 = vset.pattern.permute.xlu0 49
        %3220 = vperm.xlu0 %3219, %v654
        %v3221 = vpop.permute.xlu0 %3220
        %3223 = vset.pattern.permute.xlu0 49
        %3224 = vperm.xlu0 %3223, %v659
        %v3225 = vpop.permute.xlu0 %3224
        %3227 = vset.pattern.permute.xlu0 49
        %3228 = vperm.xlu0 %3227, %v662
        %v3229 = vpop.permute.xlu0 %3228
        %3231 = vset.pattern.permute.xlu0 49
        %3232 = vperm.xlu0 %3231, %v667
        %v3233 = vpop.permute.xlu0 %3232
        %3235 = vset.pattern.permute.xlu0 49
        %3236 = vperm.xlu0 %3235, %v670
        %v3237 = vpop.permute.xlu0 %3236
        %3239 = vset.pattern.permute.xlu0 49
        %3240 = vperm.xlu0 %3239, %v675
        %v3241 = vpop.permute.xlu0 %3240
        %3243 = vset.pattern.permute.xlu0 49
        %3244 = vperm.xlu0 %3243, %v678
        %v3245 = vpop.permute.xlu0 %3244
        %3247 = vset.pattern.permute.xlu0 49
        %3248 = vperm.xlu0 %3247, %v683
        %v3249 = vpop.permute.xlu0 %3248
        %3251 = vset.pattern.permute.xlu0 49
        %3252 = vperm.xlu0 %3251, %v686
        %v3253 = vpop.permute.xlu0 %3252
        %3255 = vset.pattern.permute.xlu0 49
        %3256 = vperm.xlu0 %3255, %v691
        %v3257 = vpop.permute.xlu0 %3256
        %3259 = vset.pattern.permute.xlu0 49
        %3260 = vperm.xlu0 %3259, %v694
        %v3261 = vpop.permute.xlu0 %3260
        %3263 = vset.pattern.permute.xlu0 49
        %3264 = vperm.xlu0 %3263, %v699
        %v3265 = vpop.permute.xlu0 %3264
        %3267 = vset.pattern.permute.xlu0 49
        %3268 = vperm.xlu0 %3267, %v702
        %v3269 = vpop.permute.xlu0 %3268
        %v3271 = vlaneseq
        %v3272 = vshrl.u32 %v3271, 7
        %v3273 = vsub.s32 1, %v3272
        %v3274 = vrot.slane %v799, %v3273
        %v3275 = vadd.f32 %v3209, %v3274
        %v3276 = vadd.f32 %v3213, %v3274
        %v3277 = vadd.f32 %v3217, %v3274
        %v3278 = vadd.f32 %v3221, %v3274
        %v3279 = vadd.f32 %v3225, %v3274
        %v3280 = vadd.f32 %v3229, %v3274
        %v3281 = vadd.f32 %v3233, %v3274
        %v3282 = vadd.f32 %v3237, %v3274
        %v3283 = vadd.f32 %v3241, %v3274
        %v3284 = vadd.f32 %v3245, %v3274
        %v3285 = vadd.f32 %v3249, %v3274
        %v3286 = vadd.f32 %v3253, %v3274
        %v3287 = vadd.f32 %v3257, %v3274
        %v3288 = vadd.f32 %v3261, %v3274
        %v3289 = vadd.f32 %v3265, %v3274
        %v3290 = vadd.f32 %v3269, %v3274
        %v3291 = vand.u32 2147483647, %v3275
        %v3292 = vand.u32 2147483647, %v3276
        %v3293 = vand.u32 2147483647, %v3277
        %v3294 = vand.u32 2147483647, %v3278
        %v3295 = vand.u32 2147483647, %v3279
        %v3296 = vand.u32 2147483647, %v3280
        %v3297 = vand.u32 2147483647, %v3281
        %v3298 = vand.u32 2147483647, %v3282
        %v3299 = vand.u32 2147483647, %v3283
        %v3300 = vand.u32 2147483647, %v3284
        %v3301 = vand.u32 2147483647, %v3285
        %v3302 = vand.u32 2147483647, %v3286
        %v3303 = vand.u32 2147483647, %v3287
        %v3304 = vand.u32 2147483647, %v3288
        %v3305 = vand.u32 2147483647, %v3289
        %v3306 = vand.u32 2147483647, %v3290
        %v3307 = vstv %s3206
        %v3308 = vmul.f32 %v3307, %v3291
        %v3309 = vmul.f32 %v3307, %v3292
        %v3310 = vmul.f32 %v3307, %v3293
        %v3311 = vmul.f32 %v3307, %v3294
        %v3312 = vmul.f32 %v3307, %v3295
        %v3313 = vmul.f32 %v3307, %v3296
        %v3314 = vmul.f32 %v3307, %v3297
        %v3315 = vmul.f32 %v3307, %v3298
        %v3316 = vmul.f32 %v3307, %v3299
        %v3317 = vmul.f32 %v3307, %v3300
        %v3318 = vmul.f32 %v3307, %v3301
        %v3319 = vmul.f32 %v3307, %v3302
        %v3320 = vmul.f32 %v3307, %v3303
        %v3321 = vmul.f32 %v3307, %v3304
        %v3322 = vmul.f32 %v3307, %v3305
        %v3323 = vmul.f32 %v3307, %v3306
        %v3324 = vadd.f32 %v3190, %v3308
        %v3325 = vadd.f32 %v3191, %v3309
        %v3326 = vadd.f32 %v3192, %v3310
        %v3327 = vadd.f32 %v3193, %v3311
        %v3328 = vadd.f32 %v3194, %v3312
        %v3329 = vadd.f32 %v3195, %v3313
        %v3330 = vadd.f32 %v3196, %v3314
        %v3331 = vadd.f32 %v3197, %v3315
        %v3332 = vadd.f32 %v3198, %v3316
        %v3333 = vadd.f32 %v3199, %v3317
        %v3334 = vadd.f32 %v3200, %v3318
        %v3335 = vadd.f32 %v3201, %v3319
        %v3336 = vadd.f32 %v3202, %v3320
        %v3337 = vadd.f32 %v3203, %v3321
        %v3338 = vadd.f32 %v3204, %v3322
        %v3339 = vadd.f32 %v3205, %v3323
        %s3340 = sld [smem:[#allocation10 + $0x12]]
        %3341 = vset.pattern.permute.xlu0 50
        %3342 = vperm.xlu0 %3341, %v643
        %v3343 = vpop.permute.xlu0 %3342
        %3345 = vset.pattern.permute.xlu0 50
        %3346 = vperm.xlu0 %3345, %v646
        %v3347 = vpop.permute.xlu0 %3346
        %3349 = vset.pattern.permute.xlu0 50
        %3350 = vperm.xlu0 %3349, %v651
        %v3351 = vpop.permute.xlu0 %3350
        %3353 = vset.pattern.permute.xlu0 50
        %3354 = vperm.xlu0 %3353, %v654
        %v3355 = vpop.permute.xlu0 %3354
        %3357 = vset.pattern.permute.xlu0 50
        %3358 = vperm.xlu0 %3357, %v659
        %v3359 = vpop.permute.xlu0 %3358
        %3361 = vset.pattern.permute.xlu0 50
        %3362 = vperm.xlu0 %3361, %v662
        %v3363 = vpop.permute.xlu0 %3362
        %3365 = vset.pattern.permute.xlu0 50
        %3366 = vperm.xlu0 %3365, %v667
        %v3367 = vpop.permute.xlu0 %3366
        %3369 = vset.pattern.permute.xlu0 50
        %3370 = vperm.xlu0 %3369, %v670
        %v3371 = vpop.permute.xlu0 %3370
        %3373 = vset.pattern.permute.xlu0 50
        %3374 = vperm.xlu0 %3373, %v675
        %v3375 = vpop.permute.xlu0 %3374
        %3377 = vset.pattern.permute.xlu0 50
        %3378 = vperm.xlu0 %3377, %v678
        %v3379 = vpop.permute.xlu0 %3378
        %3381 = vset.pattern.permute.xlu0 50
        %3382 = vperm.xlu0 %3381, %v683
        %v3383 = vpop.permute.xlu0 %3382
        %3385 = vset.pattern.permute.xlu0 50
        %3386 = vperm.xlu0 %3385, %v686
        %v3387 = vpop.permute.xlu0 %3386
        %3389 = vset.pattern.permute.xlu0 50
        %3390 = vperm.xlu0 %3389, %v691
        %v3391 = vpop.permute.xlu0 %3390
        %3393 = vset.pattern.permute.xlu0 50
        %3394 = vperm.xlu0 %3393, %v694
        %v3395 = vpop.permute.xlu0 %3394
        %3397 = vset.pattern.permute.xlu0 50
        %3398 = vperm.xlu0 %3397, %v699
        %v3399 = vpop.permute.xlu0 %3398
        %3401 = vset.pattern.permute.xlu0 50
        %3402 = vperm.xlu0 %3401, %v702
        %v3403 = vpop.permute.xlu0 %3402
        %v3405 = vlaneseq
        %v3406 = vshrl.u32 %v3405, 7
        %v3407 = vsub.s32 2, %v3406
        %v3408 = vrot.slane %v799, %v3407
        %v3409 = vadd.f32 %v3343, %v3408
        %v3410 = vadd.f32 %v3347, %v3408
        %v3411 = vadd.f32 %v3351, %v3408
        %v3412 = vadd.f32 %v3355, %v3408
        %v3413 = vadd.f32 %v3359, %v3408
        %v3414 = vadd.f32 %v3363, %v3408
        %v3415 = vadd.f32 %v3367, %v3408
        %v3416 = vadd.f32 %v3371, %v3408
        %v3417 = vadd.f32 %v3375, %v3408
        %v3418 = vadd.f32 %v3379, %v3408
        %v3419 = vadd.f32 %v3383, %v3408
        %v3420 = vadd.f32 %v3387, %v3408
        %v3421 = vadd.f32 %v3391, %v3408
        %v3422 = vadd.f32 %v3395, %v3408
        %v3423 = vadd.f32 %v3399, %v3408
        %v3424 = vadd.f32 %v3403, %v3408
        %v3425 = vand.u32 2147483647, %v3409
        %v3426 = vand.u32 2147483647, %v3410
        %v3427 = vand.u32 2147483647, %v3411
        %v3428 = vand.u32 2147483647, %v3412
        %v3429 = vand.u32 2147483647, %v3413
        %v3430 = vand.u32 2147483647, %v3414
        %v3431 = vand.u32 2147483647, %v3415
        %v3432 = vand.u32 2147483647, %v3416
        %v3433 = vand.u32 2147483647, %v3417
        %v3434 = vand.u32 2147483647, %v3418
        %v3435 = vand.u32 2147483647, %v3419
        %v3436 = vand.u32 2147483647, %v3420
        %v3437 = vand.u32 2147483647, %v3421
        %v3438 = vand.u32 2147483647, %v3422
        %v3439 = vand.u32 2147483647, %v3423
        %v3440 = vand.u32 2147483647, %v3424
        %v3441 = vstv %s3340
        %v3442 = vmul.f32 %v3441, %v3425
        %v3443 = vmul.f32 %v3441, %v3426
        %v3444 = vmul.f32 %v3441, %v3427
        %v3445 = vmul.f32 %v3441, %v3428
        %v3446 = vmul.f32 %v3441, %v3429
        %v3447 = vmul.f32 %v3441, %v3430
        %v3448 = vmul.f32 %v3441, %v3431
        %v3449 = vmul.f32 %v3441, %v3432
        %v3450 = vmul.f32 %v3441, %v3433
        %v3451 = vmul.f32 %v3441, %v3434
        %v3452 = vmul.f32 %v3441, %v3435
        %v3453 = vmul.f32 %v3441, %v3436
        %v3454 = vmul.f32 %v3441, %v3437
        %v3455 = vmul.f32 %v3441, %v3438
        %v3456 = vmul.f32 %v3441, %v3439
        %v3457 = vmul.f32 %v3441, %v3440
        %v3458 = vadd.f32 %v3324, %v3442
        %v3459 = vadd.f32 %v3325, %v3443
        %v3460 = vadd.f32 %v3326, %v3444
        %v3461 = vadd.f32 %v3327, %v3445
        %v3462 = vadd.f32 %v3328, %v3446
        %v3463 = vadd.f32 %v3329, %v3447
        %v3464 = vadd.f32 %v3330, %v3448
        %v3465 = vadd.f32 %v3331, %v3449
        %v3466 = vadd.f32 %v3332, %v3450
        %v3467 = vadd.f32 %v3333, %v3451
        %v3468 = vadd.f32 %v3334, %v3452
        %v3469 = vadd.f32 %v3335, %v3453
        %v3470 = vadd.f32 %v3336, %v3454
        %v3471 = vadd.f32 %v3337, %v3455
        %v3472 = vadd.f32 %v3338, %v3456
        %v3473 = vadd.f32 %v3339, %v3457
        %s3474 = sld [smem:[#allocation10 + $0x13]]
        %3475 = vset.pattern.permute.xlu0 51
        %3476 = vperm.xlu0 %3475, %v643
        %v3477 = vpop.permute.xlu0 %3476
        %3479 = vset.pattern.permute.xlu0 51
        %3480 = vperm.xlu0 %3479, %v646
        %v3481 = vpop.permute.xlu0 %3480
        %3483 = vset.pattern.permute.xlu0 51
        %3484 = vperm.xlu0 %3483, %v651
        %v3485 = vpop.permute.xlu0 %3484
        %3487 = vset.pattern.permute.xlu0 51
        %3488 = vperm.xlu0 %3487, %v654
        %v3489 = vpop.permute.xlu0 %3488
        %3491 = vset.pattern.permute.xlu0 51
        %3492 = vperm.xlu0 %3491, %v659
        %v3493 = vpop.permute.xlu0 %3492
        %3495 = vset.pattern.permute.xlu0 51
        %3496 = vperm.xlu0 %3495, %v662
        %v3497 = vpop.permute.xlu0 %3496
        %3499 = vset.pattern.permute.xlu0 51
        %3500 = vperm.xlu0 %3499, %v667
        %v3501 = vpop.permute.xlu0 %3500
        %3503 = vset.pattern.permute.xlu0 51
        %3504 = vperm.xlu0 %3503, %v670
        %v3505 = vpop.permute.xlu0 %3504
        %3507 = vset.pattern.permute.xlu0 51
        %3508 = vperm.xlu0 %3507, %v675
        %v3509 = vpop.permute.xlu0 %3508
        %3511 = vset.pattern.permute.xlu0 51
        %3512 = vperm.xlu0 %3511, %v678
        %v3513 = vpop.permute.xlu0 %3512
        %3515 = vset.pattern.permute.xlu0 51
        %3516 = vperm.xlu0 %3515, %v683
        %v3517 = vpop.permute.xlu0 %3516
        %3519 = vset.pattern.permute.xlu0 51
        %3520 = vperm.xlu0 %3519, %v686
        %v3521 = vpop.permute.xlu0 %3520
        %3523 = vset.pattern.permute.xlu0 51
        %3524 = vperm.xlu0 %3523, %v691
        %v3525 = vpop.permute.xlu0 %3524
        %3527 = vset.pattern.permute.xlu0 51
        %3528 = vperm.xlu0 %3527, %v694
        %v3529 = vpop.permute.xlu0 %3528
        %3531 = vset.pattern.permute.xlu0 51
        %3532 = vperm.xlu0 %3531, %v699
        %v3533 = vpop.permute.xlu0 %3532
        %3535 = vset.pattern.permute.xlu0 51
        %3536 = vperm.xlu0 %3535, %v702
        %v3537 = vpop.permute.xlu0 %3536
        %v3539 = vlaneseq
        %v3540 = vshrl.u32 %v3539, 7
        %v3541 = vsub.s32 3, %v3540
        %v3542 = vrot.slane %v799, %v3541
        %v3543 = vadd.f32 %v3477, %v3542
        %v3544 = vadd.f32 %v3481, %v3542
        %v3545 = vadd.f32 %v3485, %v3542
        %v3546 = vadd.f32 %v3489, %v3542
        %v3547 = vadd.f32 %v3493, %v3542
        %v3548 = vadd.f32 %v3497, %v3542
        %v3549 = vadd.f32 %v3501, %v3542
        %v3550 = vadd.f32 %v3505, %v3542
        %v3551 = vadd.f32 %v3509, %v3542
        %v3552 = vadd.f32 %v3513, %v3542
        %v3553 = vadd.f32 %v3517, %v3542
        %v3554 = vadd.f32 %v3521, %v3542
        %v3555 = vadd.f32 %v3525, %v3542
        %v3556 = vadd.f32 %v3529, %v3542
        %v3557 = vadd.f32 %v3533, %v3542
        %v3558 = vadd.f32 %v3537, %v3542
        %v3559 = vand.u32 2147483647, %v3543
        %v3560 = vand.u32 2147483647, %v3544
        %v3561 = vand.u32 2147483647, %v3545
        %v3562 = vand.u32 2147483647, %v3546
        %v3563 = vand.u32 2147483647, %v3547
        %v3564 = vand.u32 2147483647, %v3548
        %v3565 = vand.u32 2147483647, %v3549
        %v3566 = vand.u32 2147483647, %v3550
        %v3567 = vand.u32 2147483647, %v3551
        %v3568 = vand.u32 2147483647, %v3552
        %v3569 = vand.u32 2147483647, %v3553
        %v3570 = vand.u32 2147483647, %v3554
        %v3571 = vand.u32 2147483647, %v3555
        %v3572 = vand.u32 2147483647, %v3556
        %v3573 = vand.u32 2147483647, %v3557
        %v3574 = vand.u32 2147483647, %v3558
        %v3575 = vstv %s3474
        %v3576 = vmul.f32 %v3575, %v3559
        %v3577 = vmul.f32 %v3575, %v3560
        %v3578 = vmul.f32 %v3575, %v3561
        %v3579 = vmul.f32 %v3575, %v3562
        %v3580 = vmul.f32 %v3575, %v3563
        %v3581 = vmul.f32 %v3575, %v3564
        %v3582 = vmul.f32 %v3575, %v3565
        %v3583 = vmul.f32 %v3575, %v3566
        %v3584 = vmul.f32 %v3575, %v3567
        %v3585 = vmul.f32 %v3575, %v3568
        %v3586 = vmul.f32 %v3575, %v3569
        %v3587 = vmul.f32 %v3575, %v3570
        %v3588 = vmul.f32 %v3575, %v3571
        %v3589 = vmul.f32 %v3575, %v3572
        %v3590 = vmul.f32 %v3575, %v3573
        %v3591 = vmul.f32 %v3575, %v3574
        %v3592 = vadd.f32 %v3458, %v3576
        %v3593 = vadd.f32 %v3459, %v3577
        %v3594 = vadd.f32 %v3460, %v3578
        %v3595 = vadd.f32 %v3461, %v3579
        %v3596 = vadd.f32 %v3462, %v3580
        %v3597 = vadd.f32 %v3463, %v3581
        %v3598 = vadd.f32 %v3464, %v3582
        %v3599 = vadd.f32 %v3465, %v3583
        %v3600 = vadd.f32 %v3466, %v3584
        %v3601 = vadd.f32 %v3467, %v3585
        %v3602 = vadd.f32 %v3468, %v3586
        %v3603 = vadd.f32 %v3469, %v3587
        %v3604 = vadd.f32 %v3470, %v3588
        %v3605 = vadd.f32 %v3471, %v3589
        %v3606 = vadd.f32 %v3472, %v3590
        %v3607 = vadd.f32 %v3473, %v3591
        %s3608 = sld [smem:[#allocation10 + $0x14]]
        %3609 = vset.pattern.permute.xlu0 52
        %3610 = vperm.xlu0 %3609, %v643
        %v3611 = vpop.permute.xlu0 %3610
        %3613 = vset.pattern.permute.xlu0 52
        %3614 = vperm.xlu0 %3613, %v646
        %v3615 = vpop.permute.xlu0 %3614
        %3617 = vset.pattern.permute.xlu0 52
        %3618 = vperm.xlu0 %3617, %v651
        %v3619 = vpop.permute.xlu0 %3618
        %3621 = vset.pattern.permute.xlu0 52
        %3622 = vperm.xlu0 %3621, %v654
        %v3623 = vpop.permute.xlu0 %3622
        %3625 = vset.pattern.permute.xlu0 52
        %3626 = vperm.xlu0 %3625, %v659
        %v3627 = vpop.permute.xlu0 %3626
        %3629 = vset.pattern.permute.xlu0 52
        %3630 = vperm.xlu0 %3629, %v662
        %v3631 = vpop.permute.xlu0 %3630
        %3633 = vset.pattern.permute.xlu0 52
        %3634 = vperm.xlu0 %3633, %v667
        %v3635 = vpop.permute.xlu0 %3634
        %3637 = vset.pattern.permute.xlu0 52
        %3638 = vperm.xlu0 %3637, %v670
        %v3639 = vpop.permute.xlu0 %3638
        %3641 = vset.pattern.permute.xlu0 52
        %3642 = vperm.xlu0 %3641, %v675
        %v3643 = vpop.permute.xlu0 %3642
        %3645 = vset.pattern.permute.xlu0 52
        %3646 = vperm.xlu0 %3645, %v678
        %v3647 = vpop.permute.xlu0 %3646
        %3649 = vset.pattern.permute.xlu0 52
        %3650 = vperm.xlu0 %3649, %v683
        %v3651 = vpop.permute.xlu0 %3650
        %3653 = vset.pattern.permute.xlu0 52
        %3654 = vperm.xlu0 %3653, %v686
        %v3655 = vpop.permute.xlu0 %3654
        %3657 = vset.pattern.permute.xlu0 52
        %3658 = vperm.xlu0 %3657, %v691
        %v3659 = vpop.permute.xlu0 %3658
        %3661 = vset.pattern.permute.xlu0 52
        %3662 = vperm.xlu0 %3661, %v694
        %v3663 = vpop.permute.xlu0 %3662
        %3665 = vset.pattern.permute.xlu0 52
        %3666 = vperm.xlu0 %3665, %v699
        %v3667 = vpop.permute.xlu0 %3666
        %3669 = vset.pattern.permute.xlu0 52
        %3670 = vperm.xlu0 %3669, %v702
        %v3671 = vpop.permute.xlu0 %3670
        %v3673 = vlaneseq
        %v3674 = vshrl.u32 %v3673, 7
        %v3675 = vsub.s32 4, %v3674
        %v3676 = vrot.slane %v799, %v3675
        %v3677 = vadd.f32 %v3611, %v3676
        %v3678 = vadd.f32 %v3615, %v3676
        %v3679 = vadd.f32 %v3619, %v3676
        %v3680 = vadd.f32 %v3623, %v3676
        %v3681 = vadd.f32 %v3627, %v3676
        %v3682 = vadd.f32 %v3631, %v3676
        %v3683 = vadd.f32 %v3635, %v3676
        %v3684 = vadd.f32 %v3639, %v3676
        %v3685 = vadd.f32 %v3643, %v3676
        %v3686 = vadd.f32 %v3647, %v3676
        %v3687 = vadd.f32 %v3651, %v3676
        %v3688 = vadd.f32 %v3655, %v3676
        %v3689 = vadd.f32 %v3659, %v3676
        %v3690 = vadd.f32 %v3663, %v3676
        %v3691 = vadd.f32 %v3667, %v3676
        %v3692 = vadd.f32 %v3671, %v3676
        %v3693 = vand.u32 2147483647, %v3677
        %v3694 = vand.u32 2147483647, %v3678
        %v3695 = vand.u32 2147483647, %v3679
        %v3696 = vand.u32 2147483647, %v3680
        %v3697 = vand.u32 2147483647, %v3681
        %v3698 = vand.u32 2147483647, %v3682
        %v3699 = vand.u32 2147483647, %v3683
        %v3700 = vand.u32 2147483647, %v3684
        %v3701 = vand.u32 2147483647, %v3685
        %v3702 = vand.u32 2147483647, %v3686
        %v3703 = vand.u32 2147483647, %v3687
        %v3704 = vand.u32 2147483647, %v3688
        %v3705 = vand.u32 2147483647, %v3689
        %v3706 = vand.u32 2147483647, %v3690
        %v3707 = vand.u32 2147483647, %v3691
        %v3708 = vand.u32 2147483647, %v3692
        %v3709 = vstv %s3608
        %v3710 = vmul.f32 %v3709, %v3693
        %v3711 = vmul.f32 %v3709, %v3694
        %v3712 = vmul.f32 %v3709, %v3695
        %v3713 = vmul.f32 %v3709, %v3696
        %v3714 = vmul.f32 %v3709, %v3697
        %v3715 = vmul.f32 %v3709, %v3698
        %v3716 = vmul.f32 %v3709, %v3699
        %v3717 = vmul.f32 %v3709, %v3700
        %v3718 = vmul.f32 %v3709, %v3701
        %v3719 = vmul.f32 %v3709, %v3702
        %v3720 = vmul.f32 %v3709, %v3703
        %v3721 = vmul.f32 %v3709, %v3704
        %v3722 = vmul.f32 %v3709, %v3705
        %v3723 = vmul.f32 %v3709, %v3706
        %v3724 = vmul.f32 %v3709, %v3707
        %v3725 = vmul.f32 %v3709, %v3708
        %v3726 = vadd.f32 %v3592, %v3710
        %v3727 = vadd.f32 %v3593, %v3711
        %v3728 = vadd.f32 %v3594, %v3712
        %v3729 = vadd.f32 %v3595, %v3713
        %v3730 = vadd.f32 %v3596, %v3714
        %v3731 = vadd.f32 %v3597, %v3715
        %v3732 = vadd.f32 %v3598, %v3716
        %v3733 = vadd.f32 %v3599, %v3717
        %v3734 = vadd.f32 %v3600, %v3718
        %v3735 = vadd.f32 %v3601, %v3719
        %v3736 = vadd.f32 %v3602, %v3720
        %v3737 = vadd.f32 %v3603, %v3721
        %v3738 = vadd.f32 %v3604, %v3722
        %v3739 = vadd.f32 %v3605, %v3723
        %v3740 = vadd.f32 %v3606, %v3724
        %v3741 = vadd.f32 %v3607, %v3725
        %s3742 = sld [smem:[#allocation10 + $0x15]]
        %3743 = vset.pattern.permute.xlu0 53
        %3744 = vperm.xlu0 %3743, %v643
        %v3745 = vpop.permute.xlu0 %3744
        %3747 = vset.pattern.permute.xlu0 53
        %3748 = vperm.xlu0 %3747, %v646
        %v3749 = vpop.permute.xlu0 %3748
        %3751 = vset.pattern.permute.xlu0 53
        %3752 = vperm.xlu0 %3751, %v651
        %v3753 = vpop.permute.xlu0 %3752
        %3755 = vset.pattern.permute.xlu0 53
        %3756 = vperm.xlu0 %3755, %v654
        %v3757 = vpop.permute.xlu0 %3756
        %3759 = vset.pattern.permute.xlu0 53
        %3760 = vperm.xlu0 %3759, %v659
        %v3761 = vpop.permute.xlu0 %3760
        %3763 = vset.pattern.permute.xlu0 53
        %3764 = vperm.xlu0 %3763, %v662
        %v3765 = vpop.permute.xlu0 %3764
        %3767 = vset.pattern.permute.xlu0 53
        %3768 = vperm.xlu0 %3767, %v667
        %v3769 = vpop.permute.xlu0 %3768
        %3771 = vset.pattern.permute.xlu0 53
        %3772 = vperm.xlu0 %3771, %v670
        %v3773 = vpop.permute.xlu0 %3772
        %3775 = vset.pattern.permute.xlu0 53
        %3776 = vperm.xlu0 %3775, %v675
        %v3777 = vpop.permute.xlu0 %3776
        %3779 = vset.pattern.permute.xlu0 53
        %3780 = vperm.xlu0 %3779, %v678
        %v3781 = vpop.permute.xlu0 %3780
        %3783 = vset.pattern.permute.xlu0 53
        %3784 = vperm.xlu0 %3783, %v683
        %v3785 = vpop.permute.xlu0 %3784
        %3787 = vset.pattern.permute.xlu0 53
        %3788 = vperm.xlu0 %3787, %v686
        %v3789 = vpop.permute.xlu0 %3788
        %3791 = vset.pattern.permute.xlu0 53
        %3792 = vperm.xlu0 %3791, %v691
        %v3793 = vpop.permute.xlu0 %3792
        %3795 = vset.pattern.permute.xlu0 53
        %3796 = vperm.xlu0 %3795, %v694
        %v3797 = vpop.permute.xlu0 %3796
        %3799 = vset.pattern.permute.xlu0 53
        %3800 = vperm.xlu0 %3799, %v699
        %v3801 = vpop.permute.xlu0 %3800
        %3803 = vset.pattern.permute.xlu0 53
        %3804 = vperm.xlu0 %3803, %v702
        %v3805 = vpop.permute.xlu0 %3804
        %v3807 = vlaneseq
        %v3808 = vshrl.u32 %v3807, 7
        %v3809 = vsub.s32 5, %v3808
        %v3810 = vrot.slane %v799, %v3809
        %v3811 = vadd.f32 %v3745, %v3810
        %v3812 = vadd.f32 %v3749, %v3810
        %v3813 = vadd.f32 %v3753, %v3810
        %v3814 = vadd.f32 %v3757, %v3810
        %v3815 = vadd.f32 %v3761, %v3810
        %v3816 = vadd.f32 %v3765, %v3810
        %v3817 = vadd.f32 %v3769, %v3810
        %v3818 = vadd.f32 %v3773, %v3810
        %v3819 = vadd.f32 %v3777, %v3810
        %v3820 = vadd.f32 %v3781, %v3810
        %v3821 = vadd.f32 %v3785, %v3810
        %v3822 = vadd.f32 %v3789, %v3810
        %v3823 = vadd.f32 %v3793, %v3810
        %v3824 = vadd.f32 %v3797, %v3810
        %v3825 = vadd.f32 %v3801, %v3810
        %v3826 = vadd.f32 %v3805, %v3810
        %v3827 = vand.u32 2147483647, %v3811
        %v3828 = vand.u32 2147483647, %v3812
        %v3829 = vand.u32 2147483647, %v3813
        %v3830 = vand.u32 2147483647, %v3814
        %v3831 = vand.u32 2147483647, %v3815
        %v3832 = vand.u32 2147483647, %v3816
        %v3833 = vand.u32 2147483647, %v3817
        %v3834 = vand.u32 2147483647, %v3818
        %v3835 = vand.u32 2147483647, %v3819
        %v3836 = vand.u32 2147483647, %v3820
        %v3837 = vand.u32 2147483647, %v3821
        %v3838 = vand.u32 2147483647, %v3822
        %v3839 = vand.u32 2147483647, %v3823
        %v3840 = vand.u32 2147483647, %v3824
        %v3841 = vand.u32 2147483647, %v3825
        %v3842 = vand.u32 2147483647, %v3826
        %v3843 = vstv %s3742
        %v3844 = vmul.f32 %v3843, %v3827
        %v3845 = vmul.f32 %v3843, %v3828
        %v3846 = vmul.f32 %v3843, %v3829
        %v3847 = vmul.f32 %v3843, %v3830
        %v3848 = vmul.f32 %v3843, %v3831
        %v3849 = vmul.f32 %v3843, %v3832
        %v3850 = vmul.f32 %v3843, %v3833
        %v3851 = vmul.f32 %v3843, %v3834
        %v3852 = vmul.f32 %v3843, %v3835
        %v3853 = vmul.f32 %v3843, %v3836
        %v3854 = vmul.f32 %v3843, %v3837
        %v3855 = vmul.f32 %v3843, %v3838
        %v3856 = vmul.f32 %v3843, %v3839
        %v3857 = vmul.f32 %v3843, %v3840
        %v3858 = vmul.f32 %v3843, %v3841
        %v3859 = vmul.f32 %v3843, %v3842
        %v3860 = vadd.f32 %v3726, %v3844
        %v3861 = vadd.f32 %v3727, %v3845
        %v3862 = vadd.f32 %v3728, %v3846
        %v3863 = vadd.f32 %v3729, %v3847
        %v3864 = vadd.f32 %v3730, %v3848
        %v3865 = vadd.f32 %v3731, %v3849
        %v3866 = vadd.f32 %v3732, %v3850
        %v3867 = vadd.f32 %v3733, %v3851
        %v3868 = vadd.f32 %v3734, %v3852
        %v3869 = vadd.f32 %v3735, %v3853
        %v3870 = vadd.f32 %v3736, %v3854
        %v3871 = vadd.f32 %v3737, %v3855
        %v3872 = vadd.f32 %v3738, %v3856
        %v3873 = vadd.f32 %v3739, %v3857
        %v3874 = vadd.f32 %v3740, %v3858
        %v3875 = vadd.f32 %v3741, %v3859
        %s3876 = sld [smem:[#allocation10 + $0x16]]
        %3877 = vset.pattern.permute.xlu0 54
        %3878 = vperm.xlu0 %3877, %v643
        %v3879 = vpop.permute.xlu0 %3878
        %3881 = vset.pattern.permute.xlu0 54
        %3882 = vperm.xlu0 %3881, %v646
        %v3883 = vpop.permute.xlu0 %3882
        %3885 = vset.pattern.permute.xlu0 54
        %3886 = vperm.xlu0 %3885, %v651
        %v3887 = vpop.permute.xlu0 %3886
        %3889 = vset.pattern.permute.xlu0 54
        %3890 = vperm.xlu0 %3889, %v654
        %v3891 = vpop.permute.xlu0 %3890
        %3893 = vset.pattern.permute.xlu0 54
        %3894 = vperm.xlu0 %3893, %v659
        %v3895 = vpop.permute.xlu0 %3894
        %3897 = vset.pattern.permute.xlu0 54
        %3898 = vperm.xlu0 %3897, %v662
        %v3899 = vpop.permute.xlu0 %3898
        %3901 = vset.pattern.permute.xlu0 54
        %3902 = vperm.xlu0 %3901, %v667
        %v3903 = vpop.permute.xlu0 %3902
        %3905 = vset.pattern.permute.xlu0 54
        %3906 = vperm.xlu0 %3905, %v670
        %v3907 = vpop.permute.xlu0 %3906
        %3909 = vset.pattern.permute.xlu0 54
        %3910 = vperm.xlu0 %3909, %v675
        %v3911 = vpop.permute.xlu0 %3910
        %3913 = vset.pattern.permute.xlu0 54
        %3914 = vperm.xlu0 %3913, %v678
        %v3915 = vpop.permute.xlu0 %3914
        %3917 = vset.pattern.permute.xlu0 54
        %3918 = vperm.xlu0 %3917, %v683
        %v3919 = vpop.permute.xlu0 %3918
        %3921 = vset.pattern.permute.xlu0 54
        %3922 = vperm.xlu0 %3921, %v686
        %v3923 = vpop.permute.xlu0 %3922
        %3925 = vset.pattern.permute.xlu0 54
        %3926 = vperm.xlu0 %3925, %v691
        %v3927 = vpop.permute.xlu0 %3926
        %3929 = vset.pattern.permute.xlu0 54
        %3930 = vperm.xlu0 %3929, %v694
        %v3931 = vpop.permute.xlu0 %3930
        %3933 = vset.pattern.permute.xlu0 54
        %3934 = vperm.xlu0 %3933, %v699
        %v3935 = vpop.permute.xlu0 %3934
        %3937 = vset.pattern.permute.xlu0 54
        %3938 = vperm.xlu0 %3937, %v702
        %v3939 = vpop.permute.xlu0 %3938
        %v3941 = vlaneseq
        %v3942 = vshrl.u32 %v3941, 7
        %v3943 = vsub.s32 6, %v3942
        %v3944 = vrot.slane %v799, %v3943
        %v3945 = vadd.f32 %v3879, %v3944
        %v3946 = vadd.f32 %v3883, %v3944
        %v3947 = vadd.f32 %v3887, %v3944
        %v3948 = vadd.f32 %v3891, %v3944
        %v3949 = vadd.f32 %v3895, %v3944
        %v3950 = vadd.f32 %v3899, %v3944
        %v3951 = vadd.f32 %v3903, %v3944
        %v3952 = vadd.f32 %v3907, %v3944
        %v3953 = vadd.f32 %v3911, %v3944
        %v3954 = vadd.f32 %v3915, %v3944
        %v3955 = vadd.f32 %v3919, %v3944
        %v3956 = vadd.f32 %v3923, %v3944
        %v3957 = vadd.f32 %v3927, %v3944
        %v3958 = vadd.f32 %v3931, %v3944
        %v3959 = vadd.f32 %v3935, %v3944
        %v3960 = vadd.f32 %v3939, %v3944
        %v3961 = vand.u32 2147483647, %v3945
        %v3962 = vand.u32 2147483647, %v3946
        %v3963 = vand.u32 2147483647, %v3947
        %v3964 = vand.u32 2147483647, %v3948
        %v3965 = vand.u32 2147483647, %v3949
        %v3966 = vand.u32 2147483647, %v3950
        %v3967 = vand.u32 2147483647, %v3951
        %v3968 = vand.u32 2147483647, %v3952
        %v3969 = vand.u32 2147483647, %v3953
        %v3970 = vand.u32 2147483647, %v3954
        %v3971 = vand.u32 2147483647, %v3955
        %v3972 = vand.u32 2147483647, %v3956
        %v3973 = vand.u32 2147483647, %v3957
        %v3974 = vand.u32 2147483647, %v3958
        %v3975 = vand.u32 2147483647, %v3959
        %v3976 = vand.u32 2147483647, %v3960
        %v3977 = vstv %s3876
        %v3978 = vmul.f32 %v3977, %v3961
        %v3979 = vmul.f32 %v3977, %v3962
        %v3980 = vmul.f32 %v3977, %v3963
        %v3981 = vmul.f32 %v3977, %v3964
        %v3982 = vmul.f32 %v3977, %v3965
        %v3983 = vmul.f32 %v3977, %v3966
        %v3984 = vmul.f32 %v3977, %v3967
        %v3985 = vmul.f32 %v3977, %v3968
        %v3986 = vmul.f32 %v3977, %v3969
        %v3987 = vmul.f32 %v3977, %v3970
        %v3988 = vmul.f32 %v3977, %v3971
        %v3989 = vmul.f32 %v3977, %v3972
        %v3990 = vmul.f32 %v3977, %v3973
        %v3991 = vmul.f32 %v3977, %v3974
        %v3992 = vmul.f32 %v3977, %v3975
        %v3993 = vmul.f32 %v3977, %v3976
        %v3994 = vadd.f32 %v3860, %v3978
        %v3995 = vadd.f32 %v3861, %v3979
        %v3996 = vadd.f32 %v3862, %v3980
        %v3997 = vadd.f32 %v3863, %v3981
        %v3998 = vadd.f32 %v3864, %v3982
        %v3999 = vadd.f32 %v3865, %v3983
        %v4000 = vadd.f32 %v3866, %v3984
        %v4001 = vadd.f32 %v3867, %v3985
        %v4002 = vadd.f32 %v3868, %v3986
        %v4003 = vadd.f32 %v3869, %v3987
        %v4004 = vadd.f32 %v3870, %v3988
        %v4005 = vadd.f32 %v3871, %v3989
        %v4006 = vadd.f32 %v3872, %v3990
        %v4007 = vadd.f32 %v3873, %v3991
        %v4008 = vadd.f32 %v3874, %v3992
        %v4009 = vadd.f32 %v3875, %v3993
        %s4010 = sld [smem:[#allocation10 + $0x17]]
        %4011 = vset.pattern.permute.xlu0 55
        %4012 = vperm.xlu0 %4011, %v643
        %v4013 = vpop.permute.xlu0 %4012
        %4015 = vset.pattern.permute.xlu0 55
        %4016 = vperm.xlu0 %4015, %v646
        %v4017 = vpop.permute.xlu0 %4016
        %4019 = vset.pattern.permute.xlu0 55
        %4020 = vperm.xlu0 %4019, %v651
        %v4021 = vpop.permute.xlu0 %4020
        %4023 = vset.pattern.permute.xlu0 55
        %4024 = vperm.xlu0 %4023, %v654
        %v4025 = vpop.permute.xlu0 %4024
        %4027 = vset.pattern.permute.xlu0 55
        %4028 = vperm.xlu0 %4027, %v659
        %v4029 = vpop.permute.xlu0 %4028
        %4031 = vset.pattern.permute.xlu0 55
        %4032 = vperm.xlu0 %4031, %v662
        %v4033 = vpop.permute.xlu0 %4032
        %4035 = vset.pattern.permute.xlu0 55
        %4036 = vperm.xlu0 %4035, %v667
        %v4037 = vpop.permute.xlu0 %4036
        %4039 = vset.pattern.permute.xlu0 55
        %4040 = vperm.xlu0 %4039, %v670
        %v4041 = vpop.permute.xlu0 %4040
        %4043 = vset.pattern.permute.xlu0 55
        %4044 = vperm.xlu0 %4043, %v675
        %v4045 = vpop.permute.xlu0 %4044
        %4047 = vset.pattern.permute.xlu0 55
        %4048 = vperm.xlu0 %4047, %v678
        %v4049 = vpop.permute.xlu0 %4048
        %4051 = vset.pattern.permute.xlu0 55
        %4052 = vperm.xlu0 %4051, %v683
        %v4053 = vpop.permute.xlu0 %4052
        %4055 = vset.pattern.permute.xlu0 55
        %4056 = vperm.xlu0 %4055, %v686
        %v4057 = vpop.permute.xlu0 %4056
        %4059 = vset.pattern.permute.xlu0 55
        %4060 = vperm.xlu0 %4059, %v691
        %v4061 = vpop.permute.xlu0 %4060
        %4063 = vset.pattern.permute.xlu0 55
        %4064 = vperm.xlu0 %4063, %v694
        %v4065 = vpop.permute.xlu0 %4064
        %4067 = vset.pattern.permute.xlu0 55
        %4068 = vperm.xlu0 %4067, %v699
        %v4069 = vpop.permute.xlu0 %4068
        %4071 = vset.pattern.permute.xlu0 55
        %4072 = vperm.xlu0 %4071, %v702
        %v4073 = vpop.permute.xlu0 %4072
        %v4075 = vlaneseq
        %v4076 = vshrl.u32 %v4075, 7
        %v4077 = vsub.s32 7, %v4076
        %v4078 = vrot.slane %v799, %v4077
        %v4079 = vadd.f32 %v4013, %v4078
        %v4080 = vadd.f32 %v4017, %v4078
        %v4081 = vadd.f32 %v4021, %v4078
        %v4082 = vadd.f32 %v4025, %v4078
        %v4083 = vadd.f32 %v4029, %v4078
        %v4084 = vadd.f32 %v4033, %v4078
        %v4085 = vadd.f32 %v4037, %v4078
        %v4086 = vadd.f32 %v4041, %v4078
        %v4087 = vadd.f32 %v4045, %v4078
        %v4088 = vadd.f32 %v4049, %v4078
        %v4089 = vadd.f32 %v4053, %v4078
        %v4090 = vadd.f32 %v4057, %v4078
        %v4091 = vadd.f32 %v4061, %v4078
        %v4092 = vadd.f32 %v4065, %v4078
        %v4093 = vadd.f32 %v4069, %v4078
        %v4094 = vadd.f32 %v4073, %v4078
        %v4095 = vand.u32 2147483647, %v4079
        %v4096 = vand.u32 2147483647, %v4080
        %v4097 = vand.u32 2147483647, %v4081
        %v4098 = vand.u32 2147483647, %v4082
        %v4099 = vand.u32 2147483647, %v4083
        %v4100 = vand.u32 2147483647, %v4084
        %v4101 = vand.u32 2147483647, %v4085
        %v4102 = vand.u32 2147483647, %v4086
        %v4103 = vand.u32 2147483647, %v4087
        %v4104 = vand.u32 2147483647, %v4088
        %v4105 = vand.u32 2147483647, %v4089
        %v4106 = vand.u32 2147483647, %v4090
        %v4107 = vand.u32 2147483647, %v4091
        %v4108 = vand.u32 2147483647, %v4092
        %v4109 = vand.u32 2147483647, %v4093
        %v4110 = vand.u32 2147483647, %v4094
        %v4111 = vstv %s4010
        %v4112 = vmul.f32 %v4111, %v4095
        %v4113 = vmul.f32 %v4111, %v4096
        %v4114 = vmul.f32 %v4111, %v4097
        %v4115 = vmul.f32 %v4111, %v4098
        %v4116 = vmul.f32 %v4111, %v4099
        %v4117 = vmul.f32 %v4111, %v4100
        %v4118 = vmul.f32 %v4111, %v4101
        %v4119 = vmul.f32 %v4111, %v4102
        %v4120 = vmul.f32 %v4111, %v4103
        %v4121 = vmul.f32 %v4111, %v4104
        %v4122 = vmul.f32 %v4111, %v4105
        %v4123 = vmul.f32 %v4111, %v4106
        %v4124 = vmul.f32 %v4111, %v4107
        %v4125 = vmul.f32 %v4111, %v4108
        %v4126 = vmul.f32 %v4111, %v4109
        %v4127 = vmul.f32 %v4111, %v4110
        %v4128 = vadd.f32 %v3994, %v4112
        %v4129 = vadd.f32 %v3995, %v4113
        %v4130 = vadd.f32 %v3996, %v4114
        %v4131 = vadd.f32 %v3997, %v4115
        %v4132 = vadd.f32 %v3998, %v4116
        %v4133 = vadd.f32 %v3999, %v4117
        %v4134 = vadd.f32 %v4000, %v4118
        %v4135 = vadd.f32 %v4001, %v4119
        %v4136 = vadd.f32 %v4002, %v4120
        %v4137 = vadd.f32 %v4003, %v4121
        %v4138 = vadd.f32 %v4004, %v4122
        %v4139 = vadd.f32 %v4005, %v4123
        %v4140 = vadd.f32 %v4006, %v4124
        %v4141 = vadd.f32 %v4007, %v4125
        %v4142 = vadd.f32 %v4008, %v4126
        %v4143 = vadd.f32 %v4009, %v4127
        %s4144 = sld [smem:[#allocation10 + $0x18]]
        %4145 = vset.pattern.permute.xlu0 56
        %4146 = vperm.xlu0 %4145, %v643
        %v4147 = vpop.permute.xlu0 %4146
        %4149 = vset.pattern.permute.xlu0 56
        %4150 = vperm.xlu0 %4149, %v646
        %v4151 = vpop.permute.xlu0 %4150
        %4153 = vset.pattern.permute.xlu0 56
        %4154 = vperm.xlu0 %4153, %v651
        %v4155 = vpop.permute.xlu0 %4154
        %4157 = vset.pattern.permute.xlu0 56
        %4158 = vperm.xlu0 %4157, %v654
        %v4159 = vpop.permute.xlu0 %4158
        %4161 = vset.pattern.permute.xlu0 56
        %4162 = vperm.xlu0 %4161, %v659
        %v4163 = vpop.permute.xlu0 %4162
        %4165 = vset.pattern.permute.xlu0 56
        %4166 = vperm.xlu0 %4165, %v662
        %v4167 = vpop.permute.xlu0 %4166
        %4169 = vset.pattern.permute.xlu0 56
        %4170 = vperm.xlu0 %4169, %v667
        %v4171 = vpop.permute.xlu0 %4170
        %4173 = vset.pattern.permute.xlu0 56
        %4174 = vperm.xlu0 %4173, %v670
        %v4175 = vpop.permute.xlu0 %4174
        %4177 = vset.pattern.permute.xlu0 56
        %4178 = vperm.xlu0 %4177, %v675
        %v4179 = vpop.permute.xlu0 %4178
        %4181 = vset.pattern.permute.xlu0 56
        %4182 = vperm.xlu0 %4181, %v678
        %v4183 = vpop.permute.xlu0 %4182
        %4185 = vset.pattern.permute.xlu0 56
        %4186 = vperm.xlu0 %4185, %v683
        %v4187 = vpop.permute.xlu0 %4186
        %4189 = vset.pattern.permute.xlu0 56
        %4190 = vperm.xlu0 %4189, %v686
        %v4191 = vpop.permute.xlu0 %4190
        %4193 = vset.pattern.permute.xlu0 56
        %4194 = vperm.xlu0 %4193, %v691
        %v4195 = vpop.permute.xlu0 %4194
        %4197 = vset.pattern.permute.xlu0 56
        %4198 = vperm.xlu0 %4197, %v694
        %v4199 = vpop.permute.xlu0 %4198
        %4201 = vset.pattern.permute.xlu0 56
        %4202 = vperm.xlu0 %4201, %v699
        %v4203 = vpop.permute.xlu0 %4202
        %4205 = vset.pattern.permute.xlu0 56
        %4206 = vperm.xlu0 %4205, %v702
        %v4207 = vpop.permute.xlu0 %4206
        %v4209 = vlaneseq
        %v4210 = vshrl.u32 %v4209, 7
        %v4211 = vsub.s32 0, %v4210
        %v4212 = vrot.slane %v802, %v4211
        %v4213 = vadd.f32 %v4147, %v4212
        %v4214 = vadd.f32 %v4151, %v4212
        %v4215 = vadd.f32 %v4155, %v4212
        %v4216 = vadd.f32 %v4159, %v4212
        %v4217 = vadd.f32 %v4163, %v4212
        %v4218 = vadd.f32 %v4167, %v4212
        %v4219 = vadd.f32 %v4171, %v4212
        %v4220 = vadd.f32 %v4175, %v4212
        %v4221 = vadd.f32 %v4179, %v4212
        %v4222 = vadd.f32 %v4183, %v4212
        %v4223 = vadd.f32 %v4187, %v4212
        %v4224 = vadd.f32 %v4191, %v4212
        %v4225 = vadd.f32 %v4195, %v4212
        %v4226 = vadd.f32 %v4199, %v4212
        %v4227 = vadd.f32 %v4203, %v4212
        %v4228 = vadd.f32 %v4207, %v4212
        %v4229 = vand.u32 2147483647, %v4213
        %v4230 = vand.u32 2147483647, %v4214
        %v4231 = vand.u32 2147483647, %v4215
        %v4232 = vand.u32 2147483647, %v4216
        %v4233 = vand.u32 2147483647, %v4217
        %v4234 = vand.u32 2147483647, %v4218
        %v4235 = vand.u32 2147483647, %v4219
        %v4236 = vand.u32 2147483647, %v4220
        %v4237 = vand.u32 2147483647, %v4221
        %v4238 = vand.u32 2147483647, %v4222
        %v4239 = vand.u32 2147483647, %v4223
        %v4240 = vand.u32 2147483647, %v4224
        %v4241 = vand.u32 2147483647, %v4225
        %v4242 = vand.u32 2147483647, %v4226
        %v4243 = vand.u32 2147483647, %v4227
        %v4244 = vand.u32 2147483647, %v4228
        %v4245 = vstv %s4144
        %v4246 = vmul.f32 %v4245, %v4229
        %v4247 = vmul.f32 %v4245, %v4230
        %v4248 = vmul.f32 %v4245, %v4231
        %v4249 = vmul.f32 %v4245, %v4232
        %v4250 = vmul.f32 %v4245, %v4233
        %v4251 = vmul.f32 %v4245, %v4234
        %v4252 = vmul.f32 %v4245, %v4235
        %v4253 = vmul.f32 %v4245, %v4236
        %v4254 = vmul.f32 %v4245, %v4237
        %v4255 = vmul.f32 %v4245, %v4238
        %v4256 = vmul.f32 %v4245, %v4239
        %v4257 = vmul.f32 %v4245, %v4240
        %v4258 = vmul.f32 %v4245, %v4241
        %v4259 = vmul.f32 %v4245, %v4242
        %v4260 = vmul.f32 %v4245, %v4243
        %v4261 = vmul.f32 %v4245, %v4244
        %v4262 = vadd.f32 %v4128, %v4246
        %v4263 = vadd.f32 %v4129, %v4247
        %v4264 = vadd.f32 %v4130, %v4248
        %v4265 = vadd.f32 %v4131, %v4249
        %v4266 = vadd.f32 %v4132, %v4250
        %v4267 = vadd.f32 %v4133, %v4251
        %v4268 = vadd.f32 %v4134, %v4252
        %v4269 = vadd.f32 %v4135, %v4253
        %v4270 = vadd.f32 %v4136, %v4254
        %v4271 = vadd.f32 %v4137, %v4255
        %v4272 = vadd.f32 %v4138, %v4256
        %v4273 = vadd.f32 %v4139, %v4257
        %v4274 = vadd.f32 %v4140, %v4258
        %v4275 = vadd.f32 %v4141, %v4259
        %v4276 = vadd.f32 %v4142, %v4260
        %v4277 = vadd.f32 %v4143, %v4261
        %s4278 = sld [smem:[#allocation10 + $0x19]]
        %4279 = vset.pattern.permute.xlu0 57
        %4280 = vperm.xlu0 %4279, %v643
        %v4281 = vpop.permute.xlu0 %4280
        %4283 = vset.pattern.permute.xlu0 57
        %4284 = vperm.xlu0 %4283, %v646
        %v4285 = vpop.permute.xlu0 %4284
        %4287 = vset.pattern.permute.xlu0 57
        %4288 = vperm.xlu0 %4287, %v651
        %v4289 = vpop.permute.xlu0 %4288
        %4291 = vset.pattern.permute.xlu0 57
        %4292 = vperm.xlu0 %4291, %v654
        %v4293 = vpop.permute.xlu0 %4292
        %4295 = vset.pattern.permute.xlu0 57
        %4296 = vperm.xlu0 %4295, %v659
        %v4297 = vpop.permute.xlu0 %4296
        %4299 = vset.pattern.permute.xlu0 57
        %4300 = vperm.xlu0 %4299, %v662
        %v4301 = vpop.permute.xlu0 %4300
        %4303 = vset.pattern.permute.xlu0 57
        %4304 = vperm.xlu0 %4303, %v667
        %v4305 = vpop.permute.xlu0 %4304
        %4307 = vset.pattern.permute.xlu0 57
        %4308 = vperm.xlu0 %4307, %v670
        %v4309 = vpop.permute.xlu0 %4308
        %4311 = vset.pattern.permute.xlu0 57
        %4312 = vperm.xlu0 %4311, %v675
        %v4313 = vpop.permute.xlu0 %4312
        %4315 = vset.pattern.permute.xlu0 57
        %4316 = vperm.xlu0 %4315, %v678
        %v4317 = vpop.permute.xlu0 %4316
        %4319 = vset.pattern.permute.xlu0 57
        %4320 = vperm.xlu0 %4319, %v683
        %v4321 = vpop.permute.xlu0 %4320
        %4323 = vset.pattern.permute.xlu0 57
        %4324 = vperm.xlu0 %4323, %v686
        %v4325 = vpop.permute.xlu0 %4324
        %4327 = vset.pattern.permute.xlu0 57
        %4328 = vperm.xlu0 %4327, %v691
        %v4329 = vpop.permute.xlu0 %4328
        %4331 = vset.pattern.permute.xlu0 57
        %4332 = vperm.xlu0 %4331, %v694
        %v4333 = vpop.permute.xlu0 %4332
        %4335 = vset.pattern.permute.xlu0 57
        %4336 = vperm.xlu0 %4335, %v699
        %v4337 = vpop.permute.xlu0 %4336
        %4339 = vset.pattern.permute.xlu0 57
        %4340 = vperm.xlu0 %4339, %v702
        %v4341 = vpop.permute.xlu0 %4340
        %v4343 = vlaneseq
        %v4344 = vshrl.u32 %v4343, 7
        %v4345 = vsub.s32 1, %v4344
        %v4346 = vrot.slane %v802, %v4345
        %v4347 = vadd.f32 %v4281, %v4346
        %v4348 = vadd.f32 %v4285, %v4346
        %v4349 = vadd.f32 %v4289, %v4346
        %v4350 = vadd.f32 %v4293, %v4346
        %v4351 = vadd.f32 %v4297, %v4346
        %v4352 = vadd.f32 %v4301, %v4346
        %v4353 = vadd.f32 %v4305, %v4346
        %v4354 = vadd.f32 %v4309, %v4346
        %v4355 = vadd.f32 %v4313, %v4346
        %v4356 = vadd.f32 %v4317, %v4346
        %v4357 = vadd.f32 %v4321, %v4346
        %v4358 = vadd.f32 %v4325, %v4346
        %v4359 = vadd.f32 %v4329, %v4346
        %v4360 = vadd.f32 %v4333, %v4346
        %v4361 = vadd.f32 %v4337, %v4346
        %v4362 = vadd.f32 %v4341, %v4346
        %v4363 = vand.u32 2147483647, %v4347
        %v4364 = vand.u32 2147483647, %v4348
        %v4365 = vand.u32 2147483647, %v4349
        %v4366 = vand.u32 2147483647, %v4350
        %v4367 = vand.u32 2147483647, %v4351
        %v4368 = vand.u32 2147483647, %v4352
        %v4369 = vand.u32 2147483647, %v4353
        %v4370 = vand.u32 2147483647, %v4354
        %v4371 = vand.u32 2147483647, %v4355
        %v4372 = vand.u32 2147483647, %v4356
        %v4373 = vand.u32 2147483647, %v4357
        %v4374 = vand.u32 2147483647, %v4358
        %v4375 = vand.u32 2147483647, %v4359
        %v4376 = vand.u32 2147483647, %v4360
        %v4377 = vand.u32 2147483647, %v4361
        %v4378 = vand.u32 2147483647, %v4362
        %v4379 = vstv %s4278
        %v4380 = vmul.f32 %v4379, %v4363
        %v4381 = vmul.f32 %v4379, %v4364
        %v4382 = vmul.f32 %v4379, %v4365
        %v4383 = vmul.f32 %v4379, %v4366
        %v4384 = vmul.f32 %v4379, %v4367
        %v4385 = vmul.f32 %v4379, %v4368
        %v4386 = vmul.f32 %v4379, %v4369
        %v4387 = vmul.f32 %v4379, %v4370
        %v4388 = vmul.f32 %v4379, %v4371
        %v4389 = vmul.f32 %v4379, %v4372
        %v4390 = vmul.f32 %v4379, %v4373
        %v4391 = vmul.f32 %v4379, %v4374
        %v4392 = vmul.f32 %v4379, %v4375
        %v4393 = vmul.f32 %v4379, %v4376
        %v4394 = vmul.f32 %v4379, %v4377
        %v4395 = vmul.f32 %v4379, %v4378
        %v4396 = vadd.f32 %v4262, %v4380
        %v4397 = vadd.f32 %v4263, %v4381
        %v4398 = vadd.f32 %v4264, %v4382
        %v4399 = vadd.f32 %v4265, %v4383
        %v4400 = vadd.f32 %v4266, %v4384
        %v4401 = vadd.f32 %v4267, %v4385
        %v4402 = vadd.f32 %v4268, %v4386
        %v4403 = vadd.f32 %v4269, %v4387
        %v4404 = vadd.f32 %v4270, %v4388
        %v4405 = vadd.f32 %v4271, %v4389
        %v4406 = vadd.f32 %v4272, %v4390
        %v4407 = vadd.f32 %v4273, %v4391
        %v4408 = vadd.f32 %v4274, %v4392
        %v4409 = vadd.f32 %v4275, %v4393
        %v4410 = vadd.f32 %v4276, %v4394
        %v4411 = vadd.f32 %v4277, %v4395
        %s4412 = sld [smem:[#allocation10 + $0x1a]]
        %4413 = vset.pattern.permute.xlu0 58
        %4414 = vperm.xlu0 %4413, %v643
        %v4415 = vpop.permute.xlu0 %4414
        %4417 = vset.pattern.permute.xlu0 58
        %4418 = vperm.xlu0 %4417, %v646
        %v4419 = vpop.permute.xlu0 %4418
        %4421 = vset.pattern.permute.xlu0 58
        %4422 = vperm.xlu0 %4421, %v651
        %v4423 = vpop.permute.xlu0 %4422
        %4425 = vset.pattern.permute.xlu0 58
        %4426 = vperm.xlu0 %4425, %v654
        %v4427 = vpop.permute.xlu0 %4426
        %4429 = vset.pattern.permute.xlu0 58
        %4430 = vperm.xlu0 %4429, %v659
        %v4431 = vpop.permute.xlu0 %4430
        %4433 = vset.pattern.permute.xlu0 58
        %4434 = vperm.xlu0 %4433, %v662
        %v4435 = vpop.permute.xlu0 %4434
        %4437 = vset.pattern.permute.xlu0 58
        %4438 = vperm.xlu0 %4437, %v667
        %v4439 = vpop.permute.xlu0 %4438
        %4441 = vset.pattern.permute.xlu0 58
        %4442 = vperm.xlu0 %4441, %v670
        %v4443 = vpop.permute.xlu0 %4442
        %4445 = vset.pattern.permute.xlu0 58
        %4446 = vperm.xlu0 %4445, %v675
        %v4447 = vpop.permute.xlu0 %4446
        %4449 = vset.pattern.permute.xlu0 58
        %4450 = vperm.xlu0 %4449, %v678
        %v4451 = vpop.permute.xlu0 %4450
        %4453 = vset.pattern.permute.xlu0 58
        %4454 = vperm.xlu0 %4453, %v683
        %v4455 = vpop.permute.xlu0 %4454
        %4457 = vset.pattern.permute.xlu0 58
        %4458 = vperm.xlu0 %4457, %v686
        %v4459 = vpop.permute.xlu0 %4458
        %4461 = vset.pattern.permute.xlu0 58
        %4462 = vperm.xlu0 %4461, %v691
        %v4463 = vpop.permute.xlu0 %4462
        %4465 = vset.pattern.permute.xlu0 58
        %4466 = vperm.xlu0 %4465, %v694
        %v4467 = vpop.permute.xlu0 %4466
        %4469 = vset.pattern.permute.xlu0 58
        %4470 = vperm.xlu0 %4469, %v699
        %v4471 = vpop.permute.xlu0 %4470
        %4473 = vset.pattern.permute.xlu0 58
        %4474 = vperm.xlu0 %4473, %v702
        %v4475 = vpop.permute.xlu0 %4474
        %v4477 = vlaneseq
        %v4478 = vshrl.u32 %v4477, 7
        %v4479 = vsub.s32 2, %v4478
        %v4480 = vrot.slane %v802, %v4479
        %v4481 = vadd.f32 %v4415, %v4480
        %v4482 = vadd.f32 %v4419, %v4480
        %v4483 = vadd.f32 %v4423, %v4480
        %v4484 = vadd.f32 %v4427, %v4480
        %v4485 = vadd.f32 %v4431, %v4480
        %v4486 = vadd.f32 %v4435, %v4480
        %v4487 = vadd.f32 %v4439, %v4480
        %v4488 = vadd.f32 %v4443, %v4480
        %v4489 = vadd.f32 %v4447, %v4480
        %v4490 = vadd.f32 %v4451, %v4480
        %v4491 = vadd.f32 %v4455, %v4480
        %v4492 = vadd.f32 %v4459, %v4480
        %v4493 = vadd.f32 %v4463, %v4480
        %v4494 = vadd.f32 %v4467, %v4480
        %v4495 = vadd.f32 %v4471, %v4480
        %v4496 = vadd.f32 %v4475, %v4480
        %v4497 = vand.u32 2147483647, %v4481
        %v4498 = vand.u32 2147483647, %v4482
        %v4499 = vand.u32 2147483647, %v4483
        %v4500 = vand.u32 2147483647, %v4484
        %v4501 = vand.u32 2147483647, %v4485
        %v4502 = vand.u32 2147483647, %v4486
        %v4503 = vand.u32 2147483647, %v4487
        %v4504 = vand.u32 2147483647, %v4488
        %v4505 = vand.u32 2147483647, %v4489
        %v4506 = vand.u32 2147483647, %v4490
        %v4507 = vand.u32 2147483647, %v4491
        %v4508 = vand.u32 2147483647, %v4492
        %v4509 = vand.u32 2147483647, %v4493
        %v4510 = vand.u32 2147483647, %v4494
        %v4511 = vand.u32 2147483647, %v4495
        %v4512 = vand.u32 2147483647, %v4496
        %v4513 = vstv %s4412
        %v4514 = vmul.f32 %v4513, %v4497
        %v4515 = vmul.f32 %v4513, %v4498
        %v4516 = vmul.f32 %v4513, %v4499
        %v4517 = vmul.f32 %v4513, %v4500
        %v4518 = vmul.f32 %v4513, %v4501
        %v4519 = vmul.f32 %v4513, %v4502
        %v4520 = vmul.f32 %v4513, %v4503
        %v4521 = vmul.f32 %v4513, %v4504
        %v4522 = vmul.f32 %v4513, %v4505
        %v4523 = vmul.f32 %v4513, %v4506
        %v4524 = vmul.f32 %v4513, %v4507
        %v4525 = vmul.f32 %v4513, %v4508
        %v4526 = vmul.f32 %v4513, %v4509
        %v4527 = vmul.f32 %v4513, %v4510
        %v4528 = vmul.f32 %v4513, %v4511
        %v4529 = vmul.f32 %v4513, %v4512
        %v4530 = vadd.f32 %v4396, %v4514
        %v4531 = vadd.f32 %v4397, %v4515
        %v4532 = vadd.f32 %v4398, %v4516
        %v4533 = vadd.f32 %v4399, %v4517
        %v4534 = vadd.f32 %v4400, %v4518
        %v4535 = vadd.f32 %v4401, %v4519
        %v4536 = vadd.f32 %v4402, %v4520
        %v4537 = vadd.f32 %v4403, %v4521
        %v4538 = vadd.f32 %v4404, %v4522
        %v4539 = vadd.f32 %v4405, %v4523
        %v4540 = vadd.f32 %v4406, %v4524
        %v4541 = vadd.f32 %v4407, %v4525
        %v4542 = vadd.f32 %v4408, %v4526
        %v4543 = vadd.f32 %v4409, %v4527
        %v4544 = vadd.f32 %v4410, %v4528
        %v4545 = vadd.f32 %v4411, %v4529
        %s4546 = sld [smem:[#allocation10 + $0x1b]]
        %4547 = vset.pattern.permute.xlu0 59
        %4548 = vperm.xlu0 %4547, %v643
        %v4549 = vpop.permute.xlu0 %4548
        %4551 = vset.pattern.permute.xlu0 59
        %4552 = vperm.xlu0 %4551, %v646
        %v4553 = vpop.permute.xlu0 %4552
        %4555 = vset.pattern.permute.xlu0 59
        %4556 = vperm.xlu0 %4555, %v651
        %v4557 = vpop.permute.xlu0 %4556
        %4559 = vset.pattern.permute.xlu0 59
        %4560 = vperm.xlu0 %4559, %v654
        %v4561 = vpop.permute.xlu0 %4560
        %4563 = vset.pattern.permute.xlu0 59
        %4564 = vperm.xlu0 %4563, %v659
        %v4565 = vpop.permute.xlu0 %4564
        %4567 = vset.pattern.permute.xlu0 59
        %4568 = vperm.xlu0 %4567, %v662
        %v4569 = vpop.permute.xlu0 %4568
        %4571 = vset.pattern.permute.xlu0 59
        %4572 = vperm.xlu0 %4571, %v667
        %v4573 = vpop.permute.xlu0 %4572
        %4575 = vset.pattern.permute.xlu0 59
        %4576 = vperm.xlu0 %4575, %v670
        %v4577 = vpop.permute.xlu0 %4576
        %4579 = vset.pattern.permute.xlu0 59
        %4580 = vperm.xlu0 %4579, %v675
        %v4581 = vpop.permute.xlu0 %4580
        %4583 = vset.pattern.permute.xlu0 59
        %4584 = vperm.xlu0 %4583, %v678
        %v4585 = vpop.permute.xlu0 %4584
        %4587 = vset.pattern.permute.xlu0 59
        %4588 = vperm.xlu0 %4587, %v683
        %v4589 = vpop.permute.xlu0 %4588
        %4591 = vset.pattern.permute.xlu0 59
        %4592 = vperm.xlu0 %4591, %v686
        %v4593 = vpop.permute.xlu0 %4592
        %4595 = vset.pattern.permute.xlu0 59
        %4596 = vperm.xlu0 %4595, %v691
        %v4597 = vpop.permute.xlu0 %4596
        %4599 = vset.pattern.permute.xlu0 59
        %4600 = vperm.xlu0 %4599, %v694
        %v4601 = vpop.permute.xlu0 %4600
        %4603 = vset.pattern.permute.xlu0 59
        %4604 = vperm.xlu0 %4603, %v699
        %v4605 = vpop.permute.xlu0 %4604
        %4607 = vset.pattern.permute.xlu0 59
        %4608 = vperm.xlu0 %4607, %v702
        %v4609 = vpop.permute.xlu0 %4608
        %v4611 = vlaneseq
        %v4612 = vshrl.u32 %v4611, 7
        %v4613 = vsub.s32 3, %v4612
        %v4614 = vrot.slane %v802, %v4613
        %v4615 = vadd.f32 %v4549, %v4614
        %v4616 = vadd.f32 %v4553, %v4614
        %v4617 = vadd.f32 %v4557, %v4614
        %v4618 = vadd.f32 %v4561, %v4614
        %v4619 = vadd.f32 %v4565, %v4614
        %v4620 = vadd.f32 %v4569, %v4614
        %v4621 = vadd.f32 %v4573, %v4614
        %v4622 = vadd.f32 %v4577, %v4614
        %v4623 = vadd.f32 %v4581, %v4614
        %v4624 = vadd.f32 %v4585, %v4614
        %v4625 = vadd.f32 %v4589, %v4614
        %v4626 = vadd.f32 %v4593, %v4614
        %v4627 = vadd.f32 %v4597, %v4614
        %v4628 = vadd.f32 %v4601, %v4614
        %v4629 = vadd.f32 %v4605, %v4614
        %v4630 = vadd.f32 %v4609, %v4614
        %v4631 = vand.u32 2147483647, %v4615
        %v4632 = vand.u32 2147483647, %v4616
        %v4633 = vand.u32 2147483647, %v4617
        %v4634 = vand.u32 2147483647, %v4618
        %v4635 = vand.u32 2147483647, %v4619
        %v4636 = vand.u32 2147483647, %v4620
        %v4637 = vand.u32 2147483647, %v4621
        %v4638 = vand.u32 2147483647, %v4622
        %v4639 = vand.u32 2147483647, %v4623
        %v4640 = vand.u32 2147483647, %v4624
        %v4641 = vand.u32 2147483647, %v4625
        %v4642 = vand.u32 2147483647, %v4626
        %v4643 = vand.u32 2147483647, %v4627
        %v4644 = vand.u32 2147483647, %v4628
        %v4645 = vand.u32 2147483647, %v4629
        %v4646 = vand.u32 2147483647, %v4630
        %v4647 = vstv %s4546
        %v4648 = vmul.f32 %v4647, %v4631
        %v4649 = vmul.f32 %v4647, %v4632
        %v4650 = vmul.f32 %v4647, %v4633
        %v4651 = vmul.f32 %v4647, %v4634
        %v4652 = vmul.f32 %v4647, %v4635
        %v4653 = vmul.f32 %v4647, %v4636
        %v4654 = vmul.f32 %v4647, %v4637
        %v4655 = vmul.f32 %v4647, %v4638
        %v4656 = vmul.f32 %v4647, %v4639
        %v4657 = vmul.f32 %v4647, %v4640
        %v4658 = vmul.f32 %v4647, %v4641
        %v4659 = vmul.f32 %v4647, %v4642
        %v4660 = vmul.f32 %v4647, %v4643
        %v4661 = vmul.f32 %v4647, %v4644
        %v4662 = vmul.f32 %v4647, %v4645
        %v4663 = vmul.f32 %v4647, %v4646
        %v4664 = vadd.f32 %v4530, %v4648
        %v4665 = vadd.f32 %v4531, %v4649
        %v4666 = vadd.f32 %v4532, %v4650
        %v4667 = vadd.f32 %v4533, %v4651
        %v4668 = vadd.f32 %v4534, %v4652
        %v4669 = vadd.f32 %v4535, %v4653
        %v4670 = vadd.f32 %v4536, %v4654
        %v4671 = vadd.f32 %v4537, %v4655
        %v4672 = vadd.f32 %v4538, %v4656
        %v4673 = vadd.f32 %v4539, %v4657
        %v4674 = vadd.f32 %v4540, %v4658
        %v4675 = vadd.f32 %v4541, %v4659
        %v4676 = vadd.f32 %v4542, %v4660
        %v4677 = vadd.f32 %v4543, %v4661
        %v4678 = vadd.f32 %v4544, %v4662
        %v4679 = vadd.f32 %v4545, %v4663
        %s4680 = sld [smem:[#allocation10 + $0x1c]]
        %4681 = vset.pattern.permute.xlu0 60
        %4682 = vperm.xlu0 %4681, %v643
        %v4683 = vpop.permute.xlu0 %4682
        %4685 = vset.pattern.permute.xlu0 60
        %4686 = vperm.xlu0 %4685, %v646
        %v4687 = vpop.permute.xlu0 %4686
        %4689 = vset.pattern.permute.xlu0 60
        %4690 = vperm.xlu0 %4689, %v651
        %v4691 = vpop.permute.xlu0 %4690
        %4693 = vset.pattern.permute.xlu0 60
        %4694 = vperm.xlu0 %4693, %v654
        %v4695 = vpop.permute.xlu0 %4694
        %4697 = vset.pattern.permute.xlu0 60
        %4698 = vperm.xlu0 %4697, %v659
        %v4699 = vpop.permute.xlu0 %4698
        %4701 = vset.pattern.permute.xlu0 60
        %4702 = vperm.xlu0 %4701, %v662
        %v4703 = vpop.permute.xlu0 %4702
        %4705 = vset.pattern.permute.xlu0 60
        %4706 = vperm.xlu0 %4705, %v667
        %v4707 = vpop.permute.xlu0 %4706
        %4709 = vset.pattern.permute.xlu0 60
        %4710 = vperm.xlu0 %4709, %v670
        %v4711 = vpop.permute.xlu0 %4710
        %4713 = vset.pattern.permute.xlu0 60
        %4714 = vperm.xlu0 %4713, %v675
        %v4715 = vpop.permute.xlu0 %4714
        %4717 = vset.pattern.permute.xlu0 60
        %4718 = vperm.xlu0 %4717, %v678
        %v4719 = vpop.permute.xlu0 %4718
        %4721 = vset.pattern.permute.xlu0 60
        %4722 = vperm.xlu0 %4721, %v683
        %v4723 = vpop.permute.xlu0 %4722
        %4725 = vset.pattern.permute.xlu0 60
        %4726 = vperm.xlu0 %4725, %v686
        %v4727 = vpop.permute.xlu0 %4726
        %4729 = vset.pattern.permute.xlu0 60
        %4730 = vperm.xlu0 %4729, %v691
        %v4731 = vpop.permute.xlu0 %4730
        %4733 = vset.pattern.permute.xlu0 60
        %4734 = vperm.xlu0 %4733, %v694
        %v4735 = vpop.permute.xlu0 %4734
        %4737 = vset.pattern.permute.xlu0 60
        %4738 = vperm.xlu0 %4737, %v699
        %v4739 = vpop.permute.xlu0 %4738
        %4741 = vset.pattern.permute.xlu0 60
        %4742 = vperm.xlu0 %4741, %v702
        %v4743 = vpop.permute.xlu0 %4742
        %v4745 = vlaneseq
        %v4746 = vshrl.u32 %v4745, 7
        %v4747 = vsub.s32 4, %v4746
        %v4748 = vrot.slane %v802, %v4747
        %v4749 = vadd.f32 %v4683, %v4748
        %v4750 = vadd.f32 %v4687, %v4748
        %v4751 = vadd.f32 %v4691, %v4748
        %v4752 = vadd.f32 %v4695, %v4748
        %v4753 = vadd.f32 %v4699, %v4748
        %v4754 = vadd.f32 %v4703, %v4748
        %v4755 = vadd.f32 %v4707, %v4748
        %v4756 = vadd.f32 %v4711, %v4748
        %v4757 = vadd.f32 %v4715, %v4748
        %v4758 = vadd.f32 %v4719, %v4748
        %v4759 = vadd.f32 %v4723, %v4748
        %v4760 = vadd.f32 %v4727, %v4748
        %v4761 = vadd.f32 %v4731, %v4748
        %v4762 = vadd.f32 %v4735, %v4748
        %v4763 = vadd.f32 %v4739, %v4748
        %v4764 = vadd.f32 %v4743, %v4748
        %v4765 = vand.u32 2147483647, %v4749
        %v4766 = vand.u32 2147483647, %v4750
        %v4767 = vand.u32 2147483647, %v4751
        %v4768 = vand.u32 2147483647, %v4752
        %v4769 = vand.u32 2147483647, %v4753
        %v4770 = vand.u32 2147483647, %v4754
        %v4771 = vand.u32 2147483647, %v4755
        %v4772 = vand.u32 2147483647, %v4756
        %v4773 = vand.u32 2147483647, %v4757
        %v4774 = vand.u32 2147483647, %v4758
        %v4775 = vand.u32 2147483647, %v4759
        %v4776 = vand.u32 2147483647, %v4760
        %v4777 = vand.u32 2147483647, %v4761
        %v4778 = vand.u32 2147483647, %v4762
        %v4779 = vand.u32 2147483647, %v4763
        %v4780 = vand.u32 2147483647, %v4764
        %v4781 = vstv %s4680
        %v4782 = vmul.f32 %v4781, %v4765
        %v4783 = vmul.f32 %v4781, %v4766
        %v4784 = vmul.f32 %v4781, %v4767
        %v4785 = vmul.f32 %v4781, %v4768
        %v4786 = vmul.f32 %v4781, %v4769
        %v4787 = vmul.f32 %v4781, %v4770
        %v4788 = vmul.f32 %v4781, %v4771
        %v4789 = vmul.f32 %v4781, %v4772
        %v4790 = vmul.f32 %v4781, %v4773
        %v4791 = vmul.f32 %v4781, %v4774
        %v4792 = vmul.f32 %v4781, %v4775
        %v4793 = vmul.f32 %v4781, %v4776
        %v4794 = vmul.f32 %v4781, %v4777
        %v4795 = vmul.f32 %v4781, %v4778
        %v4796 = vmul.f32 %v4781, %v4779
        %v4797 = vmul.f32 %v4781, %v4780
        %v4798 = vadd.f32 %v4664, %v4782
        %v4799 = vadd.f32 %v4665, %v4783
        %v4800 = vadd.f32 %v4666, %v4784
        %v4801 = vadd.f32 %v4667, %v4785
        %v4802 = vadd.f32 %v4668, %v4786
        %v4803 = vadd.f32 %v4669, %v4787
        %v4804 = vadd.f32 %v4670, %v4788
        %v4805 = vadd.f32 %v4671, %v4789
        %v4806 = vadd.f32 %v4672, %v4790
        %v4807 = vadd.f32 %v4673, %v4791
        %v4808 = vadd.f32 %v4674, %v4792
        %v4809 = vadd.f32 %v4675, %v4793
        %v4810 = vadd.f32 %v4676, %v4794
        %v4811 = vadd.f32 %v4677, %v4795
        %v4812 = vadd.f32 %v4678, %v4796
        %v4813 = vadd.f32 %v4679, %v4797
        %s4814 = sld [smem:[#allocation10 + $0x1d]]
        %4815 = vset.pattern.permute.xlu0 61
        %4816 = vperm.xlu0 %4815, %v643
        %v4817 = vpop.permute.xlu0 %4816
        %4819 = vset.pattern.permute.xlu0 61
        %4820 = vperm.xlu0 %4819, %v646
        %v4821 = vpop.permute.xlu0 %4820
        %4823 = vset.pattern.permute.xlu0 61
        %4824 = vperm.xlu0 %4823, %v651
        %v4825 = vpop.permute.xlu0 %4824
        %4827 = vset.pattern.permute.xlu0 61
        %4828 = vperm.xlu0 %4827, %v654
        %v4829 = vpop.permute.xlu0 %4828
        %4831 = vset.pattern.permute.xlu0 61
        %4832 = vperm.xlu0 %4831, %v659
        %v4833 = vpop.permute.xlu0 %4832
        %4835 = vset.pattern.permute.xlu0 61
        %4836 = vperm.xlu0 %4835, %v662
        %v4837 = vpop.permute.xlu0 %4836
        %4839 = vset.pattern.permute.xlu0 61
        %4840 = vperm.xlu0 %4839, %v667
        %v4841 = vpop.permute.xlu0 %4840
        %4843 = vset.pattern.permute.xlu0 61
        %4844 = vperm.xlu0 %4843, %v670
        %v4845 = vpop.permute.xlu0 %4844
        %4847 = vset.pattern.permute.xlu0 61
        %4848 = vperm.xlu0 %4847, %v675
        %v4849 = vpop.permute.xlu0 %4848
        %4851 = vset.pattern.permute.xlu0 61
        %4852 = vperm.xlu0 %4851, %v678
        %v4853 = vpop.permute.xlu0 %4852
        %4855 = vset.pattern.permute.xlu0 61
        %4856 = vperm.xlu0 %4855, %v683
        %v4857 = vpop.permute.xlu0 %4856
        %4859 = vset.pattern.permute.xlu0 61
        %4860 = vperm.xlu0 %4859, %v686
        %v4861 = vpop.permute.xlu0 %4860
        %4863 = vset.pattern.permute.xlu0 61
        %4864 = vperm.xlu0 %4863, %v691
        %v4865 = vpop.permute.xlu0 %4864
        %4867 = vset.pattern.permute.xlu0 61
        %4868 = vperm.xlu0 %4867, %v694
        %v4869 = vpop.permute.xlu0 %4868
        %4871 = vset.pattern.permute.xlu0 61
        %4872 = vperm.xlu0 %4871, %v699
        %v4873 = vpop.permute.xlu0 %4872
        %4875 = vset.pattern.permute.xlu0 61
        %4876 = vperm.xlu0 %4875, %v702
        %v4877 = vpop.permute.xlu0 %4876
        %v4879 = vlaneseq
        %v4880 = vshrl.u32 %v4879, 7
        %v4881 = vsub.s32 5, %v4880
        %v4882 = vrot.slane %v802, %v4881
        %v4883 = vadd.f32 %v4817, %v4882
        %v4884 = vadd.f32 %v4821, %v4882
        %v4885 = vadd.f32 %v4825, %v4882
        %v4886 = vadd.f32 %v4829, %v4882
        %v4887 = vadd.f32 %v4833, %v4882
        %v4888 = vadd.f32 %v4837, %v4882
        %v4889 = vadd.f32 %v4841, %v4882
        %v4890 = vadd.f32 %v4845, %v4882
        %v4891 = vadd.f32 %v4849, %v4882
        %v4892 = vadd.f32 %v4853, %v4882
        %v4893 = vadd.f32 %v4857, %v4882
        %v4894 = vadd.f32 %v4861, %v4882
        %v4895 = vadd.f32 %v4865, %v4882
        %v4896 = vadd.f32 %v4869, %v4882
        %v4897 = vadd.f32 %v4873, %v4882
        %v4898 = vadd.f32 %v4877, %v4882
        %v4899 = vand.u32 2147483647, %v4883
        %v4900 = vand.u32 2147483647, %v4884
        %v4901 = vand.u32 2147483647, %v4885
        %v4902 = vand.u32 2147483647, %v4886
        %v4903 = vand.u32 2147483647, %v4887
        %v4904 = vand.u32 2147483647, %v4888
        %v4905 = vand.u32 2147483647, %v4889
        %v4906 = vand.u32 2147483647, %v4890
        %v4907 = vand.u32 2147483647, %v4891
        %v4908 = vand.u32 2147483647, %v4892
        %v4909 = vand.u32 2147483647, %v4893
        %v4910 = vand.u32 2147483647, %v4894
        %v4911 = vand.u32 2147483647, %v4895
        %v4912 = vand.u32 2147483647, %v4896
        %v4913 = vand.u32 2147483647, %v4897
        %v4914 = vand.u32 2147483647, %v4898
        %v4915 = vstv %s4814
        %v4916 = vmul.f32 %v4915, %v4899
        %v4917 = vmul.f32 %v4915, %v4900
        %v4918 = vmul.f32 %v4915, %v4901
        %v4919 = vmul.f32 %v4915, %v4902
        %v4920 = vmul.f32 %v4915, %v4903
        %v4921 = vmul.f32 %v4915, %v4904
        %v4922 = vmul.f32 %v4915, %v4905
        %v4923 = vmul.f32 %v4915, %v4906
        %v4924 = vmul.f32 %v4915, %v4907
        %v4925 = vmul.f32 %v4915, %v4908
        %v4926 = vmul.f32 %v4915, %v4909
        %v4927 = vmul.f32 %v4915, %v4910
        %v4928 = vmul.f32 %v4915, %v4911
        %v4929 = vmul.f32 %v4915, %v4912
        %v4930 = vmul.f32 %v4915, %v4913
        %v4931 = vmul.f32 %v4915, %v4914
        %v4932 = vadd.f32 %v4798, %v4916
        %v4933 = vadd.f32 %v4799, %v4917
        %v4934 = vadd.f32 %v4800, %v4918
        %v4935 = vadd.f32 %v4801, %v4919
        %v4936 = vadd.f32 %v4802, %v4920
        %v4937 = vadd.f32 %v4803, %v4921
        %v4938 = vadd.f32 %v4804, %v4922
        %v4939 = vadd.f32 %v4805, %v4923
        %v4940 = vadd.f32 %v4806, %v4924
        %v4941 = vadd.f32 %v4807, %v4925
        %v4942 = vadd.f32 %v4808, %v4926
        %v4943 = vadd.f32 %v4809, %v4927
        %v4944 = vadd.f32 %v4810, %v4928
        %v4945 = vadd.f32 %v4811, %v4929
        %v4946 = vadd.f32 %v4812, %v4930
        %v4947 = vadd.f32 %v4813, %v4931
        %s4948 = sld [smem:[#allocation10 + $0x1e]]
        %4949 = vset.pattern.permute.xlu0 62
        %4950 = vperm.xlu0 %4949, %v643
        %v4951 = vpop.permute.xlu0 %4950
        %4953 = vset.pattern.permute.xlu0 62
        %4954 = vperm.xlu0 %4953, %v646
        %v4955 = vpop.permute.xlu0 %4954
        %4957 = vset.pattern.permute.xlu0 62
        %4958 = vperm.xlu0 %4957, %v651
        %v4959 = vpop.permute.xlu0 %4958
        %4961 = vset.pattern.permute.xlu0 62
        %4962 = vperm.xlu0 %4961, %v654
        %v4963 = vpop.permute.xlu0 %4962
        %4965 = vset.pattern.permute.xlu0 62
        %4966 = vperm.xlu0 %4965, %v659
        %v4967 = vpop.permute.xlu0 %4966
        %4969 = vset.pattern.permute.xlu0 62
        %4970 = vperm.xlu0 %4969, %v662
        %v4971 = vpop.permute.xlu0 %4970
        %4973 = vset.pattern.permute.xlu0 62
        %4974 = vperm.xlu0 %4973, %v667
        %v4975 = vpop.permute.xlu0 %4974
        %4977 = vset.pattern.permute.xlu0 62
        %4978 = vperm.xlu0 %4977, %v670
        %v4979 = vpop.permute.xlu0 %4978
        %4981 = vset.pattern.permute.xlu0 62
        %4982 = vperm.xlu0 %4981, %v675
        %v4983 = vpop.permute.xlu0 %4982
        %4985 = vset.pattern.permute.xlu0 62
        %4986 = vperm.xlu0 %4985, %v678
        %v4987 = vpop.permute.xlu0 %4986
        %4989 = vset.pattern.permute.xlu0 62
        %4990 = vperm.xlu0 %4989, %v683
        %v4991 = vpop.permute.xlu0 %4990
        %4993 = vset.pattern.permute.xlu0 62
        %4994 = vperm.xlu0 %4993, %v686
        %v4995 = vpop.permute.xlu0 %4994
        %4997 = vset.pattern.permute.xlu0 62
        %4998 = vperm.xlu0 %4997, %v691
        %v4999 = vpop.permute.xlu0 %4998
        %5001 = vset.pattern.permute.xlu0 62
        %5002 = vperm.xlu0 %5001, %v694
        %v5003 = vpop.permute.xlu0 %5002
        %5005 = vset.pattern.permute.xlu0 62
        %5006 = vperm.xlu0 %5005, %v699
        %v5007 = vpop.permute.xlu0 %5006
        %5009 = vset.pattern.permute.xlu0 62
        %5010 = vperm.xlu0 %5009, %v702
        %v5011 = vpop.permute.xlu0 %5010
        %v5013 = vlaneseq
        %v5014 = vshrl.u32 %v5013, 7
        %v5015 = vsub.s32 6, %v5014
        %v5016 = vrot.slane %v802, %v5015
        %v5017 = vadd.f32 %v4951, %v5016
        %v5018 = vadd.f32 %v4955, %v5016
        %v5019 = vadd.f32 %v4959, %v5016
        %v5020 = vadd.f32 %v4963, %v5016
        %v5021 = vadd.f32 %v4967, %v5016
        %v5022 = vadd.f32 %v4971, %v5016
        %v5023 = vadd.f32 %v4975, %v5016
        %v5024 = vadd.f32 %v4979, %v5016
        %v5025 = vadd.f32 %v4983, %v5016
        %v5026 = vadd.f32 %v4987, %v5016
        %v5027 = vadd.f32 %v4991, %v5016
        %v5028 = vadd.f32 %v4995, %v5016
        %v5029 = vadd.f32 %v4999, %v5016
        %v5030 = vadd.f32 %v5003, %v5016
        %v5031 = vadd.f32 %v5007, %v5016
        %v5032 = vadd.f32 %v5011, %v5016
        %v5033 = vand.u32 2147483647, %v5017
        %v5034 = vand.u32 2147483647, %v5018
        %v5035 = vand.u32 2147483647, %v5019
        %v5036 = vand.u32 2147483647, %v5020
        %v5037 = vand.u32 2147483647, %v5021
        %v5038 = vand.u32 2147483647, %v5022
        %v5039 = vand.u32 2147483647, %v5023
        %v5040 = vand.u32 2147483647, %v5024
        %v5041 = vand.u32 2147483647, %v5025
        %v5042 = vand.u32 2147483647, %v5026
        %v5043 = vand.u32 2147483647, %v5027
        %v5044 = vand.u32 2147483647, %v5028
        %v5045 = vand.u32 2147483647, %v5029
        %v5046 = vand.u32 2147483647, %v5030
        %v5047 = vand.u32 2147483647, %v5031
        %v5048 = vand.u32 2147483647, %v5032
        %v5049 = vstv %s4948
        %v5050 = vmul.f32 %v5049, %v5033
        %v5051 = vmul.f32 %v5049, %v5034
        %v5052 = vmul.f32 %v5049, %v5035
        %v5053 = vmul.f32 %v5049, %v5036
        %v5054 = vmul.f32 %v5049, %v5037
        %v5055 = vmul.f32 %v5049, %v5038
        %v5056 = vmul.f32 %v5049, %v5039
        %v5057 = vmul.f32 %v5049, %v5040
        %v5058 = vmul.f32 %v5049, %v5041
        %v5059 = vmul.f32 %v5049, %v5042
        %v5060 = vmul.f32 %v5049, %v5043
        %v5061 = vmul.f32 %v5049, %v5044
        %v5062 = vmul.f32 %v5049, %v5045
        %v5063 = vmul.f32 %v5049, %v5046
        %v5064 = vmul.f32 %v5049, %v5047
        %v5065 = vmul.f32 %v5049, %v5048
        %v5066 = vadd.f32 %v4932, %v5050
        %v5067 = vadd.f32 %v4933, %v5051
        %v5068 = vadd.f32 %v4934, %v5052
        %v5069 = vadd.f32 %v4935, %v5053
        %v5070 = vadd.f32 %v4936, %v5054
        %v5071 = vadd.f32 %v4937, %v5055
        %v5072 = vadd.f32 %v4938, %v5056
        %v5073 = vadd.f32 %v4939, %v5057
        %v5074 = vadd.f32 %v4940, %v5058
        %v5075 = vadd.f32 %v4941, %v5059
        %v5076 = vadd.f32 %v4942, %v5060
        %v5077 = vadd.f32 %v4943, %v5061
        %v5078 = vadd.f32 %v4944, %v5062
        %v5079 = vadd.f32 %v4945, %v5063
        %v5080 = vadd.f32 %v4946, %v5064
        %v5081 = vadd.f32 %v4947, %v5065
        %s5082 = sld [smem:[#allocation10 + $0x1f]]
        %5083 = vset.pattern.permute.xlu0 63
        %5084 = vperm.xlu0 %5083, %v643
        %v5085 = vpop.permute.xlu0 %5084
        %5087 = vset.pattern.permute.xlu0 63
        %5088 = vperm.xlu0 %5087, %v646
        %v5089 = vpop.permute.xlu0 %5088
        %5091 = vset.pattern.permute.xlu0 63
        %5092 = vperm.xlu0 %5091, %v651
        %v5093 = vpop.permute.xlu0 %5092
        %5095 = vset.pattern.permute.xlu0 63
        %5096 = vperm.xlu0 %5095, %v654
        %v5097 = vpop.permute.xlu0 %5096
        %5099 = vset.pattern.permute.xlu0 63
        %5100 = vperm.xlu0 %5099, %v659
        %v5101 = vpop.permute.xlu0 %5100
        %5103 = vset.pattern.permute.xlu0 63
        %5104 = vperm.xlu0 %5103, %v662
        %v5105 = vpop.permute.xlu0 %5104
        %5107 = vset.pattern.permute.xlu0 63
        %5108 = vperm.xlu0 %5107, %v667
        %v5109 = vpop.permute.xlu0 %5108
        %5111 = vset.pattern.permute.xlu0 63
        %5112 = vperm.xlu0 %5111, %v670
        %v5113 = vpop.permute.xlu0 %5112
        %5115 = vset.pattern.permute.xlu0 63
        %5116 = vperm.xlu0 %5115, %v675
        %v5117 = vpop.permute.xlu0 %5116
        %5119 = vset.pattern.permute.xlu0 63
        %5120 = vperm.xlu0 %5119, %v678
        %v5121 = vpop.permute.xlu0 %5120
        %5123 = vset.pattern.permute.xlu0 63
        %5124 = vperm.xlu0 %5123, %v683
        %v5125 = vpop.permute.xlu0 %5124
        %5127 = vset.pattern.permute.xlu0 63
        %5128 = vperm.xlu0 %5127, %v686
        %v5129 = vpop.permute.xlu0 %5128
        %5131 = vset.pattern.permute.xlu0 63
        %5132 = vperm.xlu0 %5131, %v691
        %v5133 = vpop.permute.xlu0 %5132
        %5135 = vset.pattern.permute.xlu0 63
        %5136 = vperm.xlu0 %5135, %v694
        %v5137 = vpop.permute.xlu0 %5136
        %5139 = vset.pattern.permute.xlu0 63
        %5140 = vperm.xlu0 %5139, %v699
        %v5141 = vpop.permute.xlu0 %5140
        %5143 = vset.pattern.permute.xlu0 63
        %5144 = vperm.xlu0 %5143, %v702
        %v5145 = vpop.permute.xlu0 %5144
        %v5147 = vlaneseq
        %v5148 = vshrl.u32 %v5147, 7
        %v5149 = vsub.s32 7, %v5148
        %v5150 = vrot.slane %v802, %v5149
        %v5151 = vadd.f32 %v5085, %v5150
        %v5152 = vadd.f32 %v5089, %v5150
        %v5153 = vadd.f32 %v5093, %v5150
        %v5154 = vadd.f32 %v5097, %v5150
        %v5155 = vadd.f32 %v5101, %v5150
        %v5156 = vadd.f32 %v5105, %v5150
        %v5157 = vadd.f32 %v5109, %v5150
        %v5158 = vadd.f32 %v5113, %v5150
        %v5159 = vadd.f32 %v5117, %v5150
        %v5160 = vadd.f32 %v5121, %v5150
        %v5161 = vadd.f32 %v5125, %v5150
        %v5162 = vadd.f32 %v5129, %v5150
        %v5163 = vadd.f32 %v5133, %v5150
        %v5164 = vadd.f32 %v5137, %v5150
        %v5165 = vadd.f32 %v5141, %v5150
        %v5166 = vadd.f32 %v5145, %v5150
        %v5167 = vand.u32 2147483647, %v5151
        %v5168 = vand.u32 2147483647, %v5152
        %v5169 = vand.u32 2147483647, %v5153
        %v5170 = vand.u32 2147483647, %v5154
        %v5171 = vand.u32 2147483647, %v5155
        %v5172 = vand.u32 2147483647, %v5156
        %v5173 = vand.u32 2147483647, %v5157
        %v5174 = vand.u32 2147483647, %v5158
        %v5175 = vand.u32 2147483647, %v5159
        %v5176 = vand.u32 2147483647, %v5160
        %v5177 = vand.u32 2147483647, %v5161
        %v5178 = vand.u32 2147483647, %v5162
        %v5179 = vand.u32 2147483647, %v5163
        %v5180 = vand.u32 2147483647, %v5164
        %v5181 = vand.u32 2147483647, %v5165
        %v5182 = vand.u32 2147483647, %v5166
        %v5183 = vstv %s5082
        %v5184 = vmul.f32 %v5183, %v5167
        %v5185 = vmul.f32 %v5183, %v5168
        %v5186 = vmul.f32 %v5183, %v5169
        %v5187 = vmul.f32 %v5183, %v5170
        %v5188 = vmul.f32 %v5183, %v5171
        %v5189 = vmul.f32 %v5183, %v5172
        %v5190 = vmul.f32 %v5183, %v5173
        %v5191 = vmul.f32 %v5183, %v5174
        %v5192 = vmul.f32 %v5183, %v5175
        %v5193 = vmul.f32 %v5183, %v5176
        %v5194 = vmul.f32 %v5183, %v5177
        %v5195 = vmul.f32 %v5183, %v5178
        %v5196 = vmul.f32 %v5183, %v5179
        %v5197 = vmul.f32 %v5183, %v5180
        %v5198 = vmul.f32 %v5183, %v5181
        %v5199 = vmul.f32 %v5183, %v5182
        %v5200 = vadd.f32 %v5066, %v5184
        %v5201 = vadd.f32 %v5067, %v5185
        %v5202 = vadd.f32 %v5068, %v5186
        %v5203 = vadd.f32 %v5069, %v5187
        %v5204 = vadd.f32 %v5070, %v5188
        %v5205 = vadd.f32 %v5071, %v5189
        %v5206 = vadd.f32 %v5072, %v5190
        %v5207 = vadd.f32 %v5073, %v5191
        %v5208 = vadd.f32 %v5074, %v5192
        %v5209 = vadd.f32 %v5075, %v5193
        %v5210 = vadd.f32 %v5076, %v5194
        %v5211 = vadd.f32 %v5077, %v5195
        %v5212 = vadd.f32 %v5078, %v5196
        %v5213 = vadd.f32 %v5079, %v5197
        %v5214 = vadd.f32 %v5080, %v5198
        %v5215 = vadd.f32 %v5081, %v5199
        %v5216 = vld [vmem:[%s475] sm:$0xf]
        %v5217 = vld [vmem:[%s475 + $0x4] sm:$0xf]
        %v5218 = vld [vmem:[%s475 + $0x8] sm:$0xf]
        %v5219 = vld [vmem:[%s475 + $0xc] sm:$0xf]
        %v5220 = vld [vmem:[%s475 + $0x10] sm:$0xf]
        %v5221 = vld [vmem:[%s475 + $0x14] sm:$0xf]
        %v5222 = vld [vmem:[%s475 + $0x18] sm:$0xf]
        %v5223 = vld [vmem:[%s475 + $0x1c] sm:$0xf]
        %v5224 = vld [vmem:[%s475 + $0x20] sm:$0xf]
        %v5225 = vld [vmem:[%s475 + $0x24] sm:$0xf]
        %v5226 = vld [vmem:[%s475 + $0x28] sm:$0xf]
        %v5227 = vld [vmem:[%s475 + $0x2c] sm:$0xf]
        %v5228 = vld [vmem:[%s475 + $0x30] sm:$0xf]
        %v5229 = vld [vmem:[%s475 + $0x34] sm:$0xf]
        %v5230 = vld [vmem:[%s475 + $0x38] sm:$0xf]
        %v5231 = vld [vmem:[%s475 + $0x3c] sm:$0xf]
        %vm5232 = vcmp.gt.bf16.partialorder %v5216, 0
        %vm5233 = vcmp.gt.bf16.partialorder %v5217, 0
        %vm5234 = vcmp.gt.bf16.partialorder %v5218, 0
        %vm5235 = vcmp.gt.bf16.partialorder %v5219, 0
        %vm5236 = vcmp.gt.bf16.partialorder %v5220, 0
        %vm5237 = vcmp.gt.bf16.partialorder %v5221, 0
        %vm5238 = vcmp.gt.bf16.partialorder %v5222, 0
        %vm5239 = vcmp.gt.bf16.partialorder %v5223, 0
        %vm5240 = vcmp.gt.bf16.partialorder %v5224, 0
        %vm5241 = vcmp.gt.bf16.partialorder %v5225, 0
        %vm5242 = vcmp.gt.bf16.partialorder %v5226, 0
        %vm5243 = vcmp.gt.bf16.partialorder %v5227, 0
        %vm5244 = vcmp.gt.bf16.partialorder %v5228, 0
        %vm5245 = vcmp.gt.bf16.partialorder %v5229, 0
        %vm5246 = vcmp.gt.bf16.partialorder %v5230, 0
        %vm5247 = vcmp.gt.bf16.partialorder %v5231, 0
        %v5248 = vsel %vm5232, 65537, 0
        %v5249 = vsel %vm5233, 65537, 0
        %v5250 = vsel %vm5234, 65537, 0
        %v5251 = vsel %vm5235, 65537, 0
        %v5252 = vsel %vm5236, 65537, 0
        %v5253 = vsel %vm5237, 65537, 0
        %v5254 = vsel %vm5238, 65537, 0
        %v5255 = vsel %vm5239, 65537, 0
        %v5256 = vsel %vm5240, 65537, 0
        %v5257 = vsel %vm5241, 65537, 0
        %v5258 = vsel %vm5242, 65537, 0
        %v5259 = vsel %vm5243, 65537, 0
        %v5260 = vsel %vm5244, 65537, 0
        %v5261 = vsel %vm5245, 65537, 0
        %v5262 = vsel %vm5246, 65537, 0
        %v5263 = vsel %vm5247, 65537, 0
        %v5264 = vunpack.c.l.b16 %v5248
        %v5265 = vunpack.c.l.b16 %v5249
        %v5266 = vunpack.c.l.b16 %v5250
        %v5267 = vunpack.c.l.b16 %v5251
        %v5268 = vunpack.c.l.b16 %v5252
        %v5269 = vunpack.c.l.b16 %v5253
        %v5270 = vunpack.c.l.b16 %v5254
        %v5271 = vunpack.c.l.b16 %v5255
        %v5272 = vunpack.c.l.b16 %v5256
        %v5273 = vunpack.c.l.b16 %v5257
        %v5274 = vunpack.c.l.b16 %v5258
        %v5275 = vunpack.c.l.b16 %v5259
        %v5276 = vunpack.c.l.b16 %v5260
        %v5277 = vunpack.c.l.b16 %v5261
        %v5278 = vunpack.c.l.b16 %v5262
        %v5279 = vunpack.c.l.b16 %v5263
        %vm5280 = vcmp.ne.s32.totalorder %v5264, 0
        %vm5281 = vcmp.ne.s32.totalorder %v5265, 0
        %vm5282 = vcmp.ne.s32.totalorder %v5266, 0
        %vm5283 = vcmp.ne.s32.totalorder %v5267, 0
        %vm5284 = vcmp.ne.s32.totalorder %v5268, 0
        %vm5285 = vcmp.ne.s32.totalorder %v5269, 0
        %vm5286 = vcmp.ne.s32.totalorder %v5270, 0
        %vm5287 = vcmp.ne.s32.totalorder %v5271, 0
        %vm5288 = vcmp.ne.s32.totalorder %v5272, 0
        %vm5289 = vcmp.ne.s32.totalorder %v5273, 0
        %vm5290 = vcmp.ne.s32.totalorder %v5274, 0
        %vm5291 = vcmp.ne.s32.totalorder %v5275, 0
        %vm5292 = vcmp.ne.s32.totalorder %v5276, 0
        %vm5293 = vcmp.ne.s32.totalorder %v5277, 0
        %vm5294 = vcmp.ne.s32.totalorder %v5278, 0
        %vm5295 = vcmp.ne.s32.totalorder %v5279, 0
        %v5296 = vsel %vm5280, %v5200, -1e+30
        %v5297 = vsel %vm5281, %v5201, -1e+30
        %v5298 = vsel %vm5282, %v5202, -1e+30
        %v5299 = vsel %vm5283, %v5203, -1e+30
        %v5300 = vsel %vm5284, %v5204, -1e+30
        %v5301 = vsel %vm5285, %v5205, -1e+30
        %v5302 = vsel %vm5286, %v5206, -1e+30
        %v5303 = vsel %vm5287, %v5207, -1e+30
        %v5304 = vsel %vm5288, %v5208, -1e+30
        %v5305 = vsel %vm5289, %v5209, -1e+30
        %v5306 = vsel %vm5290, %v5210, -1e+30
        %v5307 = vsel %vm5291, %v5211, -1e+30
        %v5308 = vsel %vm5292, %v5212, -1e+30
        %v5309 = vsel %vm5293, %v5213, -1e+30
        %v5310 = vsel %vm5294, %v5214, -1e+30
        %v5311 = vsel %vm5295, %v5215, -1e+30
        %5312 = vmax.xlane.f32.xlu0 %v5296
        %v5313 = vpop.xlane.xlu0 %5312
        %5314 = vmax.xlane.f32.xlu0 %v5297
        %v5315 = vpop.xlane.xlu0 %5314
        %5316 = vmax.xlane.f32.xlu0 %v5298
        %v5317 = vpop.xlane.xlu0 %5316
        %5318 = vmax.xlane.f32.xlu0 %v5299
        %v5319 = vpop.xlane.xlu0 %5318
        %5320 = vmax.xlane.f32.xlu0 %v5300
        %v5321 = vpop.xlane.xlu0 %5320
        %5322 = vmax.xlane.f32.xlu0 %v5301
        %v5323 = vpop.xlane.xlu0 %5322
        %5324 = vmax.xlane.f32.xlu0 %v5302
        %v5325 = vpop.xlane.xlu0 %5324
        %5326 = vmax.xlane.f32.xlu0 %v5303
        %v5327 = vpop.xlane.xlu0 %5326
        %5328 = vmax.xlane.f32.xlu0 %v5304
        %v5329 = vpop.xlane.xlu0 %5328
        %5330 = vmax.xlane.f32.xlu0 %v5305
        %v5331 = vpop.xlane.xlu0 %5330
        %5332 = vmax.xlane.f32.xlu0 %v5306
        %v5333 = vpop.xlane.xlu0 %5332
        %5334 = vmax.xlane.f32.xlu0 %v5307
        %v5335 = vpop.xlane.xlu0 %5334
        %5336 = vmax.xlane.f32.xlu0 %v5308
        %v5337 = vpop.xlane.xlu0 %5336
        %5338 = vmax.xlane.f32.xlu0 %v5309
        %v5339 = vpop.xlane.xlu0 %5338
        %5340 = vmax.xlane.f32.xlu0 %v5310
        %v5341 = vpop.xlane.xlu0 %5340
        %5342 = vmax.xlane.f32.xlu0 %v5311
        %v5343 = vpop.xlane.xlu0 %5342
        %v5344 = vsub.f32 %v5296, %v5313
        %v5345 = vsub.f32 %v5297, %v5315
        %v5346 = vsub.f32 %v5298, %v5317
        %v5347 = vsub.f32 %v5299, %v5319
        %v5348 = vsub.f32 %v5300, %v5321
        %v5349 = vsub.f32 %v5301, %v5323
        %v5350 = vsub.f32 %v5302, %v5325
        %v5351 = vsub.f32 %v5303, %v5327
        %v5352 = vsub.f32 %v5304, %v5329
        %v5353 = vsub.f32 %v5305, %v5331
        %v5354 = vsub.f32 %v5306, %v5333
        %v5355 = vsub.f32 %v5307, %v5335
        %v5356 = vsub.f32 %v5308, %v5337
        %v5357 = vsub.f32 %v5309, %v5339
        %v5358 = vsub.f32 %v5310, %v5341
        %v5359 = vsub.f32 %v5311, %v5343
        %v5360 = vmul.f32 %v5344, 1.442695
        %v5361 = vpow.pop %v5360
        %v5362 = vmul.f32 %v5345, 1.442695
        %v5363 = vpow.pop %v5362
        %v5364 = vmul.f32 %v5346, 1.442695
        %v5365 = vpow.pop %v5364
        %v5366 = vmul.f32 %v5347, 1.442695
        %v5367 = vpow.pop %v5366
        %v5368 = vmul.f32 %v5348, 1.442695
        %v5369 = vpow.pop %v5368
        %v5370 = vmul.f32 %v5349, 1.442695
        %v5371 = vpow.pop %v5370
        %v5372 = vmul.f32 %v5350, 1.442695
        %v5373 = vpow.pop %v5372
        %v5374 = vmul.f32 %v5351, 1.442695
        %v5375 = vpow.pop %v5374
        %v5376 = vmul.f32 %v5352, 1.442695
        %v5377 = vpow.pop %v5376
        %v5378 = vmul.f32 %v5353, 1.442695
        %v5379 = vpow.pop %v5378
        %v5380 = vmul.f32 %v5354, 1.442695
        %v5381 = vpow.pop %v5380
        %v5382 = vmul.f32 %v5355, 1.442695
        %v5383 = vpow.pop %v5382
        %v5384 = vmul.f32 %v5356, 1.442695
        %v5385 = vpow.pop %v5384
        %v5386 = vmul.f32 %v5357, 1.442695
        %v5387 = vpow.pop %v5386
        %v5388 = vmul.f32 %v5358, 1.442695
        %v5389 = vpow.pop %v5388
        %v5390 = vmul.f32 %v5359, 1.442695
        %v5391 = vpow.pop %v5390
        %v5392 = vsel %vm5280, %v5361, 0.0
        %v5393 = vsel %vm5281, %v5363, 0.0
        %v5394 = vsel %vm5282, %v5365, 0.0
        %v5395 = vsel %vm5283, %v5367, 0.0
        %v5396 = vsel %vm5284, %v5369, 0.0
        %v5397 = vsel %vm5285, %v5371, 0.0
        %v5398 = vsel %vm5286, %v5373, 0.0
        %v5399 = vsel %vm5287, %v5375, 0.0
        %v5400 = vsel %vm5288, %v5377, 0.0
        %v5401 = vsel %vm5289, %v5379, 0.0
        %v5402 = vsel %vm5290, %v5381, 0.0
        %v5403 = vsel %vm5291, %v5383, 0.0
        %v5404 = vsel %vm5292, %v5385, 0.0
        %v5405 = vsel %vm5293, %v5387, 0.0
        %v5406 = vsel %vm5294, %v5389, 0.0
        %v5407 = vsel %vm5295, %v5391, 0.0
        %5408 = vadd.xlane.f32.xlu0 %v5392
        %v5409 = vpop.xlane.xlu0 %5408
        %5410 = vadd.xlane.f32.xlu0 %v5393
        %v5411 = vpop.xlane.xlu0 %5410
        %5412 = vadd.xlane.f32.xlu0 %v5394
        %v5413 = vpop.xlane.xlu0 %5412
        %5414 = vadd.xlane.f32.xlu0 %v5395
        %v5415 = vpop.xlane.xlu0 %5414
        %5416 = vadd.xlane.f32.xlu0 %v5396
        %v5417 = vpop.xlane.xlu0 %5416
        %5418 = vadd.xlane.f32.xlu0 %v5397
        %v5419 = vpop.xlane.xlu0 %5418
        %5420 = vadd.xlane.f32.xlu0 %v5398
        %v5421 = vpop.xlane.xlu0 %5420
        %5422 = vadd.xlane.f32.xlu0 %v5399
        %v5423 = vpop.xlane.xlu0 %5422
        %5424 = vadd.xlane.f32.xlu0 %v5400
        %v5425 = vpop.xlane.xlu0 %5424
        %5426 = vadd.xlane.f32.xlu0 %v5401
        %v5427 = vpop.xlane.xlu0 %5426
        %5428 = vadd.xlane.f32.xlu0 %v5402
        %v5429 = vpop.xlane.xlu0 %5428
        %5430 = vadd.xlane.f32.xlu0 %v5403
        %v5431 = vpop.xlane.xlu0 %5430
        %5432 = vadd.xlane.f32.xlu0 %v5404
        %v5433 = vpop.xlane.xlu0 %5432
        %5434 = vadd.xlane.f32.xlu0 %v5405
        %v5435 = vpop.xlane.xlu0 %5434
        %5436 = vadd.xlane.f32.xlu0 %v5406
        %v5437 = vpop.xlane.xlu0 %5436
        %5438 = vadd.xlane.f32.xlu0 %v5407
        %v5439 = vpop.xlane.xlu0 %5438
        %v5440 = vmax.f32 %v5409, 1e-30
        %v5441 = vmax.f32 %v5411, 1e-30
        %v5442 = vmax.f32 %v5413, 1e-30
        %v5443 = vmax.f32 %v5415, 1e-30
        %v5444 = vmax.f32 %v5417, 1e-30
        %v5445 = vmax.f32 %v5419, 1e-30
        %v5446 = vmax.f32 %v5421, 1e-30
        %v5447 = vmax.f32 %v5423, 1e-30
        %v5448 = vmax.f32 %v5425, 1e-30
        %v5449 = vmax.f32 %v5427, 1e-30
        %v5450 = vmax.f32 %v5429, 1e-30
        %v5451 = vmax.f32 %v5431, 1e-30
        %v5452 = vmax.f32 %v5433, 1e-30
        %v5453 = vmax.f32 %v5435, 1e-30
        %v5454 = vmax.f32 %v5437, 1e-30
        %v5455 = vmax.f32 %v5439, 1e-30
        %v5456 = vrcp.pop %v5440
        %v5457 = vrcp.pop %v5441
        %v5458 = vrcp.pop %v5442
        %v5459 = vrcp.pop %v5443
        %v5460 = vrcp.pop %v5444
        %v5461 = vrcp.pop %v5445
        %v5462 = vrcp.pop %v5446
        %v5463 = vrcp.pop %v5447
        %v5464 = vrcp.pop %v5448
        %v5465 = vrcp.pop %v5449
        %v5466 = vrcp.pop %v5450
        %v5467 = vrcp.pop %v5451
        %v5468 = vrcp.pop %v5452
        %v5469 = vrcp.pop %v5453
        %v5470 = vrcp.pop %v5454
        %v5471 = vrcp.pop %v5455
        %v5472 = vmul.f32 %v5392, %v5456
        %v5473 = vmul.f32 %v5393, %v5457
        %v5474 = vmul.f32 %v5394, %v5458
        %v5475 = vmul.f32 %v5395, %v5459
        %v5476 = vmul.f32 %v5396, %v5460
        %v5477 = vmul.f32 %v5397, %v5461
        %v5478 = vmul.f32 %v5398, %v5462
        %v5479 = vmul.f32 %v5399, %v5463
        %v5480 = vmul.f32 %v5400, %v5464
        %v5481 = vmul.f32 %v5401, %v5465
        %v5482 = vmul.f32 %v5402, %v5466
        %v5483 = vmul.f32 %v5403, %v5467
        %v5484 = vmul.f32 %v5404, %v5468
        %v5485 = vmul.f32 %v5405, %v5469
        %v5486 = vmul.f32 %v5406, %v5470
        %v5487 = vmul.f32 %v5407, %v5471
        %v5488 = vpack.c.bf16 %v5473, %v5472
        %v5489 = vpack.c.bf16 %v5475, %v5474
        %v5490 = vpack.c.bf16 %v5477, %v5476
        %v5491 = vpack.c.bf16 %v5479, %v5478
        %v5492 = vpack.c.bf16 %v5481, %v5480
        %v5493 = vpack.c.bf16 %v5483, %v5482
        %v5494 = vpack.c.bf16 %v5485, %v5484
        %v5495 = vpack.c.bf16 %v5487, %v5486
        %v5496 = vpack.c.bf16 %v646, %v643
        %v5497 = vpack.c.bf16 %v654, %v651
        %v5498 = vpack.c.bf16 %v662, %v659
        %v5499 = vpack.c.bf16 %v670, %v667
        %v5500 = vpack.c.bf16 %v678, %v675
        %v5501 = vpack.c.bf16 %v686, %v683
        %v5502 = vpack.c.bf16 %v694, %v691
        %v5503 = vpack.c.bf16 %v702, %v699
        %5504 = vmatprep.subr.bf16.mxu0 0
        %5505 = vmatpush1.bf16.msra.mxu0 %v5503
        %5506 = vmatprep.subr.bf16.mxu0 0
        %5507 = vmatpush1.bf16.msra.mxu0 %v5502
        %5508 = vmatprep.subr.bf16.mxu0 0
        %5509 = vmatpush1.bf16.msra.mxu0 %v5501
        %5510 = vmatprep.subr.bf16.mxu0 0
        %5511 = vmatpush1.bf16.msra.mxu0 %v5500
        %5512 = vmatprep.subr.bf16.mxu0 0
        %5513 = vmatpush1.bf16.msra.mxu0 %v5499
        %5514 = vmatprep.subr.bf16.mxu0 0
        %5515 = vmatpush1.bf16.msra.mxu0 %v5498
        %5516 = vmatprep.subr.bf16.mxu0 0
        %5517 = vmatpush1.bf16.msra.mxu0 %v5497
        %5518 = vmatprep.subr.bf16.mxu0 0
        %5519 = vmatpush1.bf16.msra.mxu0 %v5496
        %5520 = vmatprep.subr.bf16.mxu0 0
        %5521 = vmatpush2.bf16.msra.mxu0 0
        %5522 = vmatprep.subr.bf16.mxu0 0
        %5523 = vmatpush2.bf16.msra.mxu0 0
        %5524 = vmatprep.subr.bf16.mxu0 0
        %5525 = vmatpush2.bf16.msra.mxu0 0
        %5526 = vmatprep.subr.bf16.mxu0 0
        %5527 = vmatpush2.bf16.msra.mxu0 0
        %5528 = vmatprep.subr.bf16.mxu0 0
        %5529 = vmatpush2.bf16.msra.mxu0 0
        %5530 = vmatprep.subr.bf16.mxu0 0
        %5531 = vmatpush2.bf16.msra.mxu0 0
        %5532 = vmatprep.subr.bf16.mxu0 0
        %5533 = vmatpush2.bf16.msra.mxu0 0
        %5534 = vmatprep.subr.bf16.mxu0 0
        %5535 = vmatpush2.bf16.msra.mxu0 0
        %5536 = vmatprep.mubr.bf16.mxu0 0
        %5537 = vmatmul.mubr.bf16.gmra.mxu0 %v5488
        %v5538 = vpop.f32.mrf.mxu0
        %v5539 = vadd.f32 0.0, %v5538
        %v5540 = vpop.f32.mrf.mxu0
        %v5541 = vpop.f32.mrf.mxu0
        %v5542 = vadd.f32 0.0, %v5541
        %v5543 = vpop.f32.mrf.mxu0
        %5544 = vmatprep.mubr.bf16.mxu0 0
        %5545 = vmatmul.mubr.bf16.gmra.mxu0 %v5489
        %v5546 = vpop.f32.mrf.mxu0
        %v5547 = vadd.f32 0.0, %v5546
        %v5548 = vpop.f32.mrf.mxu0
        %v5549 = vpop.f32.mrf.mxu0
        %v5550 = vadd.f32 0.0, %v5549
        %v5551 = vpop.f32.mrf.mxu0
        %5552 = vmatprep.mubr.bf16.mxu0 0
        %5553 = vmatmul.mubr.bf16.gmra.mxu0 %v5490
        %v5554 = vpop.f32.mrf.mxu0
        %v5555 = vadd.f32 0.0, %v5554
        %v5556 = vpop.f32.mrf.mxu0
        %v5557 = vpop.f32.mrf.mxu0
        %v5558 = vadd.f32 0.0, %v5557
        %v5559 = vpop.f32.mrf.mxu0
        %5560 = vmatprep.mubr.bf16.mxu0 0
        %5561 = vmatmul.mubr.bf16.gmra.mxu0 %v5491
        %v5562 = vpop.f32.mrf.mxu0
        %v5563 = vadd.f32 0.0, %v5562
        %v5564 = vpop.f32.mrf.mxu0
        %v5565 = vpop.f32.mrf.mxu0
        %v5566 = vadd.f32 0.0, %v5565
        %v5567 = vpop.f32.mrf.mxu0
        %5568 = vmatprep.mubr.bf16.mxu0 0
        %5569 = vmatmul.mubr.bf16.gmra.mxu0 %v5492
        %v5570 = vpop.f32.mrf.mxu0
        %v5571 = vadd.f32 0.0, %v5570
        %v5572 = vpop.f32.mrf.mxu0
        %v5573 = vpop.f32.mrf.mxu0
        %v5574 = vadd.f32 0.0, %v5573
        %v5575 = vpop.f32.mrf.mxu0
        %5576 = vmatprep.mubr.bf16.mxu0 0
        %5577 = vmatmul.mubr.bf16.gmra.mxu0 %v5493
        %v5578 = vpop.f32.mrf.mxu0
        %v5579 = vadd.f32 0.0, %v5578
        %v5580 = vpop.f32.mrf.mxu0
        %v5581 = vpop.f32.mrf.mxu0
        %v5582 = vadd.f32 0.0, %v5581
        %v5583 = vpop.f32.mrf.mxu0
        %5584 = vmatprep.mubr.bf16.mxu0 0
        %5585 = vmatmul.mubr.bf16.gmra.mxu0 %v5494
        %v5586 = vpop.f32.mrf.mxu0
        %v5587 = vadd.f32 0.0, %v5586
        %v5588 = vpop.f32.mrf.mxu0
        %v5589 = vpop.f32.mrf.mxu0
        %v5590 = vadd.f32 0.0, %v5589
        %v5591 = vpop.f32.mrf.mxu0
        %5592 = vmatprep.mubr.bf16.mxu0 0
        %5593 = vmatmul.mubr.bf16.gmra.mxu0 %v5495
        %v5594 = vpop.f32.mrf.mxu0
        %v5595 = vadd.f32 0.0, %v5594
        %v5596 = vpop.f32.mrf.mxu0
        %v5597 = vpop.f32.mrf.mxu0
        %v5598 = vadd.f32 0.0, %v5597
        %v5599 = vpop.f32.mrf.mxu0
        %5600 = vdwg.mxu0
        %v5601 = vmul.f32 %v5539, 0.2
        %v5602 = vmul.f32 %v5542, 0.2
        %v5603 = vmul.f32 %v5547, 0.2
        %v5604 = vmul.f32 %v5550, 0.2
        %v5605 = vmul.f32 %v5555, 0.2
        %v5606 = vmul.f32 %v5558, 0.2
        %v5607 = vmul.f32 %v5563, 0.2
        %v5608 = vmul.f32 %v5566, 0.2
        %v5609 = vmul.f32 %v5571, 0.2
        %v5610 = vmul.f32 %v5574, 0.2
        %v5611 = vmul.f32 %v5579, 0.2
        %v5612 = vmul.f32 %v5582, 0.2
        %v5613 = vmul.f32 %v5587, 0.2
        %v5614 = vmul.f32 %v5590, 0.2
        %v5615 = vmul.f32 %v5595, 0.2
        %v5616 = vmul.f32 %v5598, 0.2
        %v5617 = vmax.f32 %v5539, %v5601
        %v5618 = vmax.f32 %v5542, %v5602
        %v5619 = vmax.f32 %v5547, %v5603
        %v5620 = vmax.f32 %v5550, %v5604
        %v5621 = vmax.f32 %v5555, %v5605
        %v5622 = vmax.f32 %v5558, %v5606
        %v5623 = vmax.f32 %v5563, %v5607
        %v5624 = vmax.f32 %v5566, %v5608
        %v5625 = vmax.f32 %v5571, %v5609
        %v5626 = vmax.f32 %v5574, %v5610
        %v5627 = vmax.f32 %v5579, %v5611
        %v5628 = vmax.f32 %v5582, %v5612
        %v5629 = vmax.f32 %v5587, %v5613
        %v5630 = vmax.f32 %v5590, %v5614
        %v5631 = vmax.f32 %v5595, %v5615
        %v5632 = vmax.f32 %v5598, %v5616
        %v5633 = vld [vmem:[#allocation9] sm:$0xf]
        %v5634 = vld [vmem:[#allocation9 + $0x4] sm:$0xf]
        %v5635 = vld [vmem:[#allocation9 + $0x8] sm:$0xf]
        %v5636 = vld [vmem:[#allocation9 + $0xc] sm:$0xf]
        %v5637 = vld [vmem:[#allocation9 + $0x10] sm:$0xf]
        %v5638 = vld [vmem:[#allocation9 + $0x14] sm:$0xf]
        %v5639 = vld [vmem:[#allocation9 + $0x18] sm:$0xf]
        %v5640 = vld [vmem:[#allocation9 + $0x1c] sm:$0xf]
        %v5641 = vpack.c.bf16 %v5618, %v5617
        %v5642 = vpack.c.bf16 %v5620, %v5619
        %v5643 = vpack.c.bf16 %v5622, %v5621
        %v5644 = vpack.c.bf16 %v5624, %v5623
        %v5645 = vpack.c.bf16 %v5626, %v5625
        %v5646 = vpack.c.bf16 %v5628, %v5627
        %v5647 = vpack.c.bf16 %v5630, %v5629
        %v5648 = vpack.c.bf16 %v5632, %v5631
        %v5649 = vld [vmem:[#allocation9 + $0x20] sm:$0xf]
        %v5650 = vld [vmem:[#allocation9 + $0x24] sm:$0xf]
        %v5651 = vld [vmem:[#allocation9 + $0x28] sm:$0xf]
        %v5652 = vld [vmem:[#allocation9 + $0x2c] sm:$0xf]
        %v5657 = vunpack.c.l.b16 %v5649
        %v5658 = vunpack.c.l.b16 %v5650
        %v5659 = vunpack.c.l.b16 %v5651
        %v5660 = vunpack.c.l.b16 %v5652
        %v5661 = vpack.c.b16 %v5658, %v5657
        %v5662 = vpack.c.b16 %v5660, %v5659
        %vm5665 = vcmask 261120
        %v5667 = vsel %vm5665, %v5641, 0
        %v5670 = vsel %vm5665, %v5642, 0
        %v5673 = vsel %vm5665, %v5643, 0
        %v5676 = vsel %vm5665, %v5644, 0
        %v5679 = vsel %vm5665, %v5645, 0
        %v5682 = vsel %vm5665, %v5646, 0
        %v5685 = vsel %vm5665, %v5647, 0
        %v5688 = vsel %vm5665, %v5648, 0
        %5690 = vmatprep.subr.bf16.mxu0 0
        %5691 = vmatpush1.bf16.msra.mxu0 0
        %5692 = vmatprep.subr.bf16.mxu0 0
        %5693 = vmatpush1.bf16.msra.mxu0 0
        %5694 = vmatprep.subr.bf16.mxu0 0
        %5695 = vmatpush1.bf16.msra.mxu0 0
        %5696 = vmatprep.subr.bf16.mxu0 0
        %5697 = vmatpush1.bf16.msra.mxu0 0
        %5698 = vmatprep.subr.bf16.mxu0 0
        %5699 = vmatpush1.bf16.msra.mxu0 0
        %5700 = vmatprep.subr.bf16.mxu0 0
        %5701 = vmatpush1.bf16.msra.mxu0 0
        %5702 = vmatprep.subr.bf16.mxu0 0
        %5703 = vmatpush1.bf16.msra.mxu0 %v5662
        %5704 = vmatprep.subr.bf16.mxu0 0
        %5705 = vmatpush1.bf16.msra.mxu0 %v5661
        %5706 = vmatprep.subr.bf16.mxu0 0
        %5707 = vmatpush2.bf16.msra.mxu0 0
        %5708 = vmatprep.subr.bf16.mxu0 0
        %5709 = vmatpush2.bf16.msra.mxu0 0
        %5710 = vmatprep.subr.bf16.mxu0 0
        %5711 = vmatpush2.bf16.msra.mxu0 0
        %5712 = vmatprep.subr.bf16.mxu0 0
        %5713 = vmatpush2.bf16.msra.mxu0 0
        %5714 = vmatprep.subr.bf16.mxu0 0
        %5715 = vmatpush2.bf16.msra.mxu0 0
        %5716 = vmatprep.subr.bf16.mxu0 0
        %5717 = vmatpush2.bf16.msra.mxu0 0
        %5718 = vmatprep.subr.bf16.mxu0 0
        %5719 = vmatpush2.bf16.msra.mxu0 0
        %5720 = vmatprep.subr.bf16.mxu0 0
        %5721 = vmatpush2.bf16.msra.mxu0 0
        %5722 = vmatprep.mubr.bf16.mxu0 0
        %5723 = vmatmul.mubr.bf16.gmra.mxu0 %v5667
        %v5724 = vpop.f32.mrf.mxu0
        %v5725 = vadd.f32 0.0, %v5724
        %v5726 = vpop.f32.mrf.mxu0
        %v5727 = vpop.f32.mrf.mxu0
        %v5728 = vadd.f32 0.0, %v5727
        %v5729 = vpop.f32.mrf.mxu0
        %5730 = vmatprep.mubr.bf16.mxu0 0
        %5731 = vmatmul.mubr.bf16.gmra.mxu0 %v5670
        %v5732 = vpop.f32.mrf.mxu0
        %v5733 = vadd.f32 0.0, %v5732
        %v5734 = vpop.f32.mrf.mxu0
        %v5735 = vpop.f32.mrf.mxu0
        %v5736 = vadd.f32 0.0, %v5735
        %v5737 = vpop.f32.mrf.mxu0
        %5738 = vmatprep.mubr.bf16.mxu0 0
        %5739 = vmatmul.mubr.bf16.gmra.mxu0 %v5673
        %v5740 = vpop.f32.mrf.mxu0
        %v5741 = vadd.f32 0.0, %v5740
        %v5742 = vpop.f32.mrf.mxu0
        %v5743 = vpop.f32.mrf.mxu0
        %v5744 = vadd.f32 0.0, %v5743
        %v5745 = vpop.f32.mrf.mxu0
        %5746 = vmatprep.mubr.bf16.mxu0 0
        %5747 = vmatmul.mubr.bf16.gmra.mxu0 %v5676
        %v5748 = vpop.f32.mrf.mxu0
        %v5749 = vadd.f32 0.0, %v5748
        %v5750 = vpop.f32.mrf.mxu0
        %v5751 = vpop.f32.mrf.mxu0
        %v5752 = vadd.f32 0.0, %v5751
        %v5753 = vpop.f32.mrf.mxu0
        %5754 = vmatprep.mubr.bf16.mxu0 0
        %5755 = vmatmul.mubr.bf16.gmra.mxu0 %v5679
        %v5756 = vpop.f32.mrf.mxu0
        %v5757 = vadd.f32 0.0, %v5756
        %v5758 = vpop.f32.mrf.mxu0
        %v5759 = vpop.f32.mrf.mxu0
        %v5760 = vadd.f32 0.0, %v5759
        %v5761 = vpop.f32.mrf.mxu0
        %5762 = vmatprep.mubr.bf16.mxu0 0
        %5763 = vmatmul.mubr.bf16.gmra.mxu0 %v5682
        %v5764 = vpop.f32.mrf.mxu0
        %v5765 = vadd.f32 0.0, %v5764
        %v5766 = vpop.f32.mrf.mxu0
        %v5767 = vpop.f32.mrf.mxu0
        %v5768 = vadd.f32 0.0, %v5767
        %v5769 = vpop.f32.mrf.mxu0
        %5770 = vmatprep.mubr.bf16.mxu0 0
        %5771 = vmatmul.mubr.bf16.gmra.mxu0 %v5685
        %v5772 = vpop.f32.mrf.mxu0
        %v5773 = vadd.f32 0.0, %v5772
        %v5774 = vpop.f32.mrf.mxu0
        %v5775 = vpop.f32.mrf.mxu0
        %v5776 = vadd.f32 0.0, %v5775
        %v5777 = vpop.f32.mrf.mxu0
        %5778 = vmatprep.mubr.bf16.mxu0 0
        %5779 = vmatmul.mubr.bf16.gmra.mxu0 %v5688
        %v5780 = vpop.f32.mrf.mxu0
        %v5781 = vadd.f32 0.0, %v5780
        %v5782 = vpop.f32.mrf.mxu0
        %v5783 = vpop.f32.mrf.mxu0
        %v5784 = vadd.f32 0.0, %v5783
        %v5785 = vpop.f32.mrf.mxu0
        %5786 = vdwg.mxu0
        %v5795 = vunpack.c.l.b16 %v5633
        %v5796 = vunpack.c.l.b16 %v5634
        %v5797 = vunpack.c.l.b16 %v5635
        %v5798 = vunpack.c.l.b16 %v5636
        %v5799 = vunpack.c.l.b16 %v5637
        %v5800 = vunpack.c.l.b16 %v5638
        %v5801 = vunpack.c.l.b16 %v5639
        %v5802 = vunpack.c.l.b16 %v5640
        %v5803 = vpack.c.b16 %v5796, %v5795
        %v5804 = vpack.c.b16 %v5798, %v5797
        %v5805 = vpack.c.b16 %v5800, %v5799
        %v5806 = vpack.c.b16 %v5802, %v5801
        %5811 = vmatprep.subr.bf16.mxu0 0
        %5812 = vmatpush1.bf16.msra.mxu0 0
        %5813 = vmatprep.subr.bf16.mxu0 0
        %5814 = vmatpush1.bf16.msra.mxu0 0
        %5815 = vmatprep.subr.bf16.mxu0 0
        %5816 = vmatpush1.bf16.msra.mxu0 0
        %5817 = vmatprep.subr.bf16.mxu0 0
        %5818 = vmatpush1.bf16.msra.mxu0 0
        %5819 = vmatprep.subr.bf16.mxu0 0
        %5820 = vmatpush1.bf16.msra.mxu0 %v5806
        %5821 = vmatprep.subr.bf16.mxu0 0
        %5822 = vmatpush1.bf16.msra.mxu0 %v5805
        %5823 = vmatprep.subr.bf16.mxu0 0
        %5824 = vmatpush1.bf16.msra.mxu0 %v5804
        %5825 = vmatprep.subr.bf16.mxu0 0
        %5826 = vmatpush1.bf16.msra.mxu0 %v5803
        %5827 = vmatprep.subr.bf16.mxu0 0
        %5828 = vmatpush2.bf16.msra.mxu0 0
        %5829 = vmatprep.subr.bf16.mxu0 0
        %5830 = vmatpush2.bf16.msra.mxu0 0
        %5831 = vmatprep.subr.bf16.mxu0 0
        %5832 = vmatpush2.bf16.msra.mxu0 0
        %5833 = vmatprep.subr.bf16.mxu0 0
        %5834 = vmatpush2.bf16.msra.mxu0 0
        %5835 = vmatprep.subr.bf16.mxu0 0
        %5836 = vmatpush2.bf16.msra.mxu0 0
        %5837 = vmatprep.subr.bf16.mxu0 0
        %5838 = vmatpush2.bf16.msra.mxu0 0
        %5839 = vmatprep.subr.bf16.mxu0 0
        %5840 = vmatpush2.bf16.msra.mxu0 0
        %5841 = vmatprep.subr.bf16.mxu0 0
        %5842 = vmatpush2.bf16.msra.mxu0 0
        %5843 = vmatprep.mubr.bf16.mxu0 0
        %5844 = vmatmul.mubr.bf16.gmra.mxu0 %v585
        %v5845 = vpop.f32.mrf.mxu0
        %v5846 = vadd.f32 %v5725, %v5845
        %v5847 = vpop.f32.mrf.mxu0
        %v5848 = vpop.f32.mrf.mxu0
        %v5849 = vadd.f32 %v5728, %v5848
        %v5850 = vpop.f32.mrf.mxu0
        %5851 = vmatprep.mubr.bf16.mxu0 0
        %5852 = vmatmul.mubr.bf16.gmra.mxu0 %v588
        %v5853 = vpop.f32.mrf.mxu0
        %v5854 = vadd.f32 %v5733, %v5853
        %v5855 = vpop.f32.mrf.mxu0
        %v5856 = vpop.f32.mrf.mxu0
        %v5857 = vadd.f32 %v5736, %v5856
        %v5858 = vpop.f32.mrf.mxu0
        %5859 = vmatprep.mubr.bf16.mxu0 0
        %5860 = vmatmul.mubr.bf16.gmra.mxu0 %v591
        %v5861 = vpop.f32.mrf.mxu0
        %v5862 = vadd.f32 %v5741, %v5861
        %v5863 = vpop.f32.mrf.mxu0
        %v5864 = vpop.f32.mrf.mxu0
        %v5865 = vadd.f32 %v5744, %v5864
        %v5866 = vpop.f32.mrf.mxu0
        %5867 = vmatprep.mubr.bf16.mxu0 0
        %5868 = vmatmul.mubr.bf16.gmra.mxu0 %v594
        %v5869 = vpop.f32.mrf.mxu0
        %v5870 = vadd.f32 %v5749, %v5869
        %v5871 = vpop.f32.mrf.mxu0
        %v5872 = vpop.f32.mrf.mxu0
        %v5873 = vadd.f32 %v5752, %v5872
        %v5874 = vpop.f32.mrf.mxu0
        %5875 = vmatprep.mubr.bf16.mxu0 0
        %5876 = vmatmul.mubr.bf16.gmra.mxu0 %v597
        %v5877 = vpop.f32.mrf.mxu0
        %v5878 = vadd.f32 %v5757, %v5877
        %v5879 = vpop.f32.mrf.mxu0
        %v5880 = vpop.f32.mrf.mxu0
        %v5881 = vadd.f32 %v5760, %v5880
        %v5882 = vpop.f32.mrf.mxu0
        %5883 = vmatprep.mubr.bf16.mxu0 0
        %5884 = vmatmul.mubr.bf16.gmra.mxu0 %v600
        %v5885 = vpop.f32.mrf.mxu0
        %v5886 = vadd.f32 %v5765, %v5885
        %v5887 = vpop.f32.mrf.mxu0
        %v5888 = vpop.f32.mrf.mxu0
        %v5889 = vadd.f32 %v5768, %v5888
        %v5890 = vpop.f32.mrf.mxu0
        %5891 = vmatprep.mubr.bf16.mxu0 0
        %5892 = vmatmul.mubr.bf16.gmra.mxu0 %v603
        %v5893 = vpop.f32.mrf.mxu0
        %v5894 = vadd.f32 %v5773, %v5893
        %v5895 = vpop.f32.mrf.mxu0
        %v5896 = vpop.f32.mrf.mxu0
        %v5897 = vadd.f32 %v5776, %v5896
        %v5898 = vpop.f32.mrf.mxu0
        %5899 = vmatprep.mubr.bf16.mxu0 0
        %5900 = vmatmul.mubr.bf16.gmra.mxu0 %v606
        %v5901 = vpop.f32.mrf.mxu0
        %v5902 = vadd.f32 %v5781, %v5901
        %v5903 = vpop.f32.mrf.mxu0
        %v5904 = vpop.f32.mrf.mxu0
        %v5905 = vadd.f32 %v5784, %v5904
        %v5906 = vpop.f32.mrf.mxu0
        %5907 = vdwg.mxu0
        %v5908 = vlaneseq
        %v5909 = vshrl.u32 %v5908, 7
        %v5910 = vsub.s32 0, %v5909
        %v5911 = vrot.slane %v506, %v5910
        %v5912 = vadd.f32 %v5846, %v5911
        %v5913 = vadd.f32 %v5849, %v5911
        %v5914 = vadd.f32 %v5854, %v5911
        %v5915 = vadd.f32 %v5857, %v5911
        %v5916 = vadd.f32 %v5862, %v5911
        %v5917 = vadd.f32 %v5865, %v5911
        %v5918 = vadd.f32 %v5870, %v5911
        %v5919 = vadd.f32 %v5873, %v5911
        %v5920 = vadd.f32 %v5878, %v5911
        %v5921 = vadd.f32 %v5881, %v5911
        %v5922 = vadd.f32 %v5886, %v5911
        %v5923 = vadd.f32 %v5889, %v5911
        %v5924 = vadd.f32 %v5894, %v5911
        %v5925 = vadd.f32 %v5897, %v5911
        %v5926 = vadd.f32 %v5902, %v5911
        %v5927 = vadd.f32 %v5905, %v5911
        %5928 = vst [vmem:[%s464] sm:$0xff] %v5912
        %5929 = vst [vmem:[%s464 + $0x8] sm:$0xff] %v5913
        %5930 = vst [vmem:[%s464 + $0x10] sm:$0xff] %v5914
        %5931 = vst [vmem:[%s464 + $0x18] sm:$0xff] %v5915
        %5932 = vst [vmem:[%s464 + $0x20] sm:$0xff] %v5916
        %5933 = vst [vmem:[%s464 + $0x28] sm:$0xff] %v5917
        %5934 = vst [vmem:[%s464 + $0x30] sm:$0xff] %v5918
        %5935 = vst [vmem:[%s464 + $0x38] sm:$0xff] %v5919
        %5936 = vst [vmem:[%s464 + $0x40] sm:$0xff] %v5920
        %5937 = vst [vmem:[%s464 + $0x48] sm:$0xff] %v5921
        %5938 = vst [vmem:[%s464 + $0x50] sm:$0xff] %v5922
        %5939 = vst [vmem:[%s464 + $0x58] sm:$0xff] %v5923
        %5940 = vst [vmem:[%s464 + $0x60] sm:$0xff] %v5924
        %5941 = vst [vmem:[%s464 + $0x68] sm:$0xff] %v5925
        %5942 = vst [vmem:[%s464 + $0x70] sm:$0xff] %v5926
        %5943 = vst [vmem:[%s464 + $0x78] sm:$0xff] %v5927
        %s5944 = sand.u32 %s216, 1
        %s5945 = scalar_lea.sflag [#allocation5], %s5944
        %s5946 = sand.u32 %s216, 1
        %s5947 = smul.addr %s5946, 128
        %s5948 = scalar_lea.vmem [#allocation11], %s5947
        // Predicated region
        $region110: #{tpu_custom_call.1} parent=88 // pred_check
          %p5949 = pneg %p226
        $region111: #{tpu_custom_call.1} parent=88 // pred_check_branch
          %5951 = sbr.rel (%p5949) target = $region113
        $region112: #{tpu_custom_call.1} parent=88 // pred_region
          %s5952 = smul.u32 16, %s25
          %s5954 = ssub.s32 2048, 2048
          %5955 = vsyncadd %s5945, %s5954
          %s5956 = smul.addr %s5952, 128
          %s5957 = scalar_lea.hbm %s8, %s5956
          %s5958 = sshll.u32 %s5948, 4
          %s5959 = int_to_ptr.vmem [resolvable:$true] %s5958
          %5964 = dma.vmem_to_hbm [thread:$0]  %s5959, 2048, %s5957, %s5945, 128, 128, 8
        $region113: #{tpu_custom_call.1} parent=88 // pred_fallthru
          _
      $region89: #{tpu_custom_call.1} parent=5 // pred_fallthru
        _
      %p5965 = scmp.le.s32.totalorder 2, %s20
      // Predicated region
      $region114: #{tpu_custom_call.1} parent=5 // pred_check
        %p5966 = pneg %p5965
      $region115: #{tpu_custom_call.1} parent=5 // pred_check_branch
        %5968 = sbr.rel (%p5966) target = $region117
      $region116: #{tpu_custom_call.1} parent=5 // pred_region
        %s5969 = ssub.s32 %s20, 2
        // Predicated region
        $region118: #{tpu_custom_call.1} parent=116 // pred_check
          %p5970 = pneg %p232
        $region119: #{tpu_custom_call.1} parent=116 // pred_check_branch
          %5972 = sbr.rel (%p5970) target = $region121
        $region120: #{tpu_custom_call.1} parent=116 // pred_region
          %s5973 = sand.u32 %s217, 1
          %s5974 = scalar_lea.sflag [#allocation5], %s5973
          %s5975 = sand.u32 %s217, 1
          %s5976 = smul.addr %s5975, 128
          %s5977 = scalar_lea.vmem [#allocation11], %s5976
          %5978 = dma.done %s5974, 2048
        $region121: #{tpu_custom_call.1} parent=116 // pred_fallthru
          _
      $region117: #{tpu_custom_call.1} parent=5 // pred_fallthru
        _
    $region6: #{tpu_custom_call.1} parent=1 // loop_footer
      %s24 = sadd.s32 1, %s20
    $region7: #{tpu_custom_call.1} parent=1 // loop_footer_branch
      %19 = sbr.rel target = $region3
    $region8: #{tpu_custom_call.1} parent=1 // loop_exit
      _
    %5979 = vsyncpa [#allocation4], 1
    %s5980 = scalar_lea.sflag [#allocation4], 1
    %5981 = vsyncpa %s5980, 1
    %5982 = vsyncpa [#allocation8], 1
    %5983 = vsyncpa [#allocation5], 1
    %s5984 = scalar_lea.sflag [#allocation5], 1
    %5985 = vsyncpa %s5984, 1
    %5986 = vsyncpa [#allocation6], 1
    %s5987 = scalar_lea.sflag [#allocation6], 1
    %5988 = vsyncpa %s5987, 1

</llo_original>
